<compile_context>
chip_gen: v5e
topology: v5e:2x2
jax: 0.10.0
libtpu: 0.0.40
codegen_flags: <defaults>
</compile_context>

<pallas_src>
import jax
import jax.numpy as jnp
from jax.experimental import pallas as pl
from jax.experimental.pallas import tpu as pltpu

KSIZE = 4
L_IN = 64                    # length fed to the conv stack (scale1 / pooled scales)
L1 = L_IN - KSIZE + 1        # 61 conv1 outputs (stride 1, valid)
P1 = L1 // 2                 # 30 after MaxPool1d(2)  (floor / ceil_mode=False)
T1 = P1 // 2                 # 15 conv1 positions per pooling phase (4 phases)
L2 = P1 - KSIZE + 1          # 27 conv2 outputs
P2 = L2 // 2                 # 13 after MaxPool1d(2)


def _mscc_kernel(xc_ref, w1_ref, b1_ref, w2_ref, b2_ref,
                 wf1_ref, bf1_ref, wf2_ref, bf2_ref, out_ref):
    # xc_ref: (TN, 15, 4*KSIZE*cin) bf16 phase-major conv1 im2col
    #   xc[n, t, r*pw + k*cin + c] = x[n, 4t + r + k, c]
    pw = xc_ref.shape[-1] // 4          # per-phase im2col width = KSIZE*cin
    xc = xc_ref[...]                    # bf16
    w1 = w1_ref[...]                    # (KSIZE*cin, c1) bf16
    b1 = b1_ref[...]                    # (1, c1) f32

    # ---- Conv1d #1 fused with MaxPool1d(2): conv at positions 4t+r (r=0..3)
    #      via 4 small MXU matmuls; pool = elementwise max of phase pairs.
    #      relu(max(a,b)+bias) == maxpool(relu(conv+bias))  (monotone ops).
    h0 = jnp.dot(xc[:, :, 0 * pw:1 * pw], w1, preferred_element_type=jnp.float32)
    h1 = jnp.dot(xc[:, :, 1 * pw:2 * pw], w1, preferred_element_type=jnp.float32)
    pe = jnp.maximum(jnp.maximum(h0, h1) + b1, 0.0)          # p1 even entries (TN,15,c1)
    h2_ = jnp.dot(xc[:, :, 2 * pw:3 * pw], w1, preferred_element_type=jnp.float32)
    h3_ = jnp.dot(xc[:, :, 3 * pw:4 * pw], w1, preferred_element_type=jnp.float32)
    po = jnp.maximum(jnp.maximum(h2_, h3_) + b1, 0.0)        # p1 odd entries  (TN,15,c1)
    pe = pe.astype(jnp.bfloat16)                             # next dot consumes bf16
    po = po.astype(jnp.bfloat16)

    # ---- Conv1d #2 fused with MaxPool1d(2): even/odd output phases; the
    #      stride-2 pooling is folded into contiguous slices of pe/po, and the
    #      K=4 taps are fused into one 128-wide contraction (lane-dense pcol).
    pcol_e = jnp.concatenate(                                # h2 at positions 2t
        [pe[:, 0:P2, :], po[:, 0:P2, :], pe[:, 1:P2 + 1, :], po[:, 1:P2 + 1, :]],
        axis=-1)                                             # (TN, 13, 4*c1) bf16
    pcol_o = jnp.concatenate(                                # h2 at positions 2t+1
        [po[:, 0:P2, :], pe[:, 1:P2 + 1, :], po[:, 1:P2 + 1, :], pe[:, 2:P2 + 2, :]],
        axis=-1)
    w2 = w2_ref[...]
    h2e = jnp.dot(pcol_e, w2, preferred_element_type=jnp.float32)
    h2o = jnp.dot(pcol_o, w2, preferred_element_type=jnp.float32)
    p2 = jnp.maximum(jnp.maximum(h2e, h2o) + b2_ref[...], 0.0)   # (TN, 13, c2) f32

    # ---- AdaptiveConcatPool1d: BOTH branches are AdaptiveAvgPool1d(1) (per the
    #      reference module), so cat([avg, avg]) @ Wf1 == avg @ (Wf1_top + Wf1_bot).
    #      The folding and the 1/P2 mean scale live in wf1 (glue) -> plain sum here.
    feat = jnp.sum(p2, axis=1)                                   # (TN, c2) f32

    # ---- FC head.
    # TODO(synk): Dropout is treated as inference-time identity; training-mode
    # masking is not implemented.
    z = jnp.maximum(jnp.dot(feat.astype(jnp.bfloat16), wf1_ref[...],
                            preferred_element_type=jnp.float32) + bf1_ref[...], 0.0)
    y = jnp.dot(z.astype(jnp.bfloat16), wf2_ref[...],
                preferred_element_type=jnp.float32) + bf2_ref[...]
    out_ref[...] = y                                             # (TN, NF_PAD) lane-dense


def _round_up(x, m):
    return (x + m - 1) // m * m


def _const_spec(arr):
    nd = arr.ndim
    return pl.BlockSpec(arr.shape, lambda i, _nd=nd: (0,) * _nd)


def _vmem_capacity_bytes():
    try:
        info = pltpu.get_tpu_info()
        cap = getattr(info, "vmem_capacity_bytes", None)
        if cap:
            return int(cap)
    except Exception:
        pass
    return 64 * 1024 * 1024      # conservative default (v7x per-TensorCore)


def _phase_im2col(xk):
    """(N, 64, cin) -> (N, 15, 4*KSIZE*cin) phase-major conv1 im2col (glue-side,
    pure layout plumbing).  out[n, t, (r*KSIZE + k)*cin + c] = xk[n, 4t + r + k, c]."""
    cols = []
    for r in range(4):
        for k in range(KSIZE):
            s = r + k
            cols.append(xk[:, s:s + 4 * (T1 - 1) + 1:4, :])      # 15 positions, step 4
    return jnp.concatenate(cols, axis=-1)


def mscc_heads(xk, params, tile_n=None):
    """Fused conv/pool/FC stack over all (scale * batch) samples, tiled over N."""
    n, l, cin = xk.shape
    assert l == L_IN
    c1 = int(params["b1"].shape[1])
    c2 = int(params["b2"].shape[1])
    nf = int(params["wf2"].shape[1])
    nf_pad = _round_up(max(nf, 128), 128)        # lane-dense output width

    # --- per-generation tiling: re-derived from VMEM capacity, not reused ---
    big_vmem = _vmem_capacity_bytes() >= 100 * 1024 * 1024      # v5e/v6e: 128 MiB
    if tile_n is None:
        tile_n = 512 if big_vmem else 256                       # v7x: 64 MiB / TC
    vmem_limit = (96 if big_vmem else 40) * 1024 * 1024

    # --- glue-side weight prep: im2col layouts, concat-pool + mean folding,
    #     lane-padded FC2, bf16 matmul operands (f32 biases) ---
    w1 = params["w1"].reshape(KSIZE * cin, c1).astype(jnp.bfloat16)   # (K*Cin, c1)
    w2 = params["w2"].reshape(KSIZE * c1, c2).astype(jnp.bfloat16)    # (K*c1,  c2)
    wf1 = ((params["wf1"][:c2, :] + params["wf1"][c2:, :]) / float(P2)
           ).astype(jnp.bfloat16)                                     # fold cat([avg,avg]) & 1/P2
    wf2 = jnp.pad(params["wf2"], ((0, 0), (0, nf_pad - nf))).astype(jnp.bfloat16)
    bf2 = jnp.pad(params["bf2"], ((0, 0), (0, nf_pad - nf)))          # f32
    b1, b2, bf1 = params["b1"], params["b2"], params["bf1"]           # f32

    # --- sample-axis tiling; keep >= 2 grid steps when the batch allows so both
    #     v7x TensorCores get work ---
    tn = _round_up(min(tile_n, n), 8)
    if n >= 16 and _round_up(n, tn) // tn < 2:
        tn = _round_up((n + 1) // 2, 8)
    n_pad = _round_up(n, tn)

    xc = _phase_im2col(xk.astype(jnp.bfloat16))                       # (N, 15, 4*K*cin)
    if n_pad != n:
        xc = jnp.concatenate(
            [xc, jnp.zeros((n_pad - n,) + xc.shape[1:], jnp.bfloat16)], axis=0)

    args = (xc, w1, b1, w2, b2, wf1, bf1, wf2, bf2)
    in_specs = [pl.BlockSpec((tn, T1, 4 * KSIZE * cin), lambda i: (i, 0, 0))]
    in_specs += [_const_spec(a) for a in args[1:]]        # weights stay resident

    out = pl.pallas_call(
        _mscc_kernel,
        grid=(n_pad // tn,),
        in_specs=in_specs,
        out_specs=pl.BlockSpec((tn, nf_pad), lambda i: (i, 0)),
        out_shape=jax.ShapeDtypeStruct((n_pad, nf_pad), jnp.float32),
        compiler_params=pltpu.CompilerParams(
            dimension_semantics=("parallel",),
            vmem_limit_bytes=vmem_limit),
    )(*args)
    return out[:n, :nf]


def adaptive_avg_pool_to(x, out_len):
    # x: (b, c, L).  Matches nn.AdaptiveAvgPool1d(out_len) when L % out_len == 0.
    b, c, L = x.shape
    assert L % out_len == 0, "glue pooling implemented for divisible lengths"
    return x.reshape(b, c, out_len, L // out_len).mean(axis=-1)


def init_params(key, n_features, num_channel=(32, 32, 40), ksize=4, init_alpha=1.0):
    c1, c2 = num_channel[1], num_channel[2]
    ks = jax.random.split(key, 8)
    p = {
        "w1":  0.1 * jax.random.normal(ks[0], (ksize, n_features, c1), jnp.float32),
        "b1":  0.1 * jax.random.normal(ks[1], (1, c1), jnp.float32),
        "w2":  0.1 * jax.random.normal(ks[2], (ksize, c1, c2), jnp.float32),
        "b2":  0.1 * jax.random.normal(ks[3], (1, c2), jnp.float32),
        "wf1": 0.1 * jax.random.normal(ks[4], (2 * c2, c2), jnp.float32),
        "bf1": 0.1 * jax.random.normal(ks[5], (1, c2), jnp.float32),
        "wf2": 0.1 * jax.random.normal(ks[6], (c2, n_features), jnp.float32),
        "bf2": 0.1 * jax.random.normal(ks[7], (1, n_features), jnp.float32),
        "alpha1": jnp.float32(init_alpha),
        "alpha2": jnp.float32(init_alpha),
        "alpha3": jnp.float32(init_alpha),
        "alpha4": jnp.float32(init_alpha),
    }
    return p


def multi_cnn_forward(x, params, scale1=64, scale2=128, scale3=256):
    b, l, c = x.shape
    xt = jnp.transpose(x, (0, 2, 1))                       # (b, c, l)  (NCL)
    s1 = xt[:, :, -scale1:]                                # (b, c, 64)
    s2 = adaptive_avg_pool_to(xt[:, :, -scale2:], 64)
    s3 = adaptive_avg_pool_to(xt[:, :, -scale3:], 64)
    s4 = adaptive_avg_pool_to(xt, 64)

    stacked = jnp.stack([s1, s2, s3, s4], axis=0)          # (4, b, c, 64)
    xk = jnp.transpose(stacked, (0, 1, 3, 2)).reshape(4 * b, 64, c).astype(jnp.float32)

    feats = mscc_heads(xk, params)                         # (4*b, n_features)
    feats = feats.reshape(4, b, -1)

    alphas = jnp.stack([params["alpha1"], params["alpha2"],
                        params["alpha3"], params["alpha4"]])          # (4,)
    combined = jnp.tensordot(alphas, feats, axes=1)        # (b, n_features)

    outputs = combined[None]                               # (1, b, n_features)
    x_out = combined[:, None, :]                           # (b, 1, n_features)
    return x_out, [], outputs


if __name__ == "__main__":
    key = jax.random.PRNGKey(0)
    kx, kp = jax.random.split(key)
    batch, seq_len, n_features = 2, 256, 4
    x = jax.random.normal(kx, (batch, seq_len, n_features), jnp.float32)
    params = init_params(kp, n_features)

    x_out, empty_list, outputs = multi_cnn_forward(x, params)
    jax.block_until_ready((x_out, outputs))
    assert x_out.shape == (batch, 1, n_features)
    assert outputs.shape == (1, batch, n_features)
    assert bool(jnp.isfinite(x_out).all())
    print("KERNEL_OK")
</pallas_src>

<mosaic_0001>
module attributes {stable_mosaic.version = 11 : i64} {
  func.func @_mscc_kernel(%arg0: i32, %arg1: memref<8x15x64xbf16, #tpu.memory_space<vmem>>, %arg2: memref<16x32xbf16, #tpu.memory_space<vmem>>, %arg3: memref<1x32xf32, #tpu.memory_space<vmem>>, %arg4: memref<128x40xbf16, #tpu.memory_space<vmem>>, %arg5: memref<1x40xf32, #tpu.memory_space<vmem>>, %arg6: memref<40x40xbf16, #tpu.memory_space<vmem>>, %arg7: memref<1x40xf32, #tpu.memory_space<vmem>>, %arg8: memref<40x128xbf16, #tpu.memory_space<vmem>>, %arg9: memref<1x128xf32, #tpu.memory_space<vmem>>, %arg10: memref<8x128xf32, #tpu.memory_space<vmem>>) attributes {dimension_semantics = [#tpu.dimension_semantics<parallel>], iteration_bounds = array<i64: 1>, scalar_prefetch = 0 : i64, scratch_operands = 0 : i64, tpu.core_type = #tpu.core_type<tc>, window_params = [{transform_indices = @transform_0, window_bounds = array<i64: 8, 15, 64>}, {pipeline_mode = #tpu.pipeline_mode<synchronous>, transform_indices = @transform_1, window_bounds = array<i64: 16, 32>}, {pipeline_mode = #tpu.pipeline_mode<synchronous>, transform_indices = @transform_2, window_bounds = array<i64: 1, 32>}, {pipeline_mode = #tpu.pipeline_mode<synchronous>, transform_indices = @transform_3, window_bounds = array<i64: 128, 40>}, {pipeline_mode = #tpu.pipeline_mode<synchronous>, transform_indices = @transform_4, window_bounds = array<i64: 1, 40>}, {pipeline_mode = #tpu.pipeline_mode<synchronous>, transform_indices = @transform_5, window_bounds = array<i64: 40, 40>}, {pipeline_mode = #tpu.pipeline_mode<synchronous>, transform_indices = @transform_6, window_bounds = array<i64: 1, 40>}, {pipeline_mode = #tpu.pipeline_mode<synchronous>, transform_indices = @transform_7, window_bounds = array<i64: 40, 128>}, {pipeline_mode = #tpu.pipeline_mode<synchronous>, transform_indices = @transform_8, window_bounds = array<i64: 1, 128>}, {transform_indices = @transform_9, window_bounds = array<i64: 8, 128>}]} {
    %c0 = arith.constant 0 : index
    %c0_0 = arith.constant 0 : index
    %c0_1 = arith.constant 0 : index
    %0 = vector.load %arg1[%c0, %c0_0, %c0_1] : memref<8x15x64xbf16, #tpu.memory_space<vmem>>, vector<8x15x64xbf16>
    %c0_2 = arith.constant 0 : index
    %c0_3 = arith.constant 0 : index
    %1 = vector.load %arg2[%c0_2, %c0_3] : memref<16x32xbf16, #tpu.memory_space<vmem>>, vector<16x32xbf16>
    %c0_4 = arith.constant 0 : index
    %c0_5 = arith.constant 0 : index
    %2 = vector.load %arg3[%c0_4, %c0_5] : memref<1x32xf32, #tpu.memory_space<vmem>>, vector<1x32xf32>
    %3 = vector.extract_strided_slice %0 {offsets = [0, 0, 0], sizes = [8, 15, 16], strides = [1, 1, 1]} : vector<8x15x64xbf16> to vector<8x15x16xbf16>
    %cst = arith.constant dense<0.000000e+00> : vector<8x15x32xf32>
    %4 = tpu.matmul %3, %1, %cst {dimension_numbers = #tpu.dot_dimension_numbers<[2], [0], [0, 1], [1], [0, 0, 0, 1, 1, 1], [], []>} : vector<8x15x16xbf16>, vector<16x32xbf16>, vector<8x15x32xf32> -> vector<8x15x32xf32>
    %5 = vector.extract_strided_slice %0 {offsets = [0, 0, 16], sizes = [8, 15, 16], strides = [1, 1, 1]} : vector<8x15x64xbf16> to vector<8x15x16xbf16>
    %cst_6 = arith.constant dense<0.000000e+00> : vector<8x15x32xf32>
    %6 = tpu.matmul %5, %1, %cst_6 {dimension_numbers = #tpu.dot_dimension_numbers<[2], [0], [0, 1], [1], [0, 0, 0, 1, 1, 1], [], []>} : vector<8x15x16xbf16>, vector<16x32xbf16>, vector<8x15x32xf32> -> vector<8x15x32xf32>
    %7 = arith.maximumf %4, %6 : vector<8x15x32xf32>
    %8 = vector.shape_cast %2 : vector<1x32xf32> to vector<1x1x32xf32>
    %9 = vector.broadcast %8 : vector<1x1x32xf32> to vector<8x15x32xf32>
    %10 = arith.addf %7, %9 : vector<8x15x32xf32>
    %cst_7 = arith.constant 0.000000e+00 : f32
    %11 = vector.broadcast %cst_7 : f32 to vector<8x15x32xf32>
    %12 = arith.maximumf %10, %11 : vector<8x15x32xf32>
    %13 = vector.extract_strided_slice %0 {offsets = [0, 0, 32], sizes = [8, 15, 16], strides = [1, 1, 1]} : vector<8x15x64xbf16> to vector<8x15x16xbf16>
    %cst_8 = arith.constant dense<0.000000e+00> : vector<8x15x32xf32>
    %14 = tpu.matmul %13, %1, %cst_8 {dimension_numbers = #tpu.dot_dimension_numbers<[2], [0], [0, 1], [1], [0, 0, 0, 1, 1, 1], [], []>} : vector<8x15x16xbf16>, vector<16x32xbf16>, vector<8x15x32xf32> -> vector<8x15x32xf32>
    %15 = vector.extract_strided_slice %0 {offsets = [0, 0, 48], sizes = [8, 15, 16], strides = [1, 1, 1]} : vector<8x15x64xbf16> to vector<8x15x16xbf16>
    %cst_9 = arith.constant dense<0.000000e+00> : vector<8x15x32xf32>
    %16 = tpu.matmul %15, %1, %cst_9 {dimension_numbers = #tpu.dot_dimension_numbers<[2], [0], [0, 1], [1], [0, 0, 0, 1, 1, 1], [], []>} : vector<8x15x16xbf16>, vector<16x32xbf16>, vector<8x15x32xf32> -> vector<8x15x32xf32>
    %17 = arith.maximumf %14, %16 : vector<8x15x32xf32>
    %18 = vector.shape_cast %2 : vector<1x32xf32> to vector<1x1x32xf32>
    %19 = vector.broadcast %18 : vector<1x1x32xf32> to vector<8x15x32xf32>
    %20 = arith.addf %17, %19 : vector<8x15x32xf32>
    %cst_10 = arith.constant 0.000000e+00 : f32
    %21 = vector.broadcast %cst_10 : f32 to vector<8x15x32xf32>
    %22 = arith.maximumf %20, %21 : vector<8x15x32xf32>
    %23 = arith.truncf %12 : vector<8x15x32xf32> to vector<8x15x32xbf16>
    %24 = arith.truncf %22 : vector<8x15x32xf32> to vector<8x15x32xbf16>
    %25 = vector.extract_strided_slice %23 {offsets = [0, 0, 0], sizes = [8, 13, 32], strides = [1, 1, 1]} : vector<8x15x32xbf16> to vector<8x13x32xbf16>
    %26 = vector.extract_strided_slice %24 {offsets = [0, 0, 0], sizes = [8, 13, 32], strides = [1, 1, 1]} : vector<8x15x32xbf16> to vector<8x13x32xbf16>
    %27 = vector.extract_strided_slice %23 {offsets = [0, 1, 0], sizes = [8, 13, 32], strides = [1, 1, 1]} : vector<8x15x32xbf16> to vector<8x13x32xbf16>
    %28 = vector.extract_strided_slice %24 {offsets = [0, 1, 0], sizes = [8, 13, 32], strides = [1, 1, 1]} : vector<8x15x32xbf16> to vector<8x13x32xbf16>
    %29 = tpu.concatenate %25, %26, %27, %28 in 2 : vector<8x13x32xbf16>, vector<8x13x32xbf16>, vector<8x13x32xbf16>, vector<8x13x32xbf16> -> vector<8x13x128xbf16>
    %30 = vector.extract_strided_slice %24 {offsets = [0, 0, 0], sizes = [8, 13, 32], strides = [1, 1, 1]} : vector<8x15x32xbf16> to vector<8x13x32xbf16>
    %31 = vector.extract_strided_slice %23 {offsets = [0, 1, 0], sizes = [8, 13, 32], strides = [1, 1, 1]} : vector<8x15x32xbf16> to vector<8x13x32xbf16>
    %32 = vector.extract_strided_slice %24 {offsets = [0, 1, 0], sizes = [8, 13, 32], strides = [1, 1, 1]} : vector<8x15x32xbf16> to vector<8x13x32xbf16>
    %33 = vector.extract_strided_slice %23 {offsets = [0, 2, 0], sizes = [8, 13, 32], strides = [1, 1, 1]} : vector<8x15x32xbf16> to vector<8x13x32xbf16>
    %34 = tpu.concatenate %30, %31, %32, %33 in 2 : vector<8x13x32xbf16>, vector<8x13x32xbf16>, vector<8x13x32xbf16>, vector<8x13x32xbf16> -> vector<8x13x128xbf16>
    %c0_11 = arith.constant 0 : index
    %c0_12 = arith.constant 0 : index
    %35 = vector.load %arg4[%c0_11, %c0_12] : memref<128x40xbf16, #tpu.memory_space<vmem>>, vector<128x40xbf16>
    %cst_13 = arith.constant dense<0.000000e+00> : vector<8x13x40xf32>
    %36 = tpu.matmul %29, %35, %cst_13 {dimension_numbers = #tpu.dot_dimension_numbers<[2], [0], [0, 1], [1], [0, 0, 0, 1, 1, 1], [], []>} : vector<8x13x128xbf16>, vector<128x40xbf16>, vector<8x13x40xf32> -> vector<8x13x40xf32>
    %cst_14 = arith.constant dense<0.000000e+00> : vector<8x13x40xf32>
    %37 = tpu.matmul %34, %35, %cst_14 {dimension_numbers = #tpu.dot_dimension_numbers<[2], [0], [0, 1], [1], [0, 0, 0, 1, 1, 1], [], []>} : vector<8x13x128xbf16>, vector<128x40xbf16>, vector<8x13x40xf32> -> vector<8x13x40xf32>
    %38 = arith.maximumf %36, %37 : vector<8x13x40xf32>
    %c0_15 = arith.constant 0 : index
    %c0_16 = arith.constant 0 : index
    %39 = vector.load %arg5[%c0_15, %c0_16] : memref<1x40xf32, #tpu.memory_space<vmem>>, vector<1x40xf32>
    %40 = vector.shape_cast %39 : vector<1x40xf32> to vector<1x1x40xf32>
    %41 = vector.broadcast %40 : vector<1x1x40xf32> to vector<8x13x40xf32>
    %42 = arith.addf %38, %41 : vector<8x13x40xf32>
    %cst_17 = arith.constant 0.000000e+00 : f32
    %43 = vector.broadcast %cst_17 : f32 to vector<8x13x40xf32>
    %44 = arith.maximumf %42, %43 : vector<8x13x40xf32>
    %cst_18 = arith.constant dense<0.000000e+00> : vector<8x40xf32>
    %45 = vector.multi_reduction <add>, %44, %cst_18 [1] : vector<8x13x40xf32> to vector<8x40xf32>
    %46 = arith.truncf %45 : vector<8x40xf32> to vector<8x40xbf16>
    %c0_19 = arith.constant 0 : index
    %c0_20 = arith.constant 0 : index
    %47 = vector.load %arg6[%c0_19, %c0_20] : memref<40x40xbf16, #tpu.memory_space<vmem>>, vector<40x40xbf16>
    %cst_21 = arith.constant dense<0.000000e+00> : vector<8x40xf32>
    %48 = tpu.matmul %46, %47, %cst_21 {dimension_numbers = #tpu.dot_dimension_numbers<[1], [0], [0], [1], [0, 0, 1, 1], [], []>} : vector<8x40xbf16>, vector<40x40xbf16>, vector<8x40xf32> -> vector<8x40xf32>
    %c0_22 = arith.constant 0 : index
    %c0_23 = arith.constant 0 : index
    %49 = vector.load %arg7[%c0_22, %c0_23] : memref<1x40xf32, #tpu.memory_space<vmem>>, vector<1x40xf32>
    %50 = vector.broadcast %49 : vector<1x40xf32> to vector<8x40xf32>
    %51 = arith.addf %48, %50 : vector<8x40xf32>
    %cst_24 = arith.constant 0.000000e+00 : f32
    %52 = vector.broadcast %cst_24 : f32 to vector<8x40xf32>
    %53 = arith.maximumf %51, %52 : vector<8x40xf32>
    %54 = arith.truncf %53 : vector<8x40xf32> to vector<8x40xbf16>
    %c0_25 = arith.constant 0 : index
    %c0_26 = arith.constant 0 : index
    %55 = vector.load %arg8[%c0_25, %c0_26] : memref<40x128xbf16, #tpu.memory_space<vmem>>, vector<40x128xbf16>
    %cst_27 = arith.constant dense<0.000000e+00> : vector<8x128xf32>
    %56 = tpu.matmul %54, %55, %cst_27 {dimension_numbers = #tpu.dot_dimension_numbers<[1], [0], [0], [1], [0, 0, 1, 1], [], []>} : vector<8x40xbf16>, vector<40x128xbf16>, vector<8x128xf32> -> vector<8x128xf32>
    %c0_28 = arith.constant 0 : index
    %c0_29 = arith.constant 0 : index
    %57 = vector.load %arg9[%c0_28, %c0_29] : memref<1x128xf32, #tpu.memory_space<vmem>>, vector<1x128xf32>
    %58 = vector.broadcast %57 : vector<1x128xf32> to vector<8x128xf32>
    %59 = arith.addf %56, %58 : vector<8x128xf32>
    %c0_30 = arith.constant 0 : index
    %c0_31 = arith.constant 0 : index
    %60 = vector.load %arg10[%c0_30, %c0_31] : memref<8x128xf32, #tpu.memory_space<vmem>>, vector<8x128xf32>
    tpu.vector_store %arg10[%c0_30, %c0_31], %59 {strides = array<i32>} : memref<8x128xf32, #tpu.memory_space<vmem>>, vector<8x128xf32>,
    return
  }
  func.func @transform_0(%arg0: i32) -> (i32, i32, i32) {
    %c0_i32 = arith.constant 0 : i32
    %c0_i32_0 = arith.constant 0 : i32
    %c0_i32_1 = arith.constant 0 : i32
    return %arg0, %c0_i32, %c0_i32_0 : i32, i32, i32
  }
  func.func @transform_1(%arg0: i32) -> (i32, i32) {
    %c0_i32 = arith.constant 0 : i32
    %c0_i32_0 = arith.constant 0 : i32
    %c0_i32_1 = arith.constant 0 : i32
    return %c0_i32, %c0_i32_0 : i32, i32
  }
  func.func @transform_2(%arg0: i32) -> (i32, i32) {
    %c0_i32 = arith.constant 0 : i32
    %c0_i32_0 = arith.constant 0 : i32
    %c0_i32_1 = arith.constant 0 : i32
    return %c0_i32, %c0_i32_0 : i32, i32
  }
  func.func @transform_3(%arg0: i32) -> (i32, i32) {
    %c0_i32 = arith.constant 0 : i32
    %c0_i32_0 = arith.constant 0 : i32
    %c0_i32_1 = arith.constant 0 : i32
    return %c0_i32, %c0_i32_0 : i32, i32
  }
  func.func @transform_4(%arg0: i32) -> (i32, i32) {
    %c0_i32 = arith.constant 0 : i32
    %c0_i32_0 = arith.constant 0 : i32
    %c0_i32_1 = arith.constant 0 : i32
    return %c0_i32, %c0_i32_0 : i32, i32
  }
  func.func @transform_5(%arg0: i32) -> (i32, i32) {
    %c0_i32 = arith.constant 0 : i32
    %c0_i32_0 = arith.constant 0 : i32
    %c0_i32_1 = arith.constant 0 : i32
    return %c0_i32, %c0_i32_0 : i32, i32
  }
  func.func @transform_6(%arg0: i32) -> (i32, i32) {
    %c0_i32 = arith.constant 0 : i32
    %c0_i32_0 = arith.constant 0 : i32
    %c0_i32_1 = arith.constant 0 : i32
    return %c0_i32, %c0_i32_0 : i32, i32
  }
  func.func @transform_7(%arg0: i32) -> (i32, i32) {
    %c0_i32 = arith.constant 0 : i32
    %c0_i32_0 = arith.constant 0 : i32
    %c0_i32_1 = arith.constant 0 : i32
    return %c0_i32, %c0_i32_0 : i32, i32
  }
  func.func @transform_8(%arg0: i32) -> (i32, i32) {
    %c0_i32 = arith.constant 0 : i32
    %c0_i32_0 = arith.constant 0 : i32
    %c0_i32_1 = arith.constant 0 : i32
    return %c0_i32, %c0_i32_0 : i32, i32
  }
  func.func @transform_9(%arg0: i32) -> (i32, i32) {
    %c0_i32 = arith.constant 0 : i32
    %c0_i32_0 = arith.constant 0 : i32
    return %arg0, %c0_i32 : i32, i32
  }
}

</mosaic_0001>

<llo_original>
// kernel: tpu_custom_call.1
$region0: #{tpu_custom_call.1}
  #allocation0 [shape = 'u32[]', space=smem, size = 0x4, offset = 0x4, fixed_abs, tag = 'smem constant byte address 0x4 - core index']
  #allocation1 [shape = 'u32[72,128]{1,0:T(1,128)}', space=vmem, size = 0x9000, scoped, tag = 'internal scratch']
  %s0 = inlined_call_operand.vmem [shape: bf16[8,15,64], index: 0, kind: input, shape index: {}]
  %s1 = inlined_call_operand.vmem [shape: bf16[16,32], index: 1, kind: input, shape index: {}]
  %s2 = inlined_call_operand.vmem [shape: f32[1,32], index: 2, kind: input, shape index: {}]
  %s3 = inlined_call_operand.vmem [shape: bf16[128,40], index: 3, kind: input, shape index: {}]
  %s4 = inlined_call_operand.vmem [shape: f32[1,40], index: 4, kind: input, shape index: {}]
  %s5 = inlined_call_operand.vmem [shape: bf16[40,40], index: 5, kind: input, shape index: {}]
  %s6 = inlined_call_operand.vmem [shape: f32[1,40], index: 6, kind: input, shape index: {}]
  %s7 = inlined_call_operand.vmem [shape: bf16[40,128], index: 7, kind: input, shape index: {}]
  %s8 = inlined_call_operand.vmem [shape: f32[1,128], index: 8, kind: input, shape index: {}]
  %s9 = inlined_call_operand.hbm [shape: f32[8,128], index: 9, kind: output, shape index: {}]
  %s10 = sld [smem:[#allocation0]]
  $region46: #{tpu_custom_call.1} parent=0
    _
  %s12 = ssub.s32 1, %s10
  %s13 = scalar_select 0, %s12, %s10
  $region1: #{tpu_custom_call.1} parent=0
    #allocation2 [shape = 'u8[4096]{0}', space=vmem, size = 0x1000, scoped, tag = 'output window, operand 0, single buffered']
    #allocation3 [shape = 's32[1]{0}', space=sflag, size = 0x4, scoped, tag = 'scoped memory for tpu_custom_call.1']
    %14 = vsyncpa [#allocation3], 0
    // Predicated region
    $region2: #{tpu_custom_call.1} parent=1 // pred_check
      _
    $region3: #{tpu_custom_call.1} parent=1 // pred_check_branch
      %16 = sbr.rel (0) target = $region5
    $region4: #{tpu_custom_call.1} parent=1 // pred_region
      _
    $region5: #{tpu_custom_call.1} parent=1 // pred_fallthru
      _
    // Predicated region
    $region6: #{tpu_custom_call.1} parent=1 // pred_check
      _
    $region7: #{tpu_custom_call.1} parent=1 // pred_check_branch
      %18 = sbr.rel (0) target = $region9
    $region8: #{tpu_custom_call.1} parent=1 // pred_region
      _
    $region9: #{tpu_custom_call.1} parent=1 // pred_fallthru
      _
    // Predicated region
    $region10: #{tpu_custom_call.1} parent=1 // pred_check
      _
    $region11: #{tpu_custom_call.1} parent=1 // pred_check_branch
      %20 = sbr.rel (0) target = $region13
    $region12: #{tpu_custom_call.1} parent=1 // pred_region
      _
    $region13: #{tpu_custom_call.1} parent=1 // pred_fallthru
      _
    // Predicated region
    $region14: #{tpu_custom_call.1} parent=1 // pred_check
      _
    $region15: #{tpu_custom_call.1} parent=1 // pred_check_branch
      %22 = sbr.rel (0) target = $region17
    $region16: #{tpu_custom_call.1} parent=1 // pred_region
      _
    $region17: #{tpu_custom_call.1} parent=1 // pred_fallthru
      _
    // Predicated region
    $region18: #{tpu_custom_call.1} parent=1 // pred_check
      _
    $region19: #{tpu_custom_call.1} parent=1 // pred_check_branch
      %24 = sbr.rel (0) target = $region21
    $region20: #{tpu_custom_call.1} parent=1 // pred_region
      _
    $region21: #{tpu_custom_call.1} parent=1 // pred_fallthru
      _
    // Predicated region
    $region22: #{tpu_custom_call.1} parent=1 // pred_check
      _
    $region23: #{tpu_custom_call.1} parent=1 // pred_check_branch
      %26 = sbr.rel (0) target = $region25
    $region24: #{tpu_custom_call.1} parent=1 // pred_region
      _
    $region25: #{tpu_custom_call.1} parent=1 // pred_fallthru
      _
    // Predicated region
    $region26: #{tpu_custom_call.1} parent=1 // pred_check
      _
    $region27: #{tpu_custom_call.1} parent=1 // pred_check_branch
      %28 = sbr.rel (0) target = $region29
    $region28: #{tpu_custom_call.1} parent=1 // pred_region
      _
    $region29: #{tpu_custom_call.1} parent=1 // pred_fallthru
      _
    // Predicated region
    $region30: #{tpu_custom_call.1} parent=1 // pred_check
      _
    $region31: #{tpu_custom_call.1} parent=1 // pred_check_branch
      %30 = sbr.rel (0) target = $region33
    $region32: #{tpu_custom_call.1} parent=1 // pred_region
      _
    $region33: #{tpu_custom_call.1} parent=1 // pred_fallthru
      _
    // Predicated region
    $region34: #{tpu_custom_call.1} parent=1 // pred_check
      _
    $region35: #{tpu_custom_call.1} parent=1 // pred_check_branch
      %32 = sbr.rel (0) target = $region37
    $region36: #{tpu_custom_call.1} parent=1 // pred_region
      _
    $region37: #{tpu_custom_call.1} parent=1 // pred_fallthru
      _
    %v34 = vld [vmem:[%s0] sm:$0xf]
    %v35 = vld [vmem:[%s0 + $0x4] sm:$0xf]
    %v36 = vld [vmem:[%s0 + $0x8] sm:$0xf]
    %v37 = vld [vmem:[%s0 + $0xc] sm:$0xf]
    %v38 = vld [vmem:[%s0 + $0x10] sm:$0xf]
    %v39 = vld [vmem:[%s0 + $0x14] sm:$0xf]
    %v40 = vld [vmem:[%s0 + $0x18] sm:$0xf]
    %v41 = vld [vmem:[%s0 + $0x1c] sm:$0xf]
    %v42 = vld [vmem:[%s0 + $0x20] sm:$0xf]
    %v43 = vld [vmem:[%s0 + $0x24] sm:$0xf]
    %v44 = vld [vmem:[%s0 + $0x28] sm:$0xf]
    %v45 = vld [vmem:[%s0 + $0x2c] sm:$0xf]
    %v46 = vld [vmem:[%s0 + $0x30] sm:$0xf]
    %v47 = vld [vmem:[%s0 + $0x34] sm:$0xf]
    %v48 = vld [vmem:[%s0 + $0x38] sm:$0xf]
    %v49 = vld [vmem:[%s0 + $0x3c] sm:$0xf]
    %v50 = vld [vmem:[%s1] sm:$0xf]
    %v51 = vld [vmem:[%s1 + $0x4] sm:$0xf]
    %v52 = vld [vmem:[%s2] sm:$0x1]
    %v69 = vrot.slane %v34, 3
    %v70 = vrot.slane %v35, 3
    %v71 = vrot.slane %v36, 3
    %v72 = vrot.slane %v37, 3
    %v73 = vrot.slane %v38, 3
    %v74 = vrot.slane %v39, 3
    %v75 = vrot.slane %v40, 3
    %v76 = vrot.slane %v41, 3
    %v77 = vrot.slane %v42, 3
    %v78 = vrot.slane %v43, 3
    %v79 = vrot.slane %v44, 3
    %v80 = vrot.slane %v45, 3
    %v81 = vrot.slane %v46, 3
    %v82 = vrot.slane %v47, 3
    %v83 = vrot.slane %v48, 3
    %v84 = vrot.slane %v49, 3
    %vm85 = vcmask 1040384
    %v88 = vsel %vm85, %v34, %v69
    %vm90 = vcmask 1041409
    %v91 = vsel %vm90, %v34, %v69
    %v93 = vrot.slane %v91, 1
    %vm94 = vcmask 1042434
    %v95 = vsel %vm94, %v34, %v69
    %v97 = vrot.slane %v95, 2
    %vm98 = vcmask 1043459
    %v99 = vsel %vm98, %v34, %v69
    %v101 = vrot.slane %v99, 3
    %v104 = vsel %vm85, %v35, %v70
    %v106 = vsel %vm90, %v35, %v70
    %v108 = vrot.slane %v106, 1
    %v109 = vsel %vm94, %v35, %v70
    %v111 = vrot.slane %v109, 2
    %v112 = vsel %vm98, %v35, %v70
    %v114 = vrot.slane %v112, 3
    %v117 = vsel %vm85, %v36, %v71
    %v119 = vsel %vm90, %v36, %v71
    %v121 = vrot.slane %v119, 1
    %v122 = vsel %vm94, %v36, %v71
    %v124 = vrot.slane %v122, 2
    %v125 = vsel %vm98, %v36, %v71
    %v127 = vrot.slane %v125, 3
    %v130 = vsel %vm85, %v37, %v72
    %v132 = vsel %vm90, %v37, %v72
    %v134 = vrot.slane %v132, 1
    %v135 = vsel %vm94, %v37, %v72
    %v137 = vrot.slane %v135, 2
    %v138 = vsel %vm98, %v37, %v72
    %v140 = vrot.slane %v138, 3
    %v143 = vsel %vm85, %v38, %v73
    %v145 = vsel %vm90, %v38, %v73
    %v147 = vrot.slane %v145, 1
    %v148 = vsel %vm94, %v38, %v73
    %v150 = vrot.slane %v148, 2
    %v151 = vsel %vm98, %v38, %v73
    %v153 = vrot.slane %v151, 3
    %v156 = vsel %vm85, %v39, %v74
    %v158 = vsel %vm90, %v39, %v74
    %v160 = vrot.slane %v158, 1
    %v161 = vsel %vm94, %v39, %v74
    %v163 = vrot.slane %v161, 2
    %v164 = vsel %vm98, %v39, %v74
    %v166 = vrot.slane %v164, 3
    %v169 = vsel %vm85, %v40, %v75
    %v171 = vsel %vm90, %v40, %v75
    %v173 = vrot.slane %v171, 1
    %v174 = vsel %vm94, %v40, %v75
    %v176 = vrot.slane %v174, 2
    %v177 = vsel %vm98, %v40, %v75
    %v179 = vrot.slane %v177, 3
    %v182 = vsel %vm85, %v41, %v76
    %v184 = vsel %vm90, %v41, %v76
    %v186 = vrot.slane %v184, 1
    %v187 = vsel %vm94, %v41, %v76
    %v189 = vrot.slane %v187, 2
    %v190 = vsel %vm98, %v41, %v76
    %v192 = vrot.slane %v190, 3
    %v195 = vsel %vm85, %v42, %v77
    %v197 = vsel %vm90, %v42, %v77
    %v199 = vrot.slane %v197, 1
    %v200 = vsel %vm94, %v42, %v77
    %v202 = vrot.slane %v200, 2
    %v203 = vsel %vm98, %v42, %v77
    %v205 = vrot.slane %v203, 3
    %v208 = vsel %vm85, %v43, %v78
    %v210 = vsel %vm90, %v43, %v78
    %v212 = vrot.slane %v210, 1
    %v213 = vsel %vm94, %v43, %v78
    %v215 = vrot.slane %v213, 2
    %v216 = vsel %vm98, %v43, %v78
    %v218 = vrot.slane %v216, 3
    %v221 = vsel %vm85, %v44, %v79
    %v223 = vsel %vm90, %v44, %v79
    %v225 = vrot.slane %v223, 1
    %v226 = vsel %vm94, %v44, %v79
    %v228 = vrot.slane %v226, 2
    %v229 = vsel %vm98, %v44, %v79
    %v231 = vrot.slane %v229, 3
    %v234 = vsel %vm85, %v45, %v80
    %v236 = vsel %vm90, %v45, %v80
    %v238 = vrot.slane %v236, 1
    %v239 = vsel %vm94, %v45, %v80
    %v241 = vrot.slane %v239, 2
    %v242 = vsel %vm98, %v45, %v80
    %v244 = vrot.slane %v242, 3
    %v247 = vsel %vm85, %v46, %v81
    %v249 = vsel %vm90, %v46, %v81
    %v251 = vrot.slane %v249, 1
    %v252 = vsel %vm94, %v46, %v81
    %v254 = vrot.slane %v252, 2
    %v255 = vsel %vm98, %v46, %v81
    %v257 = vrot.slane %v255, 3
    %v260 = vsel %vm85, %v47, %v82
    %v262 = vsel %vm90, %v47, %v82
    %v264 = vrot.slane %v262, 1
    %v265 = vsel %vm94, %v47, %v82
    %v267 = vrot.slane %v265, 2
    %v268 = vsel %vm98, %v47, %v82
    %v270 = vrot.slane %v268, 3
    %v273 = vsel %vm85, %v48, %v83
    %v275 = vsel %vm90, %v48, %v83
    %v277 = vrot.slane %v275, 1
    %v278 = vsel %vm94, %v48, %v83
    %v280 = vrot.slane %v278, 2
    %v281 = vsel %vm98, %v48, %v83
    %v283 = vrot.slane %v281, 3
    %v286 = vsel %vm85, %v49, %v84
    %v288 = vsel %vm90, %v49, %v84
    %v290 = vrot.slane %v288, 1
    %v291 = vsel %vm94, %v49, %v84
    %v293 = vrot.slane %v291, 2
    %v294 = vsel %vm98, %v49, %v84
    %v296 = vrot.slane %v294, 3
    %v297 = vunpack.i.l.s16 %v88
    %v298 = vunpack.i.h.s16 %v88
    %v299 = vunpack.i.l.s16 %v93
    %v300 = vunpack.i.h.s16 %v93
    %v301 = vunpack.i.l.s16 %v97
    %v302 = vunpack.i.h.s16 %v97
    %v303 = vunpack.i.l.s16 %v101
    %v304 = vunpack.i.h.s16 %v101
    %v305 = vunpack.i.l.s16 %v104
    %v306 = vunpack.i.h.s16 %v104
    %v307 = vunpack.i.l.s16 %v108
    %v308 = vunpack.i.h.s16 %v108
    %v309 = vunpack.i.l.s16 %v111
    %v310 = vunpack.i.h.s16 %v111
    %v311 = vunpack.i.l.s16 %v114
    %v312 = vunpack.i.l.s16 %v117
    %v313 = vunpack.i.h.s16 %v117
    %v314 = vunpack.i.l.s16 %v121
    %v315 = vunpack.i.h.s16 %v121
    %v316 = vunpack.i.l.s16 %v124
    %v317 = vunpack.i.h.s16 %v124
    %v318 = vunpack.i.l.s16 %v127
    %v319 = vunpack.i.h.s16 %v127
    %v320 = vunpack.i.l.s16 %v130
    %v321 = vunpack.i.h.s16 %v130
    %v322 = vunpack.i.l.s16 %v134
    %v323 = vunpack.i.h.s16 %v134
    %v324 = vunpack.i.l.s16 %v137
    %v325 = vunpack.i.h.s16 %v137
    %v326 = vunpack.i.l.s16 %v140
    %v327 = vunpack.i.l.s16 %v143
    %v328 = vunpack.i.h.s16 %v143
    %v329 = vunpack.i.l.s16 %v147
    %v330 = vunpack.i.h.s16 %v147
    %v331 = vunpack.i.l.s16 %v150
    %v332 = vunpack.i.h.s16 %v150
    %v333 = vunpack.i.l.s16 %v153
    %v334 = vunpack.i.h.s16 %v153
    %v335 = vunpack.i.l.s16 %v156
    %v336 = vunpack.i.h.s16 %v156
    %v337 = vunpack.i.l.s16 %v160
    %v338 = vunpack.i.h.s16 %v160
    %v339 = vunpack.i.l.s16 %v163
    %v340 = vunpack.i.h.s16 %v163
    %v341 = vunpack.i.l.s16 %v166
    %v342 = vunpack.i.l.s16 %v169
    %v343 = vunpack.i.h.s16 %v169
    %v344 = vunpack.i.l.s16 %v173
    %v345 = vunpack.i.h.s16 %v173
    %v346 = vunpack.i.l.s16 %v176
    %v347 = vunpack.i.h.s16 %v176
    %v348 = vunpack.i.l.s16 %v179
    %v349 = vunpack.i.h.s16 %v179
    %v350 = vunpack.i.l.s16 %v182
    %v351 = vunpack.i.h.s16 %v182
    %v352 = vunpack.i.l.s16 %v186
    %v353 = vunpack.i.h.s16 %v186
    %v354 = vunpack.i.l.s16 %v189
    %v355 = vunpack.i.h.s16 %v189
    %v356 = vunpack.i.l.s16 %v192
    %v357 = vunpack.i.l.s16 %v195
    %v358 = vunpack.i.h.s16 %v195
    %v359 = vunpack.i.l.s16 %v199
    %v360 = vunpack.i.h.s16 %v199
    %v361 = vunpack.i.l.s16 %v202
    %v362 = vunpack.i.h.s16 %v202
    %v363 = vunpack.i.l.s16 %v205
    %v364 = vunpack.i.h.s16 %v205
    %v365 = vunpack.i.l.s16 %v208
    %v366 = vunpack.i.h.s16 %v208
    %v367 = vunpack.i.l.s16 %v212
    %v368 = vunpack.i.h.s16 %v212
    %v369 = vunpack.i.l.s16 %v215
    %v370 = vunpack.i.h.s16 %v215
    %v371 = vunpack.i.l.s16 %v218
    %v372 = vunpack.i.l.s16 %v221
    %v373 = vunpack.i.h.s16 %v221
    %v374 = vunpack.i.l.s16 %v225
    %v375 = vunpack.i.h.s16 %v225
    %v376 = vunpack.i.l.s16 %v228
    %v377 = vunpack.i.h.s16 %v228
    %v378 = vunpack.i.l.s16 %v231
    %v379 = vunpack.i.h.s16 %v231
    %v380 = vunpack.i.l.s16 %v234
    %v381 = vunpack.i.h.s16 %v234
    %v382 = vunpack.i.l.s16 %v238
    %v383 = vunpack.i.h.s16 %v238
    %v384 = vunpack.i.l.s16 %v241
    %v385 = vunpack.i.h.s16 %v241
    %v386 = vunpack.i.l.s16 %v244
    %v387 = vunpack.i.l.s16 %v247
    %v388 = vunpack.i.h.s16 %v247
    %v389 = vunpack.i.l.s16 %v251
    %v390 = vunpack.i.h.s16 %v251
    %v391 = vunpack.i.l.s16 %v254
    %v392 = vunpack.i.h.s16 %v254
    %v393 = vunpack.i.l.s16 %v257
    %v394 = vunpack.i.h.s16 %v257
    %v395 = vunpack.i.l.s16 %v260
    %v396 = vunpack.i.h.s16 %v260
    %v397 = vunpack.i.l.s16 %v264
    %v398 = vunpack.i.h.s16 %v264
    %v399 = vunpack.i.l.s16 %v267
    %v400 = vunpack.i.h.s16 %v267
    %v401 = vunpack.i.l.s16 %v270
    %v402 = vunpack.i.l.s16 %v273
    %v403 = vunpack.i.h.s16 %v273
    %v404 = vunpack.i.l.s16 %v277
    %v405 = vunpack.i.h.s16 %v277
    %v406 = vunpack.i.l.s16 %v280
    %v407 = vunpack.i.h.s16 %v280
    %v408 = vunpack.i.l.s16 %v283
    %v409 = vunpack.i.h.s16 %v283
    %v410 = vunpack.i.l.s16 %v286
    %v411 = vunpack.i.h.s16 %v286
    %v412 = vunpack.i.l.s16 %v290
    %v413 = vunpack.i.h.s16 %v290
    %v414 = vunpack.i.l.s16 %v293
    %v415 = vunpack.i.h.s16 %v293
    %v416 = vunpack.i.l.s16 %v296
    %v417 = vpack.i.b16 %v298, %v297
    %v418 = vpack.i.b16 %v300, %v299
    %v419 = vpack.i.b16 %v302, %v301
    %v420 = vpack.i.b16 %v304, %v303
    %v421 = vpack.i.b16 %v306, %v305
    %v422 = vpack.i.b16 %v308, %v307
    %v423 = vpack.i.b16 %v310, %v309
    %v424 = vpack.i.b16 %v312, %v311
    %v425 = vpack.i.b16 %v314, %v313
    %v426 = vpack.i.b16 %v316, %v315
    %v427 = vpack.i.b16 %v318, %v317
    %v428 = vpack.i.b16 %v320, %v319
    %v429 = vpack.i.b16 %v322, %v321
    %v430 = vpack.i.b16 %v324, %v323
    %v431 = vpack.i.b16 %v326, %v325
    %v432 = vpack.i.b16 %v328, %v327
    %v433 = vpack.i.b16 %v330, %v329
    %v434 = vpack.i.b16 %v332, %v331
    %v435 = vpack.i.b16 %v334, %v333
    %v436 = vpack.i.b16 %v336, %v335
    %v437 = vpack.i.b16 %v338, %v337
    %v438 = vpack.i.b16 %v340, %v339
    %v439 = vpack.i.b16 %v342, %v341
    %v440 = vpack.i.b16 %v344, %v343
    %v441 = vpack.i.b16 %v346, %v345
    %v442 = vpack.i.b16 %v348, %v347
    %v443 = vpack.i.b16 %v350, %v349
    %v444 = vpack.i.b16 %v352, %v351
    %v445 = vpack.i.b16 %v354, %v353
    %v446 = vpack.i.b16 %v356, %v355
    %v447 = vpack.i.b16 %v358, %v357
    %v448 = vpack.i.b16 %v360, %v359
    %v449 = vpack.i.b16 %v362, %v361
    %v450 = vpack.i.b16 %v364, %v363
    %v451 = vpack.i.b16 %v366, %v365
    %v452 = vpack.i.b16 %v368, %v367
    %v453 = vpack.i.b16 %v370, %v369
    %v454 = vpack.i.b16 %v372, %v371
    %v455 = vpack.i.b16 %v374, %v373
    %v456 = vpack.i.b16 %v376, %v375
    %v457 = vpack.i.b16 %v378, %v377
    %v458 = vpack.i.b16 %v380, %v379
    %v459 = vpack.i.b16 %v382, %v381
    %v460 = vpack.i.b16 %v384, %v383
    %v461 = vpack.i.b16 %v386, %v385
    %v462 = vpack.i.b16 %v388, %v387
    %v463 = vpack.i.b16 %v390, %v389
    %v464 = vpack.i.b16 %v392, %v391
    %v465 = vpack.i.b16 %v394, %v393
    %v466 = vpack.i.b16 %v396, %v395
    %v467 = vpack.i.b16 %v398, %v397
    %v468 = vpack.i.b16 %v400, %v399
    %v469 = vpack.i.b16 %v402, %v401
    %v470 = vpack.i.b16 %v404, %v403
    %v471 = vpack.i.b16 %v406, %v405
    %v472 = vpack.i.b16 %v408, %v407
    %v473 = vpack.i.b16 %v410, %v409
    %v474 = vpack.i.b16 %v412, %v411
    %v475 = vpack.i.b16 %v414, %v413
    %v476 = vpack.i.b16 %v416, %v415
    %478 = vst [vmem:[#allocation1] ss:$9 sm:$0xff] %v417
    %s480 = scalar_lea.vmem [#allocation1], 1
    %481 = vst [vmem:[%s480] ss:$9 sm:$0xff] %v418
    %s483 = scalar_lea.vmem [#allocation1], 2
    %484 = vst [vmem:[%s483] ss:$9 sm:$0xff] %v419
    %s486 = scalar_lea.vmem [#allocation1], 3
    %487 = vst [vmem:[%s486] ss:$9 sm:$0xff] %v420
    %s489 = scalar_lea.vmem [#allocation1], 4
    %490 = vst [vmem:[%s489] ss:$9 sm:$0xff] %v421
    %s492 = scalar_lea.vmem [#allocation1], 5
    %493 = vst [vmem:[%s492] ss:$9 sm:$0xff] %v422
    %s495 = scalar_lea.vmem [#allocation1], 6
    %496 = vst [vmem:[%s495] ss:$9 sm:$0xff] %v423
    %s498 = scalar_lea.vmem [#allocation1], 7
    %499 = vst [vmem:[%s498] ss:$9 sm:$0xff] %v424
    %v500 = vld [vmem:[#allocation1] sm:$0xff]
    %502 = vst [vmem:[#allocation1] ss:$9 sm:$0xff] %v425
    %504 = vst [vmem:[%s480] ss:$9 sm:$0xff] %v426
    %506 = vst [vmem:[%s483] ss:$9 sm:$0xff] %v427
    %508 = vst [vmem:[%s486] ss:$9 sm:$0xff] %v428
    %510 = vst [vmem:[%s489] ss:$9 sm:$0xff] %v429
    %512 = vst [vmem:[%s492] ss:$9 sm:$0xff] %v430
    %514 = vst [vmem:[%s495] ss:$9 sm:$0xff] %v431
    %516 = vst [vmem:[%s498] ss:$9 sm:$0xff] %v432
    %v517 = vld [vmem:[#allocation1] sm:$0xff]
    %519 = vst [vmem:[#allocation1] ss:$9 sm:$0xff] %v433
    %521 = vst [vmem:[%s480] ss:$9 sm:$0xff] %v434
    %523 = vst [vmem:[%s483] ss:$9 sm:$0xff] %v435
    %525 = vst [vmem:[%s486] ss:$9 sm:$0xff] %v436
    %527 = vst [vmem:[%s489] ss:$9 sm:$0xff] %v437
    %529 = vst [vmem:[%s492] ss:$9 sm:$0xff] %v438
    %531 = vst [vmem:[%s495] ss:$9 sm:$0xff] %v439
    %533 = vst [vmem:[%s498] ss:$9 sm:$0xff] %v440
    %v534 = vld [vmem:[#allocation1] sm:$0xff]
    %536 = vst [vmem:[#allocation1] ss:$9 sm:$0xff] %v441
    %538 = vst [vmem:[%s480] ss:$9 sm:$0xff] %v442
    %540 = vst [vmem:[%s483] ss:$9 sm:$0xff] %v443
    %542 = vst [vmem:[%s486] ss:$9 sm:$0xff] %v444
    %544 = vst [vmem:[%s489] ss:$9 sm:$0xff] %v445
    %546 = vst [vmem:[%s492] ss:$9 sm:$0xff] %v446
    %548 = vst [vmem:[%s495] ss:$9 sm:$0xff] %v447
    %550 = vst [vmem:[%s498] ss:$9 sm:$0xff] %v448
    %v551 = vld [vmem:[#allocation1] sm:$0xff]
    %553 = vst [vmem:[#allocation1] ss:$9 sm:$0xff] %v449
    %555 = vst [vmem:[%s480] ss:$9 sm:$0xff] %v450
    %557 = vst [vmem:[%s483] ss:$9 sm:$0xff] %v451
    %559 = vst [vmem:[%s486] ss:$9 sm:$0xff] %v452
    %561 = vst [vmem:[%s489] ss:$9 sm:$0xff] %v453
    %563 = vst [vmem:[%s492] ss:$9 sm:$0xff] %v454
    %565 = vst [vmem:[%s495] ss:$9 sm:$0xff] %v455
    %567 = vst [vmem:[%s498] ss:$9 sm:$0xff] %v456
    %v568 = vld [vmem:[#allocation1] sm:$0xff]
    %570 = vst [vmem:[#allocation1] ss:$9 sm:$0xff] %v457
    %572 = vst [vmem:[%s480] ss:$9 sm:$0xff] %v458
    %574 = vst [vmem:[%s483] ss:$9 sm:$0xff] %v459
    %576 = vst [vmem:[%s486] ss:$9 sm:$0xff] %v460
    %578 = vst [vmem:[%s489] ss:$9 sm:$0xff] %v461
    %580 = vst [vmem:[%s492] ss:$9 sm:$0xff] %v462
    %582 = vst [vmem:[%s495] ss:$9 sm:$0xff] %v463
    %584 = vst [vmem:[%s498] ss:$9 sm:$0xff] %v464
    %v585 = vld [vmem:[#allocation1] sm:$0xff]
    %587 = vst [vmem:[#allocation1] ss:$9 sm:$0xff] %v465
    %589 = vst [vmem:[%s480] ss:$9 sm:$0xff] %v466
    %591 = vst [vmem:[%s483] ss:$9 sm:$0xff] %v467
    %593 = vst [vmem:[%s486] ss:$9 sm:$0xff] %v468
    %595 = vst [vmem:[%s489] ss:$9 sm:$0xff] %v469
    %597 = vst [vmem:[%s492] ss:$9 sm:$0xff] %v470
    %599 = vst [vmem:[%s495] ss:$9 sm:$0xff] %v471
    %601 = vst [vmem:[%s498] ss:$9 sm:$0xff] %v472
    %v602 = vld [vmem:[#allocation1] sm:$0xff]
    %604 = vst [vmem:[#allocation1] ss:$9 sm:$0xff] %v473
    %606 = vst [vmem:[%s480] ss:$9 sm:$0xff] %v474
    %608 = vst [vmem:[%s483] ss:$9 sm:$0xff] %v475
    %610 = vst [vmem:[%s486] ss:$9 sm:$0xff] %v476
    %v611 = vld [vmem:[#allocation1] sm:$0xff]
    %v614 = vunpack.c.l.b16 %v50
    %v615 = vunpack.c.l.b16 %v51
    %v616 = vpack.c.b16 %v615, %v614
    %vm618 = vcmask 130048
    %v619 = vsel %vm618, %v500, 0
    %v621 = vsel %vm618, %v517, 0
    %v623 = vsel %vm618, %v534, 0
    %v625 = vsel %vm618, %v551, 0
    %v627 = vsel %vm618, %v568, 0
    %v629 = vsel %vm618, %v585, 0
    %v631 = vsel %vm618, %v602, 0
    %v633 = vsel %vm618, %v611, 0
    %635 = vmatpush.bf16.msra.mxu0 0
    %636 = vmatpush.bf16.msra.mxu0 0
    %637 = vmatpush.bf16.msra.mxu0 0
    %638 = vmatpush.bf16.msra.mxu0 0
    %639 = vmatpush.bf16.msra.mxu0 0
    %640 = vmatpush.bf16.msra.mxu0 0
    %641 = vmatpush.bf16.msra.mxu0 0
    %642 = vmatpush.bf16.msra.mxu0 %v616
    %643 = vmatmul.bf16.gmra.mxu0 %v619
    %v644 = vpop.f32.mrf.mxu0
    %v645 = vadd.f32 0.0, %v644
    %v646 = vpop.f32.mrf.mxu0
    %v647 = vadd.f32 0.0, %v646
    %648 = vmatmul.bf16.gmra.mxu0 %v621
    %v649 = vpop.f32.mrf.mxu0
    %v650 = vadd.f32 0.0, %v649
    %v651 = vpop.f32.mrf.mxu0
    %v652 = vadd.f32 0.0, %v651
    %653 = vmatmul.bf16.gmra.mxu0 %v623
    %v654 = vpop.f32.mrf.mxu0
    %v655 = vadd.f32 0.0, %v654
    %v656 = vpop.f32.mrf.mxu0
    %v657 = vadd.f32 0.0, %v656
    %658 = vmatmul.bf16.gmra.mxu0 %v625
    %v659 = vpop.f32.mrf.mxu0
    %v660 = vadd.f32 0.0, %v659
    %v661 = vpop.f32.mrf.mxu0
    %v662 = vadd.f32 0.0, %v661
    %663 = vmatmul.bf16.gmra.mxu0 %v627
    %v664 = vpop.f32.mrf.mxu0
    %v665 = vadd.f32 0.0, %v664
    %v666 = vpop.f32.mrf.mxu0
    %v667 = vadd.f32 0.0, %v666
    %668 = vmatmul.bf16.gmra.mxu0 %v629
    %v669 = vpop.f32.mrf.mxu0
    %v670 = vadd.f32 0.0, %v669
    %v671 = vpop.f32.mrf.mxu0
    %v672 = vadd.f32 0.0, %v671
    %673 = vmatmul.bf16.gmra.mxu0 %v631
    %v674 = vpop.f32.mrf.mxu0
    %v675 = vadd.f32 0.0, %v674
    %v676 = vpop.f32.mrf.mxu0
    %v677 = vadd.f32 0.0, %v676
    %678 = vmatmul.bf16.gmra.mxu0 %v633
    %v679 = vpop.f32.mrf.mxu0
    %v680 = vadd.f32 0.0, %v679
    %v681 = vpop.f32.mrf.mxu0
    %682 = vdwg.mxu0
    %v698 = vrot.slane %v645, 1
    %v699 = vrot.slane %v645, 2
    %v700 = vrot.slane %v645, 3
    %v701 = vrot.slane %v645, 4
    %v702 = vrot.slane %v645, 5
    %v703 = vrot.slane %v645, 6
    %v704 = vrot.slane %v645, 7
    %v705 = vrot.slane %v647, 1
    %v706 = vrot.slane %v647, 2
    %v707 = vrot.slane %v647, 3
    %v708 = vrot.slane %v647, 4
    %v709 = vrot.slane %v647, 5
    %v710 = vrot.slane %v647, 6
    %v711 = vrot.slane %v647, 7
    %v712 = vrot.slane %v650, 1
    %v713 = vrot.slane %v650, 2
    %v714 = vrot.slane %v650, 3
    %v715 = vrot.slane %v650, 4
    %v716 = vrot.slane %v650, 5
    %v717 = vrot.slane %v650, 6
    %v718 = vrot.slane %v650, 7
    %v719 = vrot.slane %v652, 1
    %v720 = vrot.slane %v652, 2
    %v721 = vrot.slane %v652, 3
    %v722 = vrot.slane %v652, 4
    %v723 = vrot.slane %v652, 5
    %v724 = vrot.slane %v652, 6
    %v725 = vrot.slane %v652, 7
    %v726 = vrot.slane %v655, 1
    %v727 = vrot.slane %v655, 2
    %v728 = vrot.slane %v655, 3
    %v729 = vrot.slane %v655, 4
    %v730 = vrot.slane %v655, 5
    %v731 = vrot.slane %v655, 6
    %v732 = vrot.slane %v655, 7
    %v733 = vrot.slane %v657, 1
    %v734 = vrot.slane %v657, 2
    %v735 = vrot.slane %v657, 3
    %v736 = vrot.slane %v657, 4
    %v737 = vrot.slane %v657, 5
    %v738 = vrot.slane %v657, 6
    %v739 = vrot.slane %v657, 7
    %v740 = vrot.slane %v660, 1
    %v741 = vrot.slane %v660, 2
    %v742 = vrot.slane %v660, 3
    %v743 = vrot.slane %v660, 4
    %v744 = vrot.slane %v660, 5
    %v745 = vrot.slane %v660, 6
    %v746 = vrot.slane %v660, 7
    %v747 = vrot.slane %v662, 1
    %v748 = vrot.slane %v662, 2
    %v749 = vrot.slane %v662, 3
    %v750 = vrot.slane %v662, 4
    %v751 = vrot.slane %v662, 5
    %v752 = vrot.slane %v662, 6
    %v753 = vrot.slane %v662, 7
    %v754 = vrot.slane %v665, 1
    %v755 = vrot.slane %v665, 2
    %v756 = vrot.slane %v665, 3
    %v757 = vrot.slane %v665, 4
    %v758 = vrot.slane %v665, 5
    %v759 = vrot.slane %v665, 6
    %v760 = vrot.slane %v665, 7
    %v761 = vrot.slane %v667, 1
    %v762 = vrot.slane %v667, 2
    %v763 = vrot.slane %v667, 3
    %v764 = vrot.slane %v667, 4
    %v765 = vrot.slane %v667, 5
    %v766 = vrot.slane %v667, 6
    %v767 = vrot.slane %v667, 7
    %v768 = vrot.slane %v670, 1
    %v769 = vrot.slane %v670, 2
    %v770 = vrot.slane %v670, 3
    %v771 = vrot.slane %v670, 4
    %v772 = vrot.slane %v670, 5
    %v773 = vrot.slane %v670, 6
    %v774 = vrot.slane %v670, 7
    %v775 = vrot.slane %v672, 1
    %v776 = vrot.slane %v672, 2
    %v777 = vrot.slane %v672, 3
    %v778 = vrot.slane %v672, 4
    %v779 = vrot.slane %v672, 5
    %v780 = vrot.slane %v672, 6
    %v781 = vrot.slane %v672, 7
    %v782 = vrot.slane %v675, 1
    %v783 = vrot.slane %v675, 2
    %v784 = vrot.slane %v675, 3
    %v785 = vrot.slane %v675, 4
    %v786 = vrot.slane %v675, 5
    %v787 = vrot.slane %v675, 6
    %v788 = vrot.slane %v675, 7
    %v789 = vrot.slane %v677, 1
    %v790 = vrot.slane %v677, 2
    %v791 = vrot.slane %v677, 3
    %v792 = vrot.slane %v677, 4
    %v793 = vrot.slane %v677, 5
    %v794 = vrot.slane %v677, 6
    %v795 = vrot.slane %v677, 7
    %v796 = vrot.slane %v680, 1
    %v797 = vrot.slane %v680, 2
    %v798 = vrot.slane %v680, 3
    %v799 = vrot.slane %v680, 4
    %v800 = vrot.slane %v680, 5
    %v801 = vrot.slane %v680, 6
    %v802 = vrot.slane %v680, 7
    %908 = vst [vmem:[#allocation1] ss:$9 sm:$0xff] %v417
    %s909 = scalar_lea.vmem [#allocation1], 1
    %910 = vst [vmem:[%s909] ss:$9 sm:$0xff] %v418
    %s911 = scalar_lea.vmem [#allocation1], 2
    %912 = vst [vmem:[%s911] ss:$9 sm:$0xff] %v419
    %s913 = scalar_lea.vmem [#allocation1], 3
    %914 = vst [vmem:[%s913] ss:$9 sm:$0xff] %v420
    %s915 = scalar_lea.vmem [#allocation1], 4
    %916 = vst [vmem:[%s915] ss:$9 sm:$0xff] %v421
    %s917 = scalar_lea.vmem [#allocation1], 5
    %918 = vst [vmem:[%s917] ss:$9 sm:$0xff] %v422
    %s919 = scalar_lea.vmem [#allocation1], 6
    %920 = vst [vmem:[%s919] ss:$9 sm:$0xff] %v423
    %s921 = scalar_lea.vmem [#allocation1], 7
    %922 = vst [vmem:[%s921] ss:$9 sm:$0xff] %v424
    %v923 = vld [vmem:[#allocation1] sm:$0xff]
    %925 = vst [vmem:[#allocation1] ss:$9 sm:$0xff] %v425
    %926 = vst [vmem:[%s909] ss:$9 sm:$0xff] %v426
    %927 = vst [vmem:[%s911] ss:$9 sm:$0xff] %v427
    %928 = vst [vmem:[%s913] ss:$9 sm:$0xff] %v428
    %929 = vst [vmem:[%s915] ss:$9 sm:$0xff] %v429
    %930 = vst [vmem:[%s917] ss:$9 sm:$0xff] %v430
    %931 = vst [vmem:[%s919] ss:$9 sm:$0xff] %v431
    %932 = vst [vmem:[%s921] ss:$9 sm:$0xff] %v432
    %v933 = vld [vmem:[#allocation1] sm:$0xff]
    %935 = vst [vmem:[#allocation1] ss:$9 sm:$0xff] %v433
    %936 = vst [vmem:[%s909] ss:$9 sm:$0xff] %v434
    %937 = vst [vmem:[%s911] ss:$9 sm:$0xff] %v435
    %938 = vst [vmem:[%s913] ss:$9 sm:$0xff] %v436
    %939 = vst [vmem:[%s915] ss:$9 sm:$0xff] %v437
    %940 = vst [vmem:[%s917] ss:$9 sm:$0xff] %v438
    %941 = vst [vmem:[%s919] ss:$9 sm:$0xff] %v439
    %942 = vst [vmem:[%s921] ss:$9 sm:$0xff] %v440
    %v943 = vld [vmem:[#allocation1] sm:$0xff]
    %945 = vst [vmem:[#allocation1] ss:$9 sm:$0xff] %v441
    %946 = vst [vmem:[%s909] ss:$9 sm:$0xff] %v442
    %947 = vst [vmem:[%s911] ss:$9 sm:$0xff] %v443
    %948 = vst [vmem:[%s913] ss:$9 sm:$0xff] %v444
    %949 = vst [vmem:[%s915] ss:$9 sm:$0xff] %v445
    %950 = vst [vmem:[%s917] ss:$9 sm:$0xff] %v446
    %951 = vst [vmem:[%s919] ss:$9 sm:$0xff] %v447
    %952 = vst [vmem:[%s921] ss:$9 sm:$0xff] %v448
    %v953 = vld [vmem:[#allocation1] sm:$0xff]
    %955 = vst [vmem:[#allocation1] ss:$9 sm:$0xff] %v449
    %956 = vst [vmem:[%s909] ss:$9 sm:$0xff] %v450
    %957 = vst [vmem:[%s911] ss:$9 sm:$0xff] %v451
    %958 = vst [vmem:[%s913] ss:$9 sm:$0xff] %v452
    %959 = vst [vmem:[%s915] ss:$9 sm:$0xff] %v453
    %960 = vst [vmem:[%s917] ss:$9 sm:$0xff] %v454
    %961 = vst [vmem:[%s919] ss:$9 sm:$0xff] %v455
    %962 = vst [vmem:[%s921] ss:$9 sm:$0xff] %v456
    %v963 = vld [vmem:[#allocation1] sm:$0xff]
    %965 = vst [vmem:[#allocation1] ss:$9 sm:$0xff] %v457
    %966 = vst [vmem:[%s909] ss:$9 sm:$0xff] %v458
    %967 = vst [vmem:[%s911] ss:$9 sm:$0xff] %v459
    %968 = vst [vmem:[%s913] ss:$9 sm:$0xff] %v460
    %969 = vst [vmem:[%s915] ss:$9 sm:$0xff] %v461
    %970 = vst [vmem:[%s917] ss:$9 sm:$0xff] %v462
    %971 = vst [vmem:[%s919] ss:$9 sm:$0xff] %v463
    %972 = vst [vmem:[%s921] ss:$9 sm:$0xff] %v464
    %v973 = vld [vmem:[#allocation1] sm:$0xff]
    %975 = vst [vmem:[#allocation1] ss:$9 sm:$0xff] %v465
    %976 = vst [vmem:[%s909] ss:$9 sm:$0xff] %v466
    %977 = vst [vmem:[%s911] ss:$9 sm:$0xff] %v467
    %978 = vst [vmem:[%s913] ss:$9 sm:$0xff] %v468
    %979 = vst [vmem:[%s915] ss:$9 sm:$0xff] %v469
    %980 = vst [vmem:[%s917] ss:$9 sm:$0xff] %v470
    %981 = vst [vmem:[%s919] ss:$9 sm:$0xff] %v471
    %982 = vst [vmem:[%s921] ss:$9 sm:$0xff] %v472
    %v983 = vld [vmem:[#allocation1] sm:$0xff]
    %985 = vst [vmem:[#allocation1] ss:$9 sm:$0xff] %v473
    %986 = vst [vmem:[%s909] ss:$9 sm:$0xff] %v474
    %987 = vst [vmem:[%s911] ss:$9 sm:$0xff] %v475
    %988 = vst [vmem:[%s913] ss:$9 sm:$0xff] %v476
    %v989 = vld [vmem:[#allocation1] sm:$0xff]
    %991 = vrot.lane.b32.xlu0 %v923, 112
    %v992 = vpop.permute.xlu0 %991
    %993 = vrot.lane.b32.xlu0 %v933, 112
    %v994 = vpop.permute.xlu0 %993
    %995 = vrot.lane.b32.xlu0 %v943, 112
    %v996 = vpop.permute.xlu0 %995
    %997 = vrot.lane.b32.xlu0 %v953, 112
    %v998 = vpop.permute.xlu0 %997
    %999 = vrot.lane.b32.xlu0 %v963, 112
    %v1000 = vpop.permute.xlu0 %999
    %1001 = vrot.lane.b32.xlu0 %v973, 112
    %v1002 = vpop.permute.xlu0 %1001
    %1003 = vrot.lane.b32.xlu0 %v983, 112
    %v1004 = vpop.permute.xlu0 %1003
    %1005 = vrot.lane.b32.xlu0 %v989, 112
    %v1006 = vpop.permute.xlu0 %1005
    %v1008 = vsel %vm618, %v992, 0
    %v1011 = vsel %vm618, %v994, 0
    %v1014 = vsel %vm618, %v996, 0
    %v1017 = vsel %vm618, %v998, 0
    %v1020 = vsel %vm618, %v1000, 0
    %v1023 = vsel %vm618, %v1002, 0
    %v1026 = vsel %vm618, %v1004, 0
    %v1029 = vsel %vm618, %v1006, 0
    %1031 = vmatpush.bf16.msra.mxu0 0
    %1032 = vmatpush.bf16.msra.mxu0 0
    %1033 = vmatpush.bf16.msra.mxu0 0
    %1034 = vmatpush.bf16.msra.mxu0 0
    %1035 = vmatpush.bf16.msra.mxu0 0
    %1036 = vmatpush.bf16.msra.mxu0 0
    %1037 = vmatpush.bf16.msra.mxu0 0
    %1038 = vmatpush.bf16.msra.mxu0 %v616
    %1039 = vmatmul.bf16.gmra.mxu0 %v1008
    %v1040 = vpop.f32.mrf.mxu0
    %v1041 = vadd.f32 0.0, %v1040
    %v1042 = vpop.f32.mrf.mxu0
    %v1043 = vadd.f32 0.0, %v1042
    %1044 = vmatmul.bf16.gmra.mxu0 %v1011
    %v1045 = vpop.f32.mrf.mxu0
    %v1046 = vadd.f32 0.0, %v1045
    %v1047 = vpop.f32.mrf.mxu0
    %v1048 = vadd.f32 0.0, %v1047
    %1049 = vmatmul.bf16.gmra.mxu0 %v1014
    %v1050 = vpop.f32.mrf.mxu0
    %v1051 = vadd.f32 0.0, %v1050
    %v1052 = vpop.f32.mrf.mxu0
    %v1053 = vadd.f32 0.0, %v1052
    %1054 = vmatmul.bf16.gmra.mxu0 %v1017
    %v1055 = vpop.f32.mrf.mxu0
    %v1056 = vadd.f32 0.0, %v1055
    %v1057 = vpop.f32.mrf.mxu0
    %v1058 = vadd.f32 0.0, %v1057
    %1059 = vmatmul.bf16.gmra.mxu0 %v1020
    %v1060 = vpop.f32.mrf.mxu0
    %v1061 = vadd.f32 0.0, %v1060
    %v1062 = vpop.f32.mrf.mxu0
    %v1063 = vadd.f32 0.0, %v1062
    %1064 = vmatmul.bf16.gmra.mxu0 %v1023
    %v1065 = vpop.f32.mrf.mxu0
    %v1066 = vadd.f32 0.0, %v1065
    %v1067 = vpop.f32.mrf.mxu0
    %v1068 = vadd.f32 0.0, %v1067
    %1069 = vmatmul.bf16.gmra.mxu0 %v1026
    %v1070 = vpop.f32.mrf.mxu0
    %v1071 = vadd.f32 0.0, %v1070
    %v1072 = vpop.f32.mrf.mxu0
    %v1073 = vadd.f32 0.0, %v1072
    %1074 = vmatmul.bf16.gmra.mxu0 %v1029
    %v1075 = vpop.f32.mrf.mxu0
    %v1076 = vadd.f32 0.0, %v1075
    %v1077 = vpop.f32.mrf.mxu0
    %1078 = vdwg.mxu0
    %v1094 = vrot.slane %v1041, 1
    %v1095 = vrot.slane %v1041, 2
    %v1096 = vrot.slane %v1041, 3
    %v1097 = vrot.slane %v1041, 4
    %v1098 = vrot.slane %v1041, 5
    %v1099 = vrot.slane %v1041, 6
    %v1100 = vrot.slane %v1041, 7
    %v1101 = vrot.slane %v1043, 1
    %v1102 = vrot.slane %v1043, 2
    %v1103 = vrot.slane %v1043, 3
    %v1104 = vrot.slane %v1043, 4
    %v1105 = vrot.slane %v1043, 5
    %v1106 = vrot.slane %v1043, 6
    %v1107 = vrot.slane %v1043, 7
    %v1108 = vrot.slane %v1046, 1
    %v1109 = vrot.slane %v1046, 2
    %v1110 = vrot.slane %v1046, 3
    %v1111 = vrot.slane %v1046, 4
    %v1112 = vrot.slane %v1046, 5
    %v1113 = vrot.slane %v1046, 6
    %v1114 = vrot.slane %v1046, 7
    %v1115 = vrot.slane %v1048, 1
    %v1116 = vrot.slane %v1048, 2
    %v1117 = vrot.slane %v1048, 3
    %v1118 = vrot.slane %v1048, 4
    %v1119 = vrot.slane %v1048, 5
    %v1120 = vrot.slane %v1048, 6
    %v1121 = vrot.slane %v1048, 7
    %v1122 = vrot.slane %v1051, 1
    %v1123 = vrot.slane %v1051, 2
    %v1124 = vrot.slane %v1051, 3
    %v1125 = vrot.slane %v1051, 4
    %v1126 = vrot.slane %v1051, 5
    %v1127 = vrot.slane %v1051, 6
    %v1128 = vrot.slane %v1051, 7
    %v1129 = vrot.slane %v1053, 1
    %v1130 = vrot.slane %v1053, 2
    %v1131 = vrot.slane %v1053, 3
    %v1132 = vrot.slane %v1053, 4
    %v1133 = vrot.slane %v1053, 5
    %v1134 = vrot.slane %v1053, 6
    %v1135 = vrot.slane %v1053, 7
    %v1136 = vrot.slane %v1056, 1
    %v1137 = vrot.slane %v1056, 2
    %v1138 = vrot.slane %v1056, 3
    %v1139 = vrot.slane %v1056, 4
    %v1140 = vrot.slane %v1056, 5
    %v1141 = vrot.slane %v1056, 6
    %v1142 = vrot.slane %v1056, 7
    %v1143 = vrot.slane %v1058, 1
    %v1144 = vrot.slane %v1058, 2
    %v1145 = vrot.slane %v1058, 3
    %v1146 = vrot.slane %v1058, 4
    %v1147 = vrot.slane %v1058, 5
    %v1148 = vrot.slane %v1058, 6
    %v1149 = vrot.slane %v1058, 7
    %v1150 = vrot.slane %v1061, 1
    %v1151 = vrot.slane %v1061, 2
    %v1152 = vrot.slane %v1061, 3
    %v1153 = vrot.slane %v1061, 4
    %v1154 = vrot.slane %v1061, 5
    %v1155 = vrot.slane %v1061, 6
    %v1156 = vrot.slane %v1061, 7
    %v1157 = vrot.slane %v1063, 1
    %v1158 = vrot.slane %v1063, 2
    %v1159 = vrot.slane %v1063, 3
    %v1160 = vrot.slane %v1063, 4
    %v1161 = vrot.slane %v1063, 5
    %v1162 = vrot.slane %v1063, 6
    %v1163 = vrot.slane %v1063, 7
    %v1164 = vrot.slane %v1066, 1
    %v1165 = vrot.slane %v1066, 2
    %v1166 = vrot.slane %v1066, 3
    %v1167 = vrot.slane %v1066, 4
    %v1168 = vrot.slane %v1066, 5
    %v1169 = vrot.slane %v1066, 6
    %v1170 = vrot.slane %v1066, 7
    %v1171 = vrot.slane %v1068, 1
    %v1172 = vrot.slane %v1068, 2
    %v1173 = vrot.slane %v1068, 3
    %v1174 = vrot.slane %v1068, 4
    %v1175 = vrot.slane %v1068, 5
    %v1176 = vrot.slane %v1068, 6
    %v1177 = vrot.slane %v1068, 7
    %v1178 = vrot.slane %v1071, 1
    %v1179 = vrot.slane %v1071, 2
    %v1180 = vrot.slane %v1071, 3
    %v1181 = vrot.slane %v1071, 4
    %v1182 = vrot.slane %v1071, 5
    %v1183 = vrot.slane %v1071, 6
    %v1184 = vrot.slane %v1071, 7
    %v1185 = vrot.slane %v1073, 1
    %v1186 = vrot.slane %v1073, 2
    %v1187 = vrot.slane %v1073, 3
    %v1188 = vrot.slane %v1073, 4
    %v1189 = vrot.slane %v1073, 5
    %v1190 = vrot.slane %v1073, 6
    %v1191 = vrot.slane %v1073, 7
    %v1192 = vrot.slane %v1076, 1
    %v1193 = vrot.slane %v1076, 2
    %v1194 = vrot.slane %v1076, 3
    %v1195 = vrot.slane %v1076, 4
    %v1196 = vrot.slane %v1076, 5
    %v1197 = vrot.slane %v1076, 6
    %v1198 = vrot.slane %v1076, 7
    %v1304 = vmax.f32 %v645, %v1041
    %v1305 = vmax.f32 %v698, %v1094
    %v1306 = vmax.f32 %v699, %v1095
    %v1307 = vmax.f32 %v700, %v1096
    %v1308 = vmax.f32 %v701, %v1097
    %v1309 = vmax.f32 %v702, %v1098
    %v1310 = vmax.f32 %v703, %v1099
    %v1311 = vmax.f32 %v704, %v1100
    %v1312 = vmax.f32 %v647, %v1043
    %v1313 = vmax.f32 %v705, %v1101
    %v1314 = vmax.f32 %v706, %v1102
    %v1315 = vmax.f32 %v707, %v1103
    %v1316 = vmax.f32 %v708, %v1104
    %v1317 = vmax.f32 %v709, %v1105
    %v1318 = vmax.f32 %v710, %v1106
    %v1319 = vmax.f32 %v711, %v1107
    %v1320 = vmax.f32 %v650, %v1046
    %v1321 = vmax.f32 %v712, %v1108
    %v1322 = vmax.f32 %v713, %v1109
    %v1323 = vmax.f32 %v714, %v1110
    %v1324 = vmax.f32 %v715, %v1111
    %v1325 = vmax.f32 %v716, %v1112
    %v1326 = vmax.f32 %v717, %v1113
    %v1327 = vmax.f32 %v718, %v1114
    %v1328 = vmax.f32 %v652, %v1048
    %v1329 = vmax.f32 %v719, %v1115
    %v1330 = vmax.f32 %v720, %v1116
    %v1331 = vmax.f32 %v721, %v1117
    %v1332 = vmax.f32 %v722, %v1118
    %v1333 = vmax.f32 %v723, %v1119
    %v1334 = vmax.f32 %v724, %v1120
    %v1335 = vmax.f32 %v725, %v1121
    %v1336 = vmax.f32 %v655, %v1051
    %v1337 = vmax.f32 %v726, %v1122
    %v1338 = vmax.f32 %v727, %v1123
    %v1339 = vmax.f32 %v728, %v1124
    %v1340 = vmax.f32 %v729, %v1125
    %v1341 = vmax.f32 %v730, %v1126
    %v1342 = vmax.f32 %v731, %v1127
    %v1343 = vmax.f32 %v732, %v1128
    %v1344 = vmax.f32 %v657, %v1053
    %v1345 = vmax.f32 %v733, %v1129
    %v1346 = vmax.f32 %v734, %v1130
    %v1347 = vmax.f32 %v735, %v1131
    %v1348 = vmax.f32 %v736, %v1132
    %v1349 = vmax.f32 %v737, %v1133
    %v1350 = vmax.f32 %v738, %v1134
    %v1351 = vmax.f32 %v739, %v1135
    %v1352 = vmax.f32 %v660, %v1056
    %v1353 = vmax.f32 %v740, %v1136
    %v1354 = vmax.f32 %v741, %v1137
    %v1355 = vmax.f32 %v742, %v1138
    %v1356 = vmax.f32 %v743, %v1139
    %v1357 = vmax.f32 %v744, %v1140
    %v1358 = vmax.f32 %v745, %v1141
    %v1359 = vmax.f32 %v746, %v1142
    %v1360 = vmax.f32 %v662, %v1058
    %v1361 = vmax.f32 %v747, %v1143
    %v1362 = vmax.f32 %v748, %v1144
    %v1363 = vmax.f32 %v749, %v1145
    %v1364 = vmax.f32 %v750, %v1146
    %v1365 = vmax.f32 %v751, %v1147
    %v1366 = vmax.f32 %v752, %v1148
    %v1367 = vmax.f32 %v753, %v1149
    %v1368 = vmax.f32 %v665, %v1061
    %v1369 = vmax.f32 %v754, %v1150
    %v1370 = vmax.f32 %v755, %v1151
    %v1371 = vmax.f32 %v756, %v1152
    %v1372 = vmax.f32 %v757, %v1153
    %v1373 = vmax.f32 %v758, %v1154
    %v1374 = vmax.f32 %v759, %v1155
    %v1375 = vmax.f32 %v760, %v1156
    %v1376 = vmax.f32 %v667, %v1063
    %v1377 = vmax.f32 %v761, %v1157
    %v1378 = vmax.f32 %v762, %v1158
    %v1379 = vmax.f32 %v763, %v1159
    %v1380 = vmax.f32 %v764, %v1160
    %v1381 = vmax.f32 %v765, %v1161
    %v1382 = vmax.f32 %v766, %v1162
    %v1383 = vmax.f32 %v767, %v1163
    %v1384 = vmax.f32 %v670, %v1066
    %v1385 = vmax.f32 %v768, %v1164
    %v1386 = vmax.f32 %v769, %v1165
    %v1387 = vmax.f32 %v770, %v1166
    %v1388 = vmax.f32 %v771, %v1167
    %v1389 = vmax.f32 %v772, %v1168
    %v1390 = vmax.f32 %v773, %v1169
    %v1391 = vmax.f32 %v774, %v1170
    %v1392 = vmax.f32 %v672, %v1068
    %v1393 = vmax.f32 %v775, %v1171
    %v1394 = vmax.f32 %v776, %v1172
    %v1395 = vmax.f32 %v777, %v1173
    %v1396 = vmax.f32 %v778, %v1174
    %v1397 = vmax.f32 %v779, %v1175
    %v1398 = vmax.f32 %v780, %v1176
    %v1399 = vmax.f32 %v781, %v1177
    %v1400 = vmax.f32 %v675, %v1071
    %v1401 = vmax.f32 %v782, %v1178
    %v1402 = vmax.f32 %v783, %v1179
    %v1403 = vmax.f32 %v784, %v1180
    %v1404 = vmax.f32 %v785, %v1181
    %v1405 = vmax.f32 %v786, %v1182
    %v1406 = vmax.f32 %v787, %v1183
    %v1407 = vmax.f32 %v788, %v1184
    %v1408 = vmax.f32 %v677, %v1073
    %v1409 = vmax.f32 %v789, %v1185
    %v1410 = vmax.f32 %v790, %v1186
    %v1411 = vmax.f32 %v791, %v1187
    %v1412 = vmax.f32 %v792, %v1188
    %v1413 = vmax.f32 %v793, %v1189
    %v1414 = vmax.f32 %v794, %v1190
    %v1415 = vmax.f32 %v795, %v1191
    %v1416 = vmax.f32 %v680, %v1076
    %v1417 = vmax.f32 %v796, %v1192
    %v1418 = vmax.f32 %v797, %v1193
    %v1419 = vmax.f32 %v798, %v1194
    %v1420 = vmax.f32 %v799, %v1195
    %v1421 = vmax.f32 %v800, %v1196
    %v1422 = vmax.f32 %v801, %v1197
    %v1423 = vmax.f32 %v802, %v1198
    %v1425 = vperm.slane %v52, 0
    %v1427 = vrot.slane %v1425, 1
    %v1428 = vrot.slane %v1425, 2
    %v1429 = vrot.slane %v1425, 3
    %v1430 = vrot.slane %v1425, 4
    %v1431 = vrot.slane %v1425, 5
    %v1432 = vrot.slane %v1425, 6
    %v1433 = vrot.slane %v1425, 7
    %v1441 = vadd.f32 %v1304, %v1425
    %v1442 = vadd.f32 %v1305, %v1427
    %v1443 = vadd.f32 %v1306, %v1428
    %v1444 = vadd.f32 %v1307, %v1429
    %v1445 = vadd.f32 %v1308, %v1430
    %v1446 = vadd.f32 %v1309, %v1431
    %v1447 = vadd.f32 %v1310, %v1432
    %v1448 = vadd.f32 %v1311, %v1433
    %v1449 = vadd.f32 %v1312, %v1425
    %v1450 = vadd.f32 %v1313, %v1427
    %v1451 = vadd.f32 %v1314, %v1428
    %v1452 = vadd.f32 %v1315, %v1429
    %v1453 = vadd.f32 %v1316, %v1430
    %v1454 = vadd.f32 %v1317, %v1431
    %v1455 = vadd.f32 %v1318, %v1432
    %v1456 = vadd.f32 %v1319, %v1425
    %v1457 = vadd.f32 %v1320, %v1427
    %v1458 = vadd.f32 %v1321, %v1428
    %v1459 = vadd.f32 %v1322, %v1429
    %v1460 = vadd.f32 %v1323, %v1430
    %v1461 = vadd.f32 %v1324, %v1431
    %v1462 = vadd.f32 %v1325, %v1432
    %v1463 = vadd.f32 %v1326, %v1433
    %v1464 = vadd.f32 %v1327, %v1425
    %v1465 = vadd.f32 %v1328, %v1427
    %v1466 = vadd.f32 %v1329, %v1428
    %v1467 = vadd.f32 %v1330, %v1429
    %v1468 = vadd.f32 %v1331, %v1430
    %v1469 = vadd.f32 %v1332, %v1431
    %v1470 = vadd.f32 %v1333, %v1432
    %v1471 = vadd.f32 %v1334, %v1425
    %v1472 = vadd.f32 %v1335, %v1427
    %v1473 = vadd.f32 %v1336, %v1428
    %v1474 = vadd.f32 %v1337, %v1429
    %v1475 = vadd.f32 %v1338, %v1430
    %v1476 = vadd.f32 %v1339, %v1431
    %v1477 = vadd.f32 %v1340, %v1432
    %v1478 = vadd.f32 %v1341, %v1433
    %v1479 = vadd.f32 %v1342, %v1425
    %v1480 = vadd.f32 %v1343, %v1427
    %v1481 = vadd.f32 %v1344, %v1428
    %v1482 = vadd.f32 %v1345, %v1429
    %v1483 = vadd.f32 %v1346, %v1430
    %v1484 = vadd.f32 %v1347, %v1431
    %v1485 = vadd.f32 %v1348, %v1432
    %v1486 = vadd.f32 %v1349, %v1425
    %v1487 = vadd.f32 %v1350, %v1427
    %v1488 = vadd.f32 %v1351, %v1428
    %v1489 = vadd.f32 %v1352, %v1429
    %v1490 = vadd.f32 %v1353, %v1430
    %v1491 = vadd.f32 %v1354, %v1431
    %v1492 = vadd.f32 %v1355, %v1432
    %v1493 = vadd.f32 %v1356, %v1433
    %v1494 = vadd.f32 %v1357, %v1425
    %v1495 = vadd.f32 %v1358, %v1427
    %v1496 = vadd.f32 %v1359, %v1428
    %v1497 = vadd.f32 %v1360, %v1429
    %v1498 = vadd.f32 %v1361, %v1430
    %v1499 = vadd.f32 %v1362, %v1431
    %v1500 = vadd.f32 %v1363, %v1432
    %v1501 = vadd.f32 %v1364, %v1425
    %v1502 = vadd.f32 %v1365, %v1427
    %v1503 = vadd.f32 %v1366, %v1428
    %v1504 = vadd.f32 %v1367, %v1429
    %v1505 = vadd.f32 %v1368, %v1430
    %v1506 = vadd.f32 %v1369, %v1431
    %v1507 = vadd.f32 %v1370, %v1432
    %v1508 = vadd.f32 %v1371, %v1433
    %v1509 = vadd.f32 %v1372, %v1425
    %v1510 = vadd.f32 %v1373, %v1427
    %v1511 = vadd.f32 %v1374, %v1428
    %v1512 = vadd.f32 %v1375, %v1429
    %v1513 = vadd.f32 %v1376, %v1430
    %v1514 = vadd.f32 %v1377, %v1431
    %v1515 = vadd.f32 %v1378, %v1432
    %v1516 = vadd.f32 %v1379, %v1425
    %v1517 = vadd.f32 %v1380, %v1427
    %v1518 = vadd.f32 %v1381, %v1428
    %v1519 = vadd.f32 %v1382, %v1429
    %v1520 = vadd.f32 %v1383, %v1430
    %v1521 = vadd.f32 %v1384, %v1431
    %v1522 = vadd.f32 %v1385, %v1432
    %v1523 = vadd.f32 %v1386, %v1433
    %v1524 = vadd.f32 %v1387, %v1425
    %v1525 = vadd.f32 %v1388, %v1427
    %v1526 = vadd.f32 %v1389, %v1428
    %v1527 = vadd.f32 %v1390, %v1429
    %v1528 = vadd.f32 %v1391, %v1430
    %v1529 = vadd.f32 %v1392, %v1431
    %v1530 = vadd.f32 %v1393, %v1432
    %v1531 = vadd.f32 %v1394, %v1425
    %v1532 = vadd.f32 %v1395, %v1427
    %v1533 = vadd.f32 %v1396, %v1428
    %v1534 = vadd.f32 %v1397, %v1429
    %v1535 = vadd.f32 %v1398, %v1430
    %v1536 = vadd.f32 %v1399, %v1431
    %v1537 = vadd.f32 %v1400, %v1432
    %v1538 = vadd.f32 %v1401, %v1433
    %v1539 = vadd.f32 %v1402, %v1425
    %v1540 = vadd.f32 %v1403, %v1427
    %v1541 = vadd.f32 %v1404, %v1428
    %v1542 = vadd.f32 %v1405, %v1429
    %v1543 = vadd.f32 %v1406, %v1430
    %v1544 = vadd.f32 %v1407, %v1431
    %v1545 = vadd.f32 %v1408, %v1432
    %v1546 = vadd.f32 %v1409, %v1425
    %v1547 = vadd.f32 %v1410, %v1427
    %v1548 = vadd.f32 %v1411, %v1428
    %v1549 = vadd.f32 %v1412, %v1429
    %v1550 = vadd.f32 %v1413, %v1430
    %v1551 = vadd.f32 %v1414, %v1431
    %v1552 = vadd.f32 %v1415, %v1432
    %v1553 = vadd.f32 %v1416, %v1433
    %v1554 = vadd.f32 %v1417, %v1425
    %v1555 = vadd.f32 %v1418, %v1427
    %v1556 = vadd.f32 %v1419, %v1428
    %v1557 = vadd.f32 %v1420, %v1429
    %v1558 = vadd.f32 %v1421, %v1430
    %v1559 = vadd.f32 %v1422, %v1431
    %v1560 = vadd.f32 %v1423, %v1432
    %v1561 = vmax.f32 %v1441, 0.0
    %v1562 = vmax.f32 %v1442, 0.0
    %v1563 = vmax.f32 %v1443, 0.0
    %v1564 = vmax.f32 %v1444, 0.0
    %v1565 = vmax.f32 %v1445, 0.0
    %v1566 = vmax.f32 %v1446, 0.0
    %v1567 = vmax.f32 %v1447, 0.0
    %v1568 = vmax.f32 %v1448, 0.0
    %v1569 = vmax.f32 %v1449, 0.0
    %v1570 = vmax.f32 %v1450, 0.0
    %v1571 = vmax.f32 %v1451, 0.0
    %v1572 = vmax.f32 %v1452, 0.0
    %v1573 = vmax.f32 %v1453, 0.0
    %v1574 = vmax.f32 %v1454, 0.0
    %v1575 = vmax.f32 %v1455, 0.0
    %v1576 = vmax.f32 %v1456, 0.0
    %v1577 = vmax.f32 %v1457, 0.0
    %v1578 = vmax.f32 %v1458, 0.0
    %v1579 = vmax.f32 %v1459, 0.0
    %v1580 = vmax.f32 %v1460, 0.0
    %v1581 = vmax.f32 %v1461, 0.0
    %v1582 = vmax.f32 %v1462, 0.0
    %v1583 = vmax.f32 %v1463, 0.0
    %v1584 = vmax.f32 %v1464, 0.0
    %v1585 = vmax.f32 %v1465, 0.0
    %v1586 = vmax.f32 %v1466, 0.0
    %v1587 = vmax.f32 %v1467, 0.0
    %v1588 = vmax.f32 %v1468, 0.0
    %v1589 = vmax.f32 %v1469, 0.0
    %v1590 = vmax.f32 %v1470, 0.0
    %v1591 = vmax.f32 %v1471, 0.0
    %v1592 = vmax.f32 %v1472, 0.0
    %v1593 = vmax.f32 %v1473, 0.0
    %v1594 = vmax.f32 %v1474, 0.0
    %v1595 = vmax.f32 %v1475, 0.0
    %v1596 = vmax.f32 %v1476, 0.0
    %v1597 = vmax.f32 %v1477, 0.0
    %v1598 = vmax.f32 %v1478, 0.0
    %v1599 = vmax.f32 %v1479, 0.0
    %v1600 = vmax.f32 %v1480, 0.0
    %v1601 = vmax.f32 %v1481, 0.0
    %v1602 = vmax.f32 %v1482, 0.0
    %v1603 = vmax.f32 %v1483, 0.0
    %v1604 = vmax.f32 %v1484, 0.0
    %v1605 = vmax.f32 %v1485, 0.0
    %v1606 = vmax.f32 %v1486, 0.0
    %v1607 = vmax.f32 %v1487, 0.0
    %v1608 = vmax.f32 %v1488, 0.0
    %v1609 = vmax.f32 %v1489, 0.0
    %v1610 = vmax.f32 %v1490, 0.0
    %v1611 = vmax.f32 %v1491, 0.0
    %v1612 = vmax.f32 %v1492, 0.0
    %v1613 = vmax.f32 %v1493, 0.0
    %v1614 = vmax.f32 %v1494, 0.0
    %v1615 = vmax.f32 %v1495, 0.0
    %v1616 = vmax.f32 %v1496, 0.0
    %v1617 = vmax.f32 %v1497, 0.0
    %v1618 = vmax.f32 %v1498, 0.0
    %v1619 = vmax.f32 %v1499, 0.0
    %v1620 = vmax.f32 %v1500, 0.0
    %v1621 = vmax.f32 %v1501, 0.0
    %v1622 = vmax.f32 %v1502, 0.0
    %v1623 = vmax.f32 %v1503, 0.0
    %v1624 = vmax.f32 %v1504, 0.0
    %v1625 = vmax.f32 %v1505, 0.0
    %v1626 = vmax.f32 %v1506, 0.0
    %v1627 = vmax.f32 %v1507, 0.0
    %v1628 = vmax.f32 %v1508, 0.0
    %v1629 = vmax.f32 %v1509, 0.0
    %v1630 = vmax.f32 %v1510, 0.0
    %v1631 = vmax.f32 %v1511, 0.0
    %v1632 = vmax.f32 %v1512, 0.0
    %v1633 = vmax.f32 %v1513, 0.0
    %v1634 = vmax.f32 %v1514, 0.0
    %v1635 = vmax.f32 %v1515, 0.0
    %v1636 = vmax.f32 %v1516, 0.0
    %v1637 = vmax.f32 %v1517, 0.0
    %v1638 = vmax.f32 %v1518, 0.0
    %v1639 = vmax.f32 %v1519, 0.0
    %v1640 = vmax.f32 %v1520, 0.0
    %v1641 = vmax.f32 %v1521, 0.0
    %v1642 = vmax.f32 %v1522, 0.0
    %v1643 = vmax.f32 %v1523, 0.0
    %v1644 = vmax.f32 %v1524, 0.0
    %v1645 = vmax.f32 %v1525, 0.0
    %v1646 = vmax.f32 %v1526, 0.0
    %v1647 = vmax.f32 %v1527, 0.0
    %v1648 = vmax.f32 %v1528, 0.0
    %v1649 = vmax.f32 %v1529, 0.0
    %v1650 = vmax.f32 %v1530, 0.0
    %v1651 = vmax.f32 %v1531, 0.0
    %v1652 = vmax.f32 %v1532, 0.0
    %v1653 = vmax.f32 %v1533, 0.0
    %v1654 = vmax.f32 %v1534, 0.0
    %v1655 = vmax.f32 %v1535, 0.0
    %v1656 = vmax.f32 %v1536, 0.0
    %v1657 = vmax.f32 %v1537, 0.0
    %v1658 = vmax.f32 %v1538, 0.0
    %v1659 = vmax.f32 %v1539, 0.0
    %v1660 = vmax.f32 %v1540, 0.0
    %v1661 = vmax.f32 %v1541, 0.0
    %v1662 = vmax.f32 %v1542, 0.0
    %v1663 = vmax.f32 %v1543, 0.0
    %v1664 = vmax.f32 %v1544, 0.0
    %v1665 = vmax.f32 %v1545, 0.0
    %v1666 = vmax.f32 %v1546, 0.0
    %v1667 = vmax.f32 %v1547, 0.0
    %v1668 = vmax.f32 %v1548, 0.0
    %v1669 = vmax.f32 %v1549, 0.0
    %v1670 = vmax.f32 %v1550, 0.0
    %v1671 = vmax.f32 %v1551, 0.0
    %v1672 = vmax.f32 %v1552, 0.0
    %v1673 = vmax.f32 %v1553, 0.0
    %v1674 = vmax.f32 %v1554, 0.0
    %v1675 = vmax.f32 %v1555, 0.0
    %v1676 = vmax.f32 %v1556, 0.0
    %v1677 = vmax.f32 %v1557, 0.0
    %v1678 = vmax.f32 %v1558, 0.0
    %v1679 = vmax.f32 %v1559, 0.0
    %v1680 = vmax.f32 %v1560, 0.0
    %1681 = vst [vmem:[#allocation1] ss:$9 sm:$0xff] %v417
    %s1682 = scalar_lea.vmem [#allocation1], 1
    %1683 = vst [vmem:[%s1682] ss:$9 sm:$0xff] %v418
    %s1684 = scalar_lea.vmem [#allocation1], 2
    %1685 = vst [vmem:[%s1684] ss:$9 sm:$0xff] %v419
    %s1686 = scalar_lea.vmem [#allocation1], 3
    %1687 = vst [vmem:[%s1686] ss:$9 sm:$0xff] %v420
    %s1688 = scalar_lea.vmem [#allocation1], 4
    %1689 = vst [vmem:[%s1688] ss:$9 sm:$0xff] %v421
    %s1690 = scalar_lea.vmem [#allocation1], 5
    %1691 = vst [vmem:[%s1690] ss:$9 sm:$0xff] %v422
    %s1692 = scalar_lea.vmem [#allocation1], 6
    %1693 = vst [vmem:[%s1692] ss:$9 sm:$0xff] %v423
    %s1694 = scalar_lea.vmem [#allocation1], 7
    %1695 = vst [vmem:[%s1694] ss:$9 sm:$0xff] %v424
    %v1696 = vld [vmem:[#allocation1] sm:$0xff]
    %1698 = vst [vmem:[#allocation1] ss:$9 sm:$0xff] %v425
    %1699 = vst [vmem:[%s1682] ss:$9 sm:$0xff] %v426
    %1700 = vst [vmem:[%s1684] ss:$9 sm:$0xff] %v427
    %1701 = vst [vmem:[%s1686] ss:$9 sm:$0xff] %v428
    %1702 = vst [vmem:[%s1688] ss:$9 sm:$0xff] %v429
    %1703 = vst [vmem:[%s1690] ss:$9 sm:$0xff] %v430
    %1704 = vst [vmem:[%s1692] ss:$9 sm:$0xff] %v431
    %1705 = vst [vmem:[%s1694] ss:$9 sm:$0xff] %v432
    %v1706 = vld [vmem:[#allocation1] sm:$0xff]
    %1708 = vst [vmem:[#allocation1] ss:$9 sm:$0xff] %v433
    %1709 = vst [vmem:[%s1682] ss:$9 sm:$0xff] %v434
    %1710 = vst [vmem:[%s1684] ss:$9 sm:$0xff] %v435
    %1711 = vst [vmem:[%s1686] ss:$9 sm:$0xff] %v436
    %1712 = vst [vmem:[%s1688] ss:$9 sm:$0xff] %v437
    %1713 = vst [vmem:[%s1690] ss:$9 sm:$0xff] %v438
    %1714 = vst [vmem:[%s1692] ss:$9 sm:$0xff] %v439
    %1715 = vst [vmem:[%s1694] ss:$9 sm:$0xff] %v440
    %v1716 = vld [vmem:[#allocation1] sm:$0xff]
    %1718 = vst [vmem:[#allocation1] ss:$9 sm:$0xff] %v441
    %1719 = vst [vmem:[%s1682] ss:$9 sm:$0xff] %v442
    %1720 = vst [vmem:[%s1684] ss:$9 sm:$0xff] %v443
    %1721 = vst [vmem:[%s1686] ss:$9 sm:$0xff] %v444
    %1722 = vst [vmem:[%s1688] ss:$9 sm:$0xff] %v445
    %1723 = vst [vmem:[%s1690] ss:$9 sm:$0xff] %v446
    %1724 = vst [vmem:[%s1692] ss:$9 sm:$0xff] %v447
    %1725 = vst [vmem:[%s1694] ss:$9 sm:$0xff] %v448
    %v1726 = vld [vmem:[#allocation1] sm:$0xff]
    %1728 = vst [vmem:[#allocation1] ss:$9 sm:$0xff] %v449
    %1729 = vst [vmem:[%s1682] ss:$9 sm:$0xff] %v450
    %1730 = vst [vmem:[%s1684] ss:$9 sm:$0xff] %v451
    %1731 = vst [vmem:[%s1686] ss:$9 sm:$0xff] %v452
    %1732 = vst [vmem:[%s1688] ss:$9 sm:$0xff] %v453
    %1733 = vst [vmem:[%s1690] ss:$9 sm:$0xff] %v454
    %1734 = vst [vmem:[%s1692] ss:$9 sm:$0xff] %v455
    %1735 = vst [vmem:[%s1694] ss:$9 sm:$0xff] %v456
    %v1736 = vld [vmem:[#allocation1] sm:$0xff]
    %1738 = vst [vmem:[#allocation1] ss:$9 sm:$0xff] %v457
    %1739 = vst [vmem:[%s1682] ss:$9 sm:$0xff] %v458
    %1740 = vst [vmem:[%s1684] ss:$9 sm:$0xff] %v459
    %1741 = vst [vmem:[%s1686] ss:$9 sm:$0xff] %v460
    %1742 = vst [vmem:[%s1688] ss:$9 sm:$0xff] %v461
    %1743 = vst [vmem:[%s1690] ss:$9 sm:$0xff] %v462
    %1744 = vst [vmem:[%s1692] ss:$9 sm:$0xff] %v463
    %1745 = vst [vmem:[%s1694] ss:$9 sm:$0xff] %v464
    %v1746 = vld [vmem:[#allocation1] sm:$0xff]
    %1748 = vst [vmem:[#allocation1] ss:$9 sm:$0xff] %v465
    %1749 = vst [vmem:[%s1682] ss:$9 sm:$0xff] %v466
    %1750 = vst [vmem:[%s1684] ss:$9 sm:$0xff] %v467
    %1751 = vst [vmem:[%s1686] ss:$9 sm:$0xff] %v468
    %1752 = vst [vmem:[%s1688] ss:$9 sm:$0xff] %v469
    %1753 = vst [vmem:[%s1690] ss:$9 sm:$0xff] %v470
    %1754 = vst [vmem:[%s1692] ss:$9 sm:$0xff] %v471
    %1755 = vst [vmem:[%s1694] ss:$9 sm:$0xff] %v472
    %v1756 = vld [vmem:[#allocation1] sm:$0xff]
    %1758 = vst [vmem:[#allocation1] ss:$9 sm:$0xff] %v473
    %1759 = vst [vmem:[%s1682] ss:$9 sm:$0xff] %v474
    %1760 = vst [vmem:[%s1684] ss:$9 sm:$0xff] %v475
    %1761 = vst [vmem:[%s1686] ss:$9 sm:$0xff] %v476
    %v1762 = vld [vmem:[#allocation1] sm:$0xff]
    %1764 = vrot.lane.b32.xlu0 %v1696, 96
    %v1765 = vpop.permute.xlu0 %1764
    %1766 = vrot.lane.b32.xlu0 %v1706, 96
    %v1767 = vpop.permute.xlu0 %1766
    %1768 = vrot.lane.b32.xlu0 %v1716, 96
    %v1769 = vpop.permute.xlu0 %1768
    %1770 = vrot.lane.b32.xlu0 %v1726, 96
    %v1771 = vpop.permute.xlu0 %1770
    %1772 = vrot.lane.b32.xlu0 %v1736, 96
    %v1773 = vpop.permute.xlu0 %1772
    %1774 = vrot.lane.b32.xlu0 %v1746, 96
    %v1775 = vpop.permute.xlu0 %1774
    %1776 = vrot.lane.b32.xlu0 %v1756, 96
    %v1777 = vpop.permute.xlu0 %1776
    %1778 = vrot.lane.b32.xlu0 %v1762, 96
    %v1779 = vpop.permute.xlu0 %1778
    %v1781 = vsel %vm618, %v1765, 0
    %v1784 = vsel %vm618, %v1767, 0
    %v1787 = vsel %vm618, %v1769, 0
    %v1790 = vsel %vm618, %v1771, 0
    %v1793 = vsel %vm618, %v1773, 0
    %v1796 = vsel %vm618, %v1775, 0
    %v1799 = vsel %vm618, %v1777, 0
    %v1802 = vsel %vm618, %v1779, 0
    %1804 = vmatpush.bf16.msra.mxu0 0
    %1805 = vmatpush.bf16.msra.mxu0 0
    %1806 = vmatpush.bf16.msra.mxu0 0
    %1807 = vmatpush.bf16.msra.mxu0 0
    %1808 = vmatpush.bf16.msra.mxu0 0
    %1809 = vmatpush.bf16.msra.mxu0 0
    %1810 = vmatpush.bf16.msra.mxu0 0
    %1811 = vmatpush.bf16.msra.mxu0 %v616
    %1812 = vmatmul.bf16.gmra.mxu0 %v1781
    %v1813 = vpop.f32.mrf.mxu0
    %v1814 = vadd.f32 0.0, %v1813
    %v1815 = vpop.f32.mrf.mxu0
    %v1816 = vadd.f32 0.0, %v1815
    %1817 = vmatmul.bf16.gmra.mxu0 %v1784
    %v1818 = vpop.f32.mrf.mxu0
    %v1819 = vadd.f32 0.0, %v1818
    %v1820 = vpop.f32.mrf.mxu0
    %v1821 = vadd.f32 0.0, %v1820
    %1822 = vmatmul.bf16.gmra.mxu0 %v1787
    %v1823 = vpop.f32.mrf.mxu0
    %v1824 = vadd.f32 0.0, %v1823
    %v1825 = vpop.f32.mrf.mxu0
    %v1826 = vadd.f32 0.0, %v1825
    %1827 = vmatmul.bf16.gmra.mxu0 %v1790
    %v1828 = vpop.f32.mrf.mxu0
    %v1829 = vadd.f32 0.0, %v1828
    %v1830 = vpop.f32.mrf.mxu0
    %v1831 = vadd.f32 0.0, %v1830
    %1832 = vmatmul.bf16.gmra.mxu0 %v1793
    %v1833 = vpop.f32.mrf.mxu0
    %v1834 = vadd.f32 0.0, %v1833
    %v1835 = vpop.f32.mrf.mxu0
    %v1836 = vadd.f32 0.0, %v1835
    %1837 = vmatmul.bf16.gmra.mxu0 %v1796
    %v1838 = vpop.f32.mrf.mxu0
    %v1839 = vadd.f32 0.0, %v1838
    %v1840 = vpop.f32.mrf.mxu0
    %v1841 = vadd.f32 0.0, %v1840
    %1842 = vmatmul.bf16.gmra.mxu0 %v1799
    %v1843 = vpop.f32.mrf.mxu0
    %v1844 = vadd.f32 0.0, %v1843
    %v1845 = vpop.f32.mrf.mxu0
    %v1846 = vadd.f32 0.0, %v1845
    %1847 = vmatmul.bf16.gmra.mxu0 %v1802
    %v1848 = vpop.f32.mrf.mxu0
    %v1849 = vadd.f32 0.0, %v1848
    %v1850 = vpop.f32.mrf.mxu0
    %1851 = vdwg.mxu0
    %v1867 = vrot.slane %v1814, 1
    %v1868 = vrot.slane %v1814, 2
    %v1869 = vrot.slane %v1814, 3
    %v1870 = vrot.slane %v1814, 4
    %v1871 = vrot.slane %v1814, 5
    %v1872 = vrot.slane %v1814, 6
    %v1873 = vrot.slane %v1814, 7
    %v1874 = vrot.slane %v1816, 1
    %v1875 = vrot.slane %v1816, 2
    %v1876 = vrot.slane %v1816, 3
    %v1877 = vrot.slane %v1816, 4
    %v1878 = vrot.slane %v1816, 5
    %v1879 = vrot.slane %v1816, 6
    %v1880 = vrot.slane %v1816, 7
    %v1881 = vrot.slane %v1819, 1
    %v1882 = vrot.slane %v1819, 2
    %v1883 = vrot.slane %v1819, 3
    %v1884 = vrot.slane %v1819, 4
    %v1885 = vrot.slane %v1819, 5
    %v1886 = vrot.slane %v1819, 6
    %v1887 = vrot.slane %v1819, 7
    %v1888 = vrot.slane %v1821, 1
    %v1889 = vrot.slane %v1821, 2
    %v1890 = vrot.slane %v1821, 3
    %v1891 = vrot.slane %v1821, 4
    %v1892 = vrot.slane %v1821, 5
    %v1893 = vrot.slane %v1821, 6
    %v1894 = vrot.slane %v1821, 7
    %v1895 = vrot.slane %v1824, 1
    %v1896 = vrot.slane %v1824, 2
    %v1897 = vrot.slane %v1824, 3
    %v1898 = vrot.slane %v1824, 4
    %v1899 = vrot.slane %v1824, 5
    %v1900 = vrot.slane %v1824, 6
    %v1901 = vrot.slane %v1824, 7
    %v1902 = vrot.slane %v1826, 1
    %v1903 = vrot.slane %v1826, 2
    %v1904 = vrot.slane %v1826, 3
    %v1905 = vrot.slane %v1826, 4
    %v1906 = vrot.slane %v1826, 5
    %v1907 = vrot.slane %v1826, 6
    %v1908 = vrot.slane %v1826, 7
    %v1909 = vrot.slane %v1829, 1
    %v1910 = vrot.slane %v1829, 2
    %v1911 = vrot.slane %v1829, 3
    %v1912 = vrot.slane %v1829, 4
    %v1913 = vrot.slane %v1829, 5
    %v1914 = vrot.slane %v1829, 6
    %v1915 = vrot.slane %v1829, 7
    %v1916 = vrot.slane %v1831, 1
    %v1917 = vrot.slane %v1831, 2
    %v1918 = vrot.slane %v1831, 3
    %v1919 = vrot.slane %v1831, 4
    %v1920 = vrot.slane %v1831, 5
    %v1921 = vrot.slane %v1831, 6
    %v1922 = vrot.slane %v1831, 7
    %v1923 = vrot.slane %v1834, 1
    %v1924 = vrot.slane %v1834, 2
    %v1925 = vrot.slane %v1834, 3
    %v1926 = vrot.slane %v1834, 4
    %v1927 = vrot.slane %v1834, 5
    %v1928 = vrot.slane %v1834, 6
    %v1929 = vrot.slane %v1834, 7
    %v1930 = vrot.slane %v1836, 1
    %v1931 = vrot.slane %v1836, 2
    %v1932 = vrot.slane %v1836, 3
    %v1933 = vrot.slane %v1836, 4
    %v1934 = vrot.slane %v1836, 5
    %v1935 = vrot.slane %v1836, 6
    %v1936 = vrot.slane %v1836, 7
    %v1937 = vrot.slane %v1839, 1
    %v1938 = vrot.slane %v1839, 2
    %v1939 = vrot.slane %v1839, 3
    %v1940 = vrot.slane %v1839, 4
    %v1941 = vrot.slane %v1839, 5
    %v1942 = vrot.slane %v1839, 6
    %v1943 = vrot.slane %v1839, 7
    %v1944 = vrot.slane %v1841, 1
    %v1945 = vrot.slane %v1841, 2
    %v1946 = vrot.slane %v1841, 3
    %v1947 = vrot.slane %v1841, 4
    %v1948 = vrot.slane %v1841, 5
    %v1949 = vrot.slane %v1841, 6
    %v1950 = vrot.slane %v1841, 7
    %v1951 = vrot.slane %v1844, 1
    %v1952 = vrot.slane %v1844, 2
    %v1953 = vrot.slane %v1844, 3
    %v1954 = vrot.slane %v1844, 4
    %v1955 = vrot.slane %v1844, 5
    %v1956 = vrot.slane %v1844, 6
    %v1957 = vrot.slane %v1844, 7
    %v1958 = vrot.slane %v1846, 1
    %v1959 = vrot.slane %v1846, 2
    %v1960 = vrot.slane %v1846, 3
    %v1961 = vrot.slane %v1846, 4
    %v1962 = vrot.slane %v1846, 5
    %v1963 = vrot.slane %v1846, 6
    %v1964 = vrot.slane %v1846, 7
    %v1965 = vrot.slane %v1849, 1
    %v1966 = vrot.slane %v1849, 2
    %v1967 = vrot.slane %v1849, 3
    %v1968 = vrot.slane %v1849, 4
    %v1969 = vrot.slane %v1849, 5
    %v1970 = vrot.slane %v1849, 6
    %v1971 = vrot.slane %v1849, 7
    %2077 = vst [vmem:[#allocation1] ss:$9 sm:$0xff] %v417
    %s2078 = scalar_lea.vmem [#allocation1], 1
    %2079 = vst [vmem:[%s2078] ss:$9 sm:$0xff] %v418
    %s2080 = scalar_lea.vmem [#allocation1], 2
    %2081 = vst [vmem:[%s2080] ss:$9 sm:$0xff] %v419
    %s2082 = scalar_lea.vmem [#allocation1], 3
    %2083 = vst [vmem:[%s2082] ss:$9 sm:$0xff] %v420
    %s2084 = scalar_lea.vmem [#allocation1], 4
    %2085 = vst [vmem:[%s2084] ss:$9 sm:$0xff] %v421
    %s2086 = scalar_lea.vmem [#allocation1], 5
    %2087 = vst [vmem:[%s2086] ss:$9 sm:$0xff] %v422
    %s2088 = scalar_lea.vmem [#allocation1], 6
    %2089 = vst [vmem:[%s2088] ss:$9 sm:$0xff] %v423
    %s2090 = scalar_lea.vmem [#allocation1], 7
    %2091 = vst [vmem:[%s2090] ss:$9 sm:$0xff] %v424
    %v2092 = vld [vmem:[#allocation1] sm:$0xff]
    %2094 = vst [vmem:[#allocation1] ss:$9 sm:$0xff] %v425
    %2095 = vst [vmem:[%s2078] ss:$9 sm:$0xff] %v426
    %2096 = vst [vmem:[%s2080] ss:$9 sm:$0xff] %v427
    %2097 = vst [vmem:[%s2082] ss:$9 sm:$0xff] %v428
    %2098 = vst [vmem:[%s2084] ss:$9 sm:$0xff] %v429
    %2099 = vst [vmem:[%s2086] ss:$9 sm:$0xff] %v430
    %2100 = vst [vmem:[%s2088] ss:$9 sm:$0xff] %v431
    %2101 = vst [vmem:[%s2090] ss:$9 sm:$0xff] %v432
    %v2102 = vld [vmem:[#allocation1] sm:$0xff]
    %2104 = vst [vmem:[#allocation1] ss:$9 sm:$0xff] %v433
    %2105 = vst [vmem:[%s2078] ss:$9 sm:$0xff] %v434
    %2106 = vst [vmem:[%s2080] ss:$9 sm:$0xff] %v435
    %2107 = vst [vmem:[%s2082] ss:$9 sm:$0xff] %v436
    %2108 = vst [vmem:[%s2084] ss:$9 sm:$0xff] %v437
    %2109 = vst [vmem:[%s2086] ss:$9 sm:$0xff] %v438
    %2110 = vst [vmem:[%s2088] ss:$9 sm:$0xff] %v439
    %2111 = vst [vmem:[%s2090] ss:$9 sm:$0xff] %v440
    %v2112 = vld [vmem:[#allocation1] sm:$0xff]
    %2114 = vst [vmem:[#allocation1] ss:$9 sm:$0xff] %v441
    %2115 = vst [vmem:[%s2078] ss:$9 sm:$0xff] %v442
    %2116 = vst [vmem:[%s2080] ss:$9 sm:$0xff] %v443
    %2117 = vst [vmem:[%s2082] ss:$9 sm:$0xff] %v444
    %2118 = vst [vmem:[%s2084] ss:$9 sm:$0xff] %v445
    %2119 = vst [vmem:[%s2086] ss:$9 sm:$0xff] %v446
    %2120 = vst [vmem:[%s2088] ss:$9 sm:$0xff] %v447
    %2121 = vst [vmem:[%s2090] ss:$9 sm:$0xff] %v448
    %v2122 = vld [vmem:[#allocation1] sm:$0xff]
    %2124 = vst [vmem:[#allocation1] ss:$9 sm:$0xff] %v449
    %2125 = vst [vmem:[%s2078] ss:$9 sm:$0xff] %v450
    %2126 = vst [vmem:[%s2080] ss:$9 sm:$0xff] %v451
    %2127 = vst [vmem:[%s2082] ss:$9 sm:$0xff] %v452
    %2128 = vst [vmem:[%s2084] ss:$9 sm:$0xff] %v453
    %2129 = vst [vmem:[%s2086] ss:$9 sm:$0xff] %v454
    %2130 = vst [vmem:[%s2088] ss:$9 sm:$0xff] %v455
    %2131 = vst [vmem:[%s2090] ss:$9 sm:$0xff] %v456
    %v2132 = vld [vmem:[#allocation1] sm:$0xff]
    %2134 = vst [vmem:[#allocation1] ss:$9 sm:$0xff] %v457
    %2135 = vst [vmem:[%s2078] ss:$9 sm:$0xff] %v458
    %2136 = vst [vmem:[%s2080] ss:$9 sm:$0xff] %v459
    %2137 = vst [vmem:[%s2082] ss:$9 sm:$0xff] %v460
    %2138 = vst [vmem:[%s2084] ss:$9 sm:$0xff] %v461
    %2139 = vst [vmem:[%s2086] ss:$9 sm:$0xff] %v462
    %2140 = vst [vmem:[%s2088] ss:$9 sm:$0xff] %v463
    %2141 = vst [vmem:[%s2090] ss:$9 sm:$0xff] %v464
    %v2142 = vld [vmem:[#allocation1] sm:$0xff]
    %2144 = vst [vmem:[#allocation1] ss:$9 sm:$0xff] %v465
    %2145 = vst [vmem:[%s2078] ss:$9 sm:$0xff] %v466
    %2146 = vst [vmem:[%s2080] ss:$9 sm:$0xff] %v467
    %2147 = vst [vmem:[%s2082] ss:$9 sm:$0xff] %v468
    %2148 = vst [vmem:[%s2084] ss:$9 sm:$0xff] %v469
    %2149 = vst [vmem:[%s2086] ss:$9 sm:$0xff] %v470
    %2150 = vst [vmem:[%s2088] ss:$9 sm:$0xff] %v471
    %2151 = vst [vmem:[%s2090] ss:$9 sm:$0xff] %v472
    %v2152 = vld [vmem:[#allocation1] sm:$0xff]
    %2154 = vst [vmem:[#allocation1] ss:$9 sm:$0xff] %v473
    %2155 = vst [vmem:[%s2078] ss:$9 sm:$0xff] %v474
    %2156 = vst [vmem:[%s2080] ss:$9 sm:$0xff] %v475
    %2157 = vst [vmem:[%s2082] ss:$9 sm:$0xff] %v476
    %v2158 = vld [vmem:[#allocation1] sm:$0xff]
    %2160 = vrot.lane.b32.xlu0 %v2092, 80
    %v2161 = vpop.permute.xlu0 %2160
    %2162 = vrot.lane.b32.xlu0 %v2102, 80
    %v2163 = vpop.permute.xlu0 %2162
    %2164 = vrot.lane.b32.xlu0 %v2112, 80
    %v2165 = vpop.permute.xlu0 %2164
    %2166 = vrot.lane.b32.xlu0 %v2122, 80
    %v2167 = vpop.permute.xlu0 %2166
    %2168 = vrot.lane.b32.xlu0 %v2132, 80
    %v2169 = vpop.permute.xlu0 %2168
    %2170 = vrot.lane.b32.xlu0 %v2142, 80
    %v2171 = vpop.permute.xlu0 %2170
    %2172 = vrot.lane.b32.xlu0 %v2152, 80
    %v2173 = vpop.permute.xlu0 %2172
    %2174 = vrot.lane.b32.xlu0 %v2158, 80
    %v2175 = vpop.permute.xlu0 %2174
    %v2177 = vsel %vm618, %v2161, 0
    %v2180 = vsel %vm618, %v2163, 0
    %v2183 = vsel %vm618, %v2165, 0
    %v2186 = vsel %vm618, %v2167, 0
    %v2189 = vsel %vm618, %v2169, 0
    %v2192 = vsel %vm618, %v2171, 0
    %v2195 = vsel %vm618, %v2173, 0
    %v2198 = vsel %vm618, %v2175, 0
    %2200 = vmatpush.bf16.msra.mxu0 0
    %2201 = vmatpush.bf16.msra.mxu0 0
    %2202 = vmatpush.bf16.msra.mxu0 0
    %2203 = vmatpush.bf16.msra.mxu0 0
    %2204 = vmatpush.bf16.msra.mxu0 0
    %2205 = vmatpush.bf16.msra.mxu0 0
    %2206 = vmatpush.bf16.msra.mxu0 0
    %2207 = vmatpush.bf16.msra.mxu0 %v616
    %2208 = vmatmul.bf16.gmra.mxu0 %v2177
    %v2209 = vpop.f32.mrf.mxu0
    %v2210 = vadd.f32 0.0, %v2209
    %v2211 = vpop.f32.mrf.mxu0
    %v2212 = vadd.f32 0.0, %v2211
    %2213 = vmatmul.bf16.gmra.mxu0 %v2180
    %v2214 = vpop.f32.mrf.mxu0
    %v2215 = vadd.f32 0.0, %v2214
    %v2216 = vpop.f32.mrf.mxu0
    %v2217 = vadd.f32 0.0, %v2216
    %2218 = vmatmul.bf16.gmra.mxu0 %v2183
    %v2219 = vpop.f32.mrf.mxu0
    %v2220 = vadd.f32 0.0, %v2219
    %v2221 = vpop.f32.mrf.mxu0
    %v2222 = vadd.f32 0.0, %v2221
    %2223 = vmatmul.bf16.gmra.mxu0 %v2186
    %v2224 = vpop.f32.mrf.mxu0
    %v2225 = vadd.f32 0.0, %v2224
    %v2226 = vpop.f32.mrf.mxu0
    %v2227 = vadd.f32 0.0, %v2226
    %2228 = vmatmul.bf16.gmra.mxu0 %v2189
    %v2229 = vpop.f32.mrf.mxu0
    %v2230 = vadd.f32 0.0, %v2229
    %v2231 = vpop.f32.mrf.mxu0
    %v2232 = vadd.f32 0.0, %v2231
    %2233 = vmatmul.bf16.gmra.mxu0 %v2192
    %v2234 = vpop.f32.mrf.mxu0
    %v2235 = vadd.f32 0.0, %v2234
    %v2236 = vpop.f32.mrf.mxu0
    %v2237 = vadd.f32 0.0, %v2236
    %2238 = vmatmul.bf16.gmra.mxu0 %v2195
    %v2239 = vpop.f32.mrf.mxu0
    %v2240 = vadd.f32 0.0, %v2239
    %v2241 = vpop.f32.mrf.mxu0
    %v2242 = vadd.f32 0.0, %v2241
    %2243 = vmatmul.bf16.gmra.mxu0 %v2198
    %v2244 = vpop.f32.mrf.mxu0
    %v2245 = vadd.f32 0.0, %v2244
    %v2246 = vpop.f32.mrf.mxu0
    %2247 = vdwg.mxu0
    %v2263 = vrot.slane %v2210, 1
    %v2264 = vrot.slane %v2210, 2
    %v2265 = vrot.slane %v2210, 3
    %v2266 = vrot.slane %v2210, 4
    %v2267 = vrot.slane %v2210, 5
    %v2268 = vrot.slane %v2210, 6
    %v2269 = vrot.slane %v2210, 7
    %v2270 = vrot.slane %v2212, 1
    %v2271 = vrot.slane %v2212, 2
    %v2272 = vrot.slane %v2212, 3
    %v2273 = vrot.slane %v2212, 4
    %v2274 = vrot.slane %v2212, 5
    %v2275 = vrot.slane %v2212, 6
    %v2276 = vrot.slane %v2212, 7
    %v2277 = vrot.slane %v2215, 1
    %v2278 = vrot.slane %v2215, 2
    %v2279 = vrot.slane %v2215, 3
    %v2280 = vrot.slane %v2215, 4
    %v2281 = vrot.slane %v2215, 5
    %v2282 = vrot.slane %v2215, 6
    %v2283 = vrot.slane %v2215, 7
    %v2284 = vrot.slane %v2217, 1
    %v2285 = vrot.slane %v2217, 2
    %v2286 = vrot.slane %v2217, 3
    %v2287 = vrot.slane %v2217, 4
    %v2288 = vrot.slane %v2217, 5
    %v2289 = vrot.slane %v2217, 6
    %v2290 = vrot.slane %v2217, 7
    %v2291 = vrot.slane %v2220, 1
    %v2292 = vrot.slane %v2220, 2
    %v2293 = vrot.slane %v2220, 3
    %v2294 = vrot.slane %v2220, 4
    %v2295 = vrot.slane %v2220, 5
    %v2296 = vrot.slane %v2220, 6
    %v2297 = vrot.slane %v2220, 7
    %v2298 = vrot.slane %v2222, 1
    %v2299 = vrot.slane %v2222, 2
    %v2300 = vrot.slane %v2222, 3
    %v2301 = vrot.slane %v2222, 4
    %v2302 = vrot.slane %v2222, 5
    %v2303 = vrot.slane %v2222, 6
    %v2304 = vrot.slane %v2222, 7
    %v2305 = vrot.slane %v2225, 1
    %v2306 = vrot.slane %v2225, 2
    %v2307 = vrot.slane %v2225, 3
    %v2308 = vrot.slane %v2225, 4
    %v2309 = vrot.slane %v2225, 5
    %v2310 = vrot.slane %v2225, 6
    %v2311 = vrot.slane %v2225, 7
    %v2312 = vrot.slane %v2227, 1
    %v2313 = vrot.slane %v2227, 2
    %v2314 = vrot.slane %v2227, 3
    %v2315 = vrot.slane %v2227, 4
    %v2316 = vrot.slane %v2227, 5
    %v2317 = vrot.slane %v2227, 6
    %v2318 = vrot.slane %v2227, 7
    %v2319 = vrot.slane %v2230, 1
    %v2320 = vrot.slane %v2230, 2
    %v2321 = vrot.slane %v2230, 3
    %v2322 = vrot.slane %v2230, 4
    %v2323 = vrot.slane %v2230, 5
    %v2324 = vrot.slane %v2230, 6
    %v2325 = vrot.slane %v2230, 7
    %v2326 = vrot.slane %v2232, 1
    %v2327 = vrot.slane %v2232, 2
    %v2328 = vrot.slane %v2232, 3
    %v2329 = vrot.slane %v2232, 4
    %v2330 = vrot.slane %v2232, 5
    %v2331 = vrot.slane %v2232, 6
    %v2332 = vrot.slane %v2232, 7
    %v2333 = vrot.slane %v2235, 1
    %v2334 = vrot.slane %v2235, 2
    %v2335 = vrot.slane %v2235, 3
    %v2336 = vrot.slane %v2235, 4
    %v2337 = vrot.slane %v2235, 5
    %v2338 = vrot.slane %v2235, 6
    %v2339 = vrot.slane %v2235, 7
    %v2340 = vrot.slane %v2237, 1
    %v2341 = vrot.slane %v2237, 2
    %v2342 = vrot.slane %v2237, 3
    %v2343 = vrot.slane %v2237, 4
    %v2344 = vrot.slane %v2237, 5
    %v2345 = vrot.slane %v2237, 6
    %v2346 = vrot.slane %v2237, 7
    %v2347 = vrot.slane %v2240, 1
    %v2348 = vrot.slane %v2240, 2
    %v2349 = vrot.slane %v2240, 3
    %v2350 = vrot.slane %v2240, 4
    %v2351 = vrot.slane %v2240, 5
    %v2352 = vrot.slane %v2240, 6
    %v2353 = vrot.slane %v2240, 7
    %v2354 = vrot.slane %v2242, 1
    %v2355 = vrot.slane %v2242, 2
    %v2356 = vrot.slane %v2242, 3
    %v2357 = vrot.slane %v2242, 4
    %v2358 = vrot.slane %v2242, 5
    %v2359 = vrot.slane %v2242, 6
    %v2360 = vrot.slane %v2242, 7
    %v2361 = vrot.slane %v2245, 1
    %v2362 = vrot.slane %v2245, 2
    %v2363 = vrot.slane %v2245, 3
    %v2364 = vrot.slane %v2245, 4
    %v2365 = vrot.slane %v2245, 5
    %v2366 = vrot.slane %v2245, 6
    %v2367 = vrot.slane %v2245, 7
    %v2473 = vmax.f32 %v1814, %v2210
    %v2474 = vmax.f32 %v1867, %v2263
    %v2475 = vmax.f32 %v1868, %v2264
    %v2476 = vmax.f32 %v1869, %v2265
    %v2477 = vmax.f32 %v1870, %v2266
    %v2478 = vmax.f32 %v1871, %v2267
    %v2479 = vmax.f32 %v1872, %v2268
    %v2480 = vmax.f32 %v1873, %v2269
    %v2481 = vmax.f32 %v1816, %v2212
    %v2482 = vmax.f32 %v1874, %v2270
    %v2483 = vmax.f32 %v1875, %v2271
    %v2484 = vmax.f32 %v1876, %v2272
    %v2485 = vmax.f32 %v1877, %v2273
    %v2486 = vmax.f32 %v1878, %v2274
    %v2487 = vmax.f32 %v1879, %v2275
    %v2488 = vmax.f32 %v1880, %v2276
    %v2489 = vmax.f32 %v1819, %v2215
    %v2490 = vmax.f32 %v1881, %v2277
    %v2491 = vmax.f32 %v1882, %v2278
    %v2492 = vmax.f32 %v1883, %v2279
    %v2493 = vmax.f32 %v1884, %v2280
    %v2494 = vmax.f32 %v1885, %v2281
    %v2495 = vmax.f32 %v1886, %v2282
    %v2496 = vmax.f32 %v1887, %v2283
    %v2497 = vmax.f32 %v1821, %v2217
    %v2498 = vmax.f32 %v1888, %v2284
    %v2499 = vmax.f32 %v1889, %v2285
    %v2500 = vmax.f32 %v1890, %v2286
    %v2501 = vmax.f32 %v1891, %v2287
    %v2502 = vmax.f32 %v1892, %v2288
    %v2503 = vmax.f32 %v1893, %v2289
    %v2504 = vmax.f32 %v1894, %v2290
    %v2505 = vmax.f32 %v1824, %v2220
    %v2506 = vmax.f32 %v1895, %v2291
    %v2507 = vmax.f32 %v1896, %v2292
    %v2508 = vmax.f32 %v1897, %v2293
    %v2509 = vmax.f32 %v1898, %v2294
    %v2510 = vmax.f32 %v1899, %v2295
    %v2511 = vmax.f32 %v1900, %v2296
    %v2512 = vmax.f32 %v1901, %v2297
    %v2513 = vmax.f32 %v1826, %v2222
    %v2514 = vmax.f32 %v1902, %v2298
    %v2515 = vmax.f32 %v1903, %v2299
    %v2516 = vmax.f32 %v1904, %v2300
    %v2517 = vmax.f32 %v1905, %v2301
    %v2518 = vmax.f32 %v1906, %v2302
    %v2519 = vmax.f32 %v1907, %v2303
    %v2520 = vmax.f32 %v1908, %v2304
    %v2521 = vmax.f32 %v1829, %v2225
    %v2522 = vmax.f32 %v1909, %v2305
    %v2523 = vmax.f32 %v1910, %v2306
    %v2524 = vmax.f32 %v1911, %v2307
    %v2525 = vmax.f32 %v1912, %v2308
    %v2526 = vmax.f32 %v1913, %v2309
    %v2527 = vmax.f32 %v1914, %v2310
    %v2528 = vmax.f32 %v1915, %v2311
    %v2529 = vmax.f32 %v1831, %v2227
    %v2530 = vmax.f32 %v1916, %v2312
    %v2531 = vmax.f32 %v1917, %v2313
    %v2532 = vmax.f32 %v1918, %v2314
    %v2533 = vmax.f32 %v1919, %v2315
    %v2534 = vmax.f32 %v1920, %v2316
    %v2535 = vmax.f32 %v1921, %v2317
    %v2536 = vmax.f32 %v1922, %v2318
    %v2537 = vmax.f32 %v1834, %v2230
    %v2538 = vmax.f32 %v1923, %v2319
    %v2539 = vmax.f32 %v1924, %v2320
    %v2540 = vmax.f32 %v1925, %v2321
    %v2541 = vmax.f32 %v1926, %v2322
    %v2542 = vmax.f32 %v1927, %v2323
    %v2543 = vmax.f32 %v1928, %v2324
    %v2544 = vmax.f32 %v1929, %v2325
    %v2545 = vmax.f32 %v1836, %v2232
    %v2546 = vmax.f32 %v1930, %v2326
    %v2547 = vmax.f32 %v1931, %v2327
    %v2548 = vmax.f32 %v1932, %v2328
    %v2549 = vmax.f32 %v1933, %v2329
    %v2550 = vmax.f32 %v1934, %v2330
    %v2551 = vmax.f32 %v1935, %v2331
    %v2552 = vmax.f32 %v1936, %v2332
    %v2553 = vmax.f32 %v1839, %v2235
    %v2554 = vmax.f32 %v1937, %v2333
    %v2555 = vmax.f32 %v1938, %v2334
    %v2556 = vmax.f32 %v1939, %v2335
    %v2557 = vmax.f32 %v1940, %v2336
    %v2558 = vmax.f32 %v1941, %v2337
    %v2559 = vmax.f32 %v1942, %v2338
    %v2560 = vmax.f32 %v1943, %v2339
    %v2561 = vmax.f32 %v1841, %v2237
    %v2562 = vmax.f32 %v1944, %v2340
    %v2563 = vmax.f32 %v1945, %v2341
    %v2564 = vmax.f32 %v1946, %v2342
    %v2565 = vmax.f32 %v1947, %v2343
    %v2566 = vmax.f32 %v1948, %v2344
    %v2567 = vmax.f32 %v1949, %v2345
    %v2568 = vmax.f32 %v1950, %v2346
    %v2569 = vmax.f32 %v1844, %v2240
    %v2570 = vmax.f32 %v1951, %v2347
    %v2571 = vmax.f32 %v1952, %v2348
    %v2572 = vmax.f32 %v1953, %v2349
    %v2573 = vmax.f32 %v1954, %v2350
    %v2574 = vmax.f32 %v1955, %v2351
    %v2575 = vmax.f32 %v1956, %v2352
    %v2576 = vmax.f32 %v1957, %v2353
    %v2577 = vmax.f32 %v1846, %v2242
    %v2578 = vmax.f32 %v1958, %v2354
    %v2579 = vmax.f32 %v1959, %v2355
    %v2580 = vmax.f32 %v1960, %v2356
    %v2581 = vmax.f32 %v1961, %v2357
    %v2582 = vmax.f32 %v1962, %v2358
    %v2583 = vmax.f32 %v1963, %v2359
    %v2584 = vmax.f32 %v1964, %v2360
    %v2585 = vmax.f32 %v1849, %v2245
    %v2586 = vmax.f32 %v1965, %v2361
    %v2587 = vmax.f32 %v1966, %v2362
    %v2588 = vmax.f32 %v1967, %v2363
    %v2589 = vmax.f32 %v1968, %v2364
    %v2590 = vmax.f32 %v1969, %v2365
    %v2591 = vmax.f32 %v1970, %v2366
    %v2592 = vmax.f32 %v1971, %v2367
    %v2593 = vadd.f32 %v2473, %v1425
    %v2594 = vadd.f32 %v2474, %v1427
    %v2595 = vadd.f32 %v2475, %v1428
    %v2596 = vadd.f32 %v2476, %v1429
    %v2597 = vadd.f32 %v2477, %v1430
    %v2598 = vadd.f32 %v2478, %v1431
    %v2599 = vadd.f32 %v2479, %v1432
    %v2600 = vadd.f32 %v2480, %v1433
    %v2601 = vadd.f32 %v2481, %v1425
    %v2602 = vadd.f32 %v2482, %v1427
    %v2603 = vadd.f32 %v2483, %v1428
    %v2604 = vadd.f32 %v2484, %v1429
    %v2605 = vadd.f32 %v2485, %v1430
    %v2606 = vadd.f32 %v2486, %v1431
    %v2607 = vadd.f32 %v2487, %v1432
    %v2608 = vadd.f32 %v2488, %v1425
    %v2609 = vadd.f32 %v2489, %v1427
    %v2610 = vadd.f32 %v2490, %v1428
    %v2611 = vadd.f32 %v2491, %v1429
    %v2612 = vadd.f32 %v2492, %v1430
    %v2613 = vadd.f32 %v2493, %v1431
    %v2614 = vadd.f32 %v2494, %v1432
    %v2615 = vadd.f32 %v2495, %v1433
    %v2616 = vadd.f32 %v2496, %v1425
    %v2617 = vadd.f32 %v2497, %v1427
    %v2618 = vadd.f32 %v2498, %v1428
    %v2619 = vadd.f32 %v2499, %v1429
    %v2620 = vadd.f32 %v2500, %v1430
    %v2621 = vadd.f32 %v2501, %v1431
    %v2622 = vadd.f32 %v2502, %v1432
    %v2623 = vadd.f32 %v2503, %v1425
    %v2624 = vadd.f32 %v2504, %v1427
    %v2625 = vadd.f32 %v2505, %v1428
    %v2626 = vadd.f32 %v2506, %v1429
    %v2627 = vadd.f32 %v2507, %v1430
    %v2628 = vadd.f32 %v2508, %v1431
    %v2629 = vadd.f32 %v2509, %v1432
    %v2630 = vadd.f32 %v2510, %v1433
    %v2631 = vadd.f32 %v2511, %v1425
    %v2632 = vadd.f32 %v2512, %v1427
    %v2633 = vadd.f32 %v2513, %v1428
    %v2634 = vadd.f32 %v2514, %v1429
    %v2635 = vadd.f32 %v2515, %v1430
    %v2636 = vadd.f32 %v2516, %v1431
    %v2637 = vadd.f32 %v2517, %v1432
    %v2638 = vadd.f32 %v2518, %v1425
    %v2639 = vadd.f32 %v2519, %v1427
    %v2640 = vadd.f32 %v2520, %v1428
    %v2641 = vadd.f32 %v2521, %v1429
    %v2642 = vadd.f32 %v2522, %v1430
    %v2643 = vadd.f32 %v2523, %v1431
    %v2644 = vadd.f32 %v2524, %v1432
    %v2645 = vadd.f32 %v2525, %v1433
    %v2646 = vadd.f32 %v2526, %v1425
    %v2647 = vadd.f32 %v2527, %v1427
    %v2648 = vadd.f32 %v2528, %v1428
    %v2649 = vadd.f32 %v2529, %v1429
    %v2650 = vadd.f32 %v2530, %v1430
    %v2651 = vadd.f32 %v2531, %v1431
    %v2652 = vadd.f32 %v2532, %v1432
    %v2653 = vadd.f32 %v2533, %v1425
    %v2654 = vadd.f32 %v2534, %v1427
    %v2655 = vadd.f32 %v2535, %v1428
    %v2656 = vadd.f32 %v2536, %v1429
    %v2657 = vadd.f32 %v2537, %v1430
    %v2658 = vadd.f32 %v2538, %v1431
    %v2659 = vadd.f32 %v2539, %v1432
    %v2660 = vadd.f32 %v2540, %v1433
    %v2661 = vadd.f32 %v2541, %v1425
    %v2662 = vadd.f32 %v2542, %v1427
    %v2663 = vadd.f32 %v2543, %v1428
    %v2664 = vadd.f32 %v2544, %v1429
    %v2665 = vadd.f32 %v2545, %v1430
    %v2666 = vadd.f32 %v2546, %v1431
    %v2667 = vadd.f32 %v2547, %v1432
    %v2668 = vadd.f32 %v2548, %v1425
    %v2669 = vadd.f32 %v2549, %v1427
    %v2670 = vadd.f32 %v2550, %v1428
    %v2671 = vadd.f32 %v2551, %v1429
    %v2672 = vadd.f32 %v2552, %v1430
    %v2673 = vadd.f32 %v2553, %v1431
    %v2674 = vadd.f32 %v2554, %v1432
    %v2675 = vadd.f32 %v2555, %v1433
    %v2676 = vadd.f32 %v2556, %v1425
    %v2677 = vadd.f32 %v2557, %v1427
    %v2678 = vadd.f32 %v2558, %v1428
    %v2679 = vadd.f32 %v2559, %v1429
    %v2680 = vadd.f32 %v2560, %v1430
    %v2681 = vadd.f32 %v2561, %v1431
    %v2682 = vadd.f32 %v2562, %v1432
    %v2683 = vadd.f32 %v2563, %v1425
    %v2684 = vadd.f32 %v2564, %v1427
    %v2685 = vadd.f32 %v2565, %v1428
    %v2686 = vadd.f32 %v2566, %v1429
    %v2687 = vadd.f32 %v2567, %v1430
    %v2688 = vadd.f32 %v2568, %v1431
    %v2689 = vadd.f32 %v2569, %v1432
    %v2690 = vadd.f32 %v2570, %v1433
    %v2691 = vadd.f32 %v2571, %v1425
    %v2692 = vadd.f32 %v2572, %v1427
    %v2693 = vadd.f32 %v2573, %v1428
    %v2694 = vadd.f32 %v2574, %v1429
    %v2695 = vadd.f32 %v2575, %v1430
    %v2696 = vadd.f32 %v2576, %v1431
    %v2697 = vadd.f32 %v2577, %v1432
    %v2698 = vadd.f32 %v2578, %v1425
    %v2699 = vadd.f32 %v2579, %v1427
    %v2700 = vadd.f32 %v2580, %v1428
    %v2701 = vadd.f32 %v2581, %v1429
    %v2702 = vadd.f32 %v2582, %v1430
    %v2703 = vadd.f32 %v2583, %v1431
    %v2704 = vadd.f32 %v2584, %v1432
    %v2705 = vadd.f32 %v2585, %v1433
    %v2706 = vadd.f32 %v2586, %v1425
    %v2707 = vadd.f32 %v2587, %v1427
    %v2708 = vadd.f32 %v2588, %v1428
    %v2709 = vadd.f32 %v2589, %v1429
    %v2710 = vadd.f32 %v2590, %v1430
    %v2711 = vadd.f32 %v2591, %v1431
    %v2712 = vadd.f32 %v2592, %v1432
    %v2713 = vmax.f32 %v2593, 0.0
    %v2714 = vmax.f32 %v2594, 0.0
    %v2715 = vmax.f32 %v2595, 0.0
    %v2716 = vmax.f32 %v2596, 0.0
    %v2717 = vmax.f32 %v2597, 0.0
    %v2718 = vmax.f32 %v2598, 0.0
    %v2719 = vmax.f32 %v2599, 0.0
    %v2720 = vmax.f32 %v2600, 0.0
    %v2721 = vmax.f32 %v2601, 0.0
    %v2722 = vmax.f32 %v2602, 0.0
    %v2723 = vmax.f32 %v2603, 0.0
    %v2724 = vmax.f32 %v2604, 0.0
    %v2725 = vmax.f32 %v2605, 0.0
    %v2726 = vmax.f32 %v2606, 0.0
    %v2727 = vmax.f32 %v2607, 0.0
    %v2728 = vmax.f32 %v2608, 0.0
    %v2729 = vmax.f32 %v2609, 0.0
    %v2730 = vmax.f32 %v2610, 0.0
    %v2731 = vmax.f32 %v2611, 0.0
    %v2732 = vmax.f32 %v2612, 0.0
    %v2733 = vmax.f32 %v2613, 0.0
    %v2734 = vmax.f32 %v2614, 0.0
    %v2735 = vmax.f32 %v2615, 0.0
    %v2736 = vmax.f32 %v2616, 0.0
    %v2737 = vmax.f32 %v2617, 0.0
    %v2738 = vmax.f32 %v2618, 0.0
    %v2739 = vmax.f32 %v2619, 0.0
    %v2740 = vmax.f32 %v2620, 0.0
    %v2741 = vmax.f32 %v2621, 0.0
    %v2742 = vmax.f32 %v2622, 0.0
    %v2743 = vmax.f32 %v2623, 0.0
    %v2744 = vmax.f32 %v2624, 0.0
    %v2745 = vmax.f32 %v2625, 0.0
    %v2746 = vmax.f32 %v2626, 0.0
    %v2747 = vmax.f32 %v2627, 0.0
    %v2748 = vmax.f32 %v2628, 0.0
    %v2749 = vmax.f32 %v2629, 0.0
    %v2750 = vmax.f32 %v2630, 0.0
    %v2751 = vmax.f32 %v2631, 0.0
    %v2752 = vmax.f32 %v2632, 0.0
    %v2753 = vmax.f32 %v2633, 0.0
    %v2754 = vmax.f32 %v2634, 0.0
    %v2755 = vmax.f32 %v2635, 0.0
    %v2756 = vmax.f32 %v2636, 0.0
    %v2757 = vmax.f32 %v2637, 0.0
    %v2758 = vmax.f32 %v2638, 0.0
    %v2759 = vmax.f32 %v2639, 0.0
    %v2760 = vmax.f32 %v2640, 0.0
    %v2761 = vmax.f32 %v2641, 0.0
    %v2762 = vmax.f32 %v2642, 0.0
    %v2763 = vmax.f32 %v2643, 0.0
    %v2764 = vmax.f32 %v2644, 0.0
    %v2765 = vmax.f32 %v2645, 0.0
    %v2766 = vmax.f32 %v2646, 0.0
    %v2767 = vmax.f32 %v2647, 0.0
    %v2768 = vmax.f32 %v2648, 0.0
    %v2769 = vmax.f32 %v2649, 0.0
    %v2770 = vmax.f32 %v2650, 0.0
    %v2771 = vmax.f32 %v2651, 0.0
    %v2772 = vmax.f32 %v2652, 0.0
    %v2773 = vmax.f32 %v2653, 0.0
    %v2774 = vmax.f32 %v2654, 0.0
    %v2775 = vmax.f32 %v2655, 0.0
    %v2776 = vmax.f32 %v2656, 0.0
    %v2777 = vmax.f32 %v2657, 0.0
    %v2778 = vmax.f32 %v2658, 0.0
    %v2779 = vmax.f32 %v2659, 0.0
    %v2780 = vmax.f32 %v2660, 0.0
    %v2781 = vmax.f32 %v2661, 0.0
    %v2782 = vmax.f32 %v2662, 0.0
    %v2783 = vmax.f32 %v2663, 0.0
    %v2784 = vmax.f32 %v2664, 0.0
    %v2785 = vmax.f32 %v2665, 0.0
    %v2786 = vmax.f32 %v2666, 0.0
    %v2787 = vmax.f32 %v2667, 0.0
    %v2788 = vmax.f32 %v2668, 0.0
    %v2789 = vmax.f32 %v2669, 0.0
    %v2790 = vmax.f32 %v2670, 0.0
    %v2791 = vmax.f32 %v2671, 0.0
    %v2792 = vmax.f32 %v2672, 0.0
    %v2793 = vmax.f32 %v2673, 0.0
    %v2794 = vmax.f32 %v2674, 0.0
    %v2795 = vmax.f32 %v2675, 0.0
    %v2796 = vmax.f32 %v2676, 0.0
    %v2797 = vmax.f32 %v2677, 0.0
    %v2798 = vmax.f32 %v2678, 0.0
    %v2799 = vmax.f32 %v2679, 0.0
    %v2800 = vmax.f32 %v2680, 0.0
    %v2801 = vmax.f32 %v2681, 0.0
    %v2802 = vmax.f32 %v2682, 0.0
    %v2803 = vmax.f32 %v2683, 0.0
    %v2804 = vmax.f32 %v2684, 0.0
    %v2805 = vmax.f32 %v2685, 0.0
    %v2806 = vmax.f32 %v2686, 0.0
    %v2807 = vmax.f32 %v2687, 0.0
    %v2808 = vmax.f32 %v2688, 0.0
    %v2809 = vmax.f32 %v2689, 0.0
    %v2810 = vmax.f32 %v2690, 0.0
    %v2811 = vmax.f32 %v2691, 0.0
    %v2812 = vmax.f32 %v2692, 0.0
    %v2813 = vmax.f32 %v2693, 0.0
    %v2814 = vmax.f32 %v2694, 0.0
    %v2815 = vmax.f32 %v2695, 0.0
    %v2816 = vmax.f32 %v2696, 0.0
    %v2817 = vmax.f32 %v2697, 0.0
    %v2818 = vmax.f32 %v2698, 0.0
    %v2819 = vmax.f32 %v2699, 0.0
    %v2820 = vmax.f32 %v2700, 0.0
    %v2821 = vmax.f32 %v2701, 0.0
    %v2822 = vmax.f32 %v2702, 0.0
    %v2823 = vmax.f32 %v2703, 0.0
    %v2824 = vmax.f32 %v2704, 0.0
    %v2825 = vmax.f32 %v2705, 0.0
    %v2826 = vmax.f32 %v2706, 0.0
    %v2827 = vmax.f32 %v2707, 0.0
    %v2828 = vmax.f32 %v2708, 0.0
    %v2829 = vmax.f32 %v2709, 0.0
    %v2830 = vmax.f32 %v2710, 0.0
    %v2831 = vmax.f32 %v2711, 0.0
    %v2832 = vmax.f32 %v2712, 0.0
    %2953 = vst [vmem:[#allocation1] ss:$9 sm:$0xff] %v1561
    %s2954 = scalar_lea.vmem [#allocation1], 1
    %2955 = vst [vmem:[%s2954] ss:$9 sm:$0xff] %v1562
    %s2956 = scalar_lea.vmem [#allocation1], 2
    %2957 = vst [vmem:[%s2956] ss:$9 sm:$0xff] %v1563
    %s2958 = scalar_lea.vmem [#allocation1], 3
    %2959 = vst [vmem:[%s2958] ss:$9 sm:$0xff] %v1564
    %s2960 = scalar_lea.vmem [#allocation1], 4
    %2961 = vst [vmem:[%s2960] ss:$9 sm:$0xff] %v1565
    %s2962 = scalar_lea.vmem [#allocation1], 5
    %2963 = vst [vmem:[%s2962] ss:$9 sm:$0xff] %v1566
    %s2964 = scalar_lea.vmem [#allocation1], 6
    %2965 = vst [vmem:[%s2964] ss:$9 sm:$0xff] %v1567
    %s2966 = scalar_lea.vmem [#allocation1], 7
    %2967 = vst [vmem:[%s2966] ss:$9 sm:$0xff] %v1568
    %v2968 = vld [vmem:[#allocation1] sm:$0xff]
    %2969 = vst [vmem:[#allocation1] ss:$9 sm:$0xff] %v1569
    %2970 = vst [vmem:[%s2954] ss:$9 sm:$0xff] %v1570
    %2971 = vst [vmem:[%s2956] ss:$9 sm:$0xff] %v1571
    %2972 = vst [vmem:[%s2958] ss:$9 sm:$0xff] %v1572
    %2973 = vst [vmem:[%s2960] ss:$9 sm:$0xff] %v1573
    %2974 = vst [vmem:[%s2962] ss:$9 sm:$0xff] %v1574
    %2975 = vst [vmem:[%s2964] ss:$9 sm:$0xff] %v1575
    %v2976 = vld [vmem:[#allocation1] sm:$0xff]
    %2977 = vst [vmem:[#allocation1] ss:$9 sm:$0xff] %v1576
    %2978 = vst [vmem:[%s2954] ss:$9 sm:$0xff] %v1577
    %2979 = vst [vmem:[%s2956] ss:$9 sm:$0xff] %v1578
    %2980 = vst [vmem:[%s2958] ss:$9 sm:$0xff] %v1579
    %2981 = vst [vmem:[%s2960] ss:$9 sm:$0xff] %v1580
    %2982 = vst [vmem:[%s2962] ss:$9 sm:$0xff] %v1581
    %2983 = vst [vmem:[%s2964] ss:$9 sm:$0xff] %v1582
    %2984 = vst [vmem:[%s2966] ss:$9 sm:$0xff] %v1583
    %v2985 = vld [vmem:[#allocation1] sm:$0xff]
    %2986 = vst [vmem:[#allocation1] ss:$9 sm:$0xff] %v1584
    %2987 = vst [vmem:[%s2954] ss:$9 sm:$0xff] %v1585
    %2988 = vst [vmem:[%s2956] ss:$9 sm:$0xff] %v1586
    %2989 = vst [vmem:[%s2958] ss:$9 sm:$0xff] %v1587
    %2990 = vst [vmem:[%s2960] ss:$9 sm:$0xff] %v1588
    %2991 = vst [vmem:[%s2962] ss:$9 sm:$0xff] %v1589
    %2992 = vst [vmem:[%s2964] ss:$9 sm:$0xff] %v1590
    %v2993 = vld [vmem:[#allocation1] sm:$0xff]
    %2994 = vst [vmem:[#allocation1] ss:$9 sm:$0xff] %v1591
    %2995 = vst [vmem:[%s2954] ss:$9 sm:$0xff] %v1592
    %2996 = vst [vmem:[%s2956] ss:$9 sm:$0xff] %v1593
    %2997 = vst [vmem:[%s2958] ss:$9 sm:$0xff] %v1594
    %2998 = vst [vmem:[%s2960] ss:$9 sm:$0xff] %v1595
    %2999 = vst [vmem:[%s2962] ss:$9 sm:$0xff] %v1596
    %3000 = vst [vmem:[%s2964] ss:$9 sm:$0xff] %v1597
    %3001 = vst [vmem:[%s2966] ss:$9 sm:$0xff] %v1598
    %v3002 = vld [vmem:[#allocation1] sm:$0xff]
    %3003 = vst [vmem:[#allocation1] ss:$9 sm:$0xff] %v1599
    %3004 = vst [vmem:[%s2954] ss:$9 sm:$0xff] %v1600
    %3005 = vst [vmem:[%s2956] ss:$9 sm:$0xff] %v1601
    %3006 = vst [vmem:[%s2958] ss:$9 sm:$0xff] %v1602
    %3007 = vst [vmem:[%s2960] ss:$9 sm:$0xff] %v1603
    %3008 = vst [vmem:[%s2962] ss:$9 sm:$0xff] %v1604
    %3009 = vst [vmem:[%s2964] ss:$9 sm:$0xff] %v1605
    %v3010 = vld [vmem:[#allocation1] sm:$0xff]
    %3011 = vst [vmem:[#allocation1] ss:$9 sm:$0xff] %v1606
    %3012 = vst [vmem:[%s2954] ss:$9 sm:$0xff] %v1607
    %3013 = vst [vmem:[%s2956] ss:$9 sm:$0xff] %v1608
    %3014 = vst [vmem:[%s2958] ss:$9 sm:$0xff] %v1609
    %3015 = vst [vmem:[%s2960] ss:$9 sm:$0xff] %v1610
    %3016 = vst [vmem:[%s2962] ss:$9 sm:$0xff] %v1611
    %3017 = vst [vmem:[%s2964] ss:$9 sm:$0xff] %v1612
    %3018 = vst [vmem:[%s2966] ss:$9 sm:$0xff] %v1613
    %v3019 = vld [vmem:[#allocation1] sm:$0xff]
    %3020 = vst [vmem:[#allocation1] ss:$9 sm:$0xff] %v1614
    %3021 = vst [vmem:[%s2954] ss:$9 sm:$0xff] %v1615
    %3022 = vst [vmem:[%s2956] ss:$9 sm:$0xff] %v1616
    %3023 = vst [vmem:[%s2958] ss:$9 sm:$0xff] %v1617
    %3024 = vst [vmem:[%s2960] ss:$9 sm:$0xff] %v1618
    %3025 = vst [vmem:[%s2962] ss:$9 sm:$0xff] %v1619
    %3026 = vst [vmem:[%s2964] ss:$9 sm:$0xff] %v1620
    %v3027 = vld [vmem:[#allocation1] sm:$0xff]
    %3028 = vst [vmem:[#allocation1] ss:$9 sm:$0xff] %v1621
    %3029 = vst [vmem:[%s2954] ss:$9 sm:$0xff] %v1622
    %3030 = vst [vmem:[%s2956] ss:$9 sm:$0xff] %v1623
    %3031 = vst [vmem:[%s2958] ss:$9 sm:$0xff] %v1624
    %3032 = vst [vmem:[%s2960] ss:$9 sm:$0xff] %v1625
    %3033 = vst [vmem:[%s2962] ss:$9 sm:$0xff] %v1626
    %3034 = vst [vmem:[%s2964] ss:$9 sm:$0xff] %v1627
    %3035 = vst [vmem:[%s2966] ss:$9 sm:$0xff] %v1628
    %v3036 = vld [vmem:[#allocation1] sm:$0xff]
    %3037 = vst [vmem:[#allocation1] ss:$9 sm:$0xff] %v1629
    %3038 = vst [vmem:[%s2954] ss:$9 sm:$0xff] %v1630
    %3039 = vst [vmem:[%s2956] ss:$9 sm:$0xff] %v1631
    %3040 = vst [vmem:[%s2958] ss:$9 sm:$0xff] %v1632
    %3041 = vst [vmem:[%s2960] ss:$9 sm:$0xff] %v1633
    %3042 = vst [vmem:[%s2962] ss:$9 sm:$0xff] %v1634
    %3043 = vst [vmem:[%s2964] ss:$9 sm:$0xff] %v1635
    %v3044 = vld [vmem:[#allocation1] sm:$0xff]
    %3045 = vst [vmem:[#allocation1] ss:$9 sm:$0xff] %v1636
    %3046 = vst [vmem:[%s2954] ss:$9 sm:$0xff] %v1637
    %3047 = vst [vmem:[%s2956] ss:$9 sm:$0xff] %v1638
    %3048 = vst [vmem:[%s2958] ss:$9 sm:$0xff] %v1639
    %3049 = vst [vmem:[%s2960] ss:$9 sm:$0xff] %v1640
    %3050 = vst [vmem:[%s2962] ss:$9 sm:$0xff] %v1641
    %3051 = vst [vmem:[%s2964] ss:$9 sm:$0xff] %v1642
    %3052 = vst [vmem:[%s2966] ss:$9 sm:$0xff] %v1643
    %v3053 = vld [vmem:[#allocation1] sm:$0xff]
    %3054 = vst [vmem:[#allocation1] ss:$9 sm:$0xff] %v1644
    %3055 = vst [vmem:[%s2954] ss:$9 sm:$0xff] %v1645
    %3056 = vst [vmem:[%s2956] ss:$9 sm:$0xff] %v1646
    %3057 = vst [vmem:[%s2958] ss:$9 sm:$0xff] %v1647
    %3058 = vst [vmem:[%s2960] ss:$9 sm:$0xff] %v1648
    %3059 = vst [vmem:[%s2962] ss:$9 sm:$0xff] %v1649
    %3060 = vst [vmem:[%s2964] ss:$9 sm:$0xff] %v1650
    %v3061 = vld [vmem:[#allocation1] sm:$0xff]
    %3062 = vst [vmem:[#allocation1] ss:$9 sm:$0xff] %v1651
    %3063 = vst [vmem:[%s2954] ss:$9 sm:$0xff] %v1652
    %3064 = vst [vmem:[%s2956] ss:$9 sm:$0xff] %v1653
    %3065 = vst [vmem:[%s2958] ss:$9 sm:$0xff] %v1654
    %3066 = vst [vmem:[%s2960] ss:$9 sm:$0xff] %v1655
    %3067 = vst [vmem:[%s2962] ss:$9 sm:$0xff] %v1656
    %3068 = vst [vmem:[%s2964] ss:$9 sm:$0xff] %v1657
    %3069 = vst [vmem:[%s2966] ss:$9 sm:$0xff] %v1658
    %v3070 = vld [vmem:[#allocation1] sm:$0xff]
    %3071 = vst [vmem:[#allocation1] ss:$9 sm:$0xff] %v1659
    %3072 = vst [vmem:[%s2954] ss:$9 sm:$0xff] %v1660
    %3073 = vst [vmem:[%s2956] ss:$9 sm:$0xff] %v1661
    %3074 = vst [vmem:[%s2958] ss:$9 sm:$0xff] %v1662
    %3075 = vst [vmem:[%s2960] ss:$9 sm:$0xff] %v1663
    %3076 = vst [vmem:[%s2962] ss:$9 sm:$0xff] %v1664
    %3077 = vst [vmem:[%s2964] ss:$9 sm:$0xff] %v1665
    %v3078 = vld [vmem:[#allocation1] sm:$0xff]
    %3079 = vst [vmem:[#allocation1] ss:$9 sm:$0xff] %v1666
    %3080 = vst [vmem:[%s2954] ss:$9 sm:$0xff] %v1667
    %3081 = vst [vmem:[%s2956] ss:$9 sm:$0xff] %v1668
    %3082 = vst [vmem:[%s2958] ss:$9 sm:$0xff] %v1669
    %3083 = vst [vmem:[%s2960] ss:$9 sm:$0xff] %v1670
    %3084 = vst [vmem:[%s2962] ss:$9 sm:$0xff] %v1671
    %3085 = vst [vmem:[%s2964] ss:$9 sm:$0xff] %v1672
    %3086 = vst [vmem:[%s2966] ss:$9 sm:$0xff] %v1673
    %v3087 = vld [vmem:[#allocation1] sm:$0xff]
    %3088 = vst [vmem:[#allocation1] ss:$9 sm:$0xff] %v1674
    %3089 = vst [vmem:[%s2954] ss:$9 sm:$0xff] %v1675
    %3090 = vst [vmem:[%s2956] ss:$9 sm:$0xff] %v1676
    %3091 = vst [vmem:[%s2958] ss:$9 sm:$0xff] %v1677
    %3092 = vst [vmem:[%s2960] ss:$9 sm:$0xff] %v1678
    %3093 = vst [vmem:[%s2962] ss:$9 sm:$0xff] %v1679
    %3094 = vst [vmem:[%s2964] ss:$9 sm:$0xff] %v1680
    %v3095 = vld [vmem:[#allocation1] sm:$0xff]
    %v3112 = vpack.c.bf16 %v2968, %v2968
    %v3113 = vpack.c.bf16 %v2976, %v2976
    %v3114 = vpack.c.bf16 %v2985, %v2985
    %v3115 = vpack.c.bf16 %v2993, %v2993
    %v3116 = vpack.c.bf16 %v3002, %v3002
    %v3117 = vpack.c.bf16 %v3010, %v3010
    %v3118 = vpack.c.bf16 %v3019, %v3019
    %v3119 = vpack.c.bf16 %v3027, %v3027
    %v3120 = vpack.c.bf16 %v3036, %v3036
    %v3121 = vpack.c.bf16 %v3044, %v3044
    %v3122 = vpack.c.bf16 %v3053, %v3053
    %v3123 = vpack.c.bf16 %v3061, %v3061
    %v3124 = vpack.c.bf16 %v3070, %v3070
    %v3125 = vpack.c.bf16 %v3078, %v3078
    %v3126 = vpack.c.bf16 %v3087, %v3087
    %v3127 = vpack.c.bf16 %v3095, %v3095
    %3248 = vst [vmem:[#allocation1] ss:$9 sm:$0xff] %v2713
    %s3249 = scalar_lea.vmem [#allocation1], 1
    %3250 = vst [vmem:[%s3249] ss:$9 sm:$0xff] %v2714
    %s3251 = scalar_lea.vmem [#allocation1], 2
    %3252 = vst [vmem:[%s3251] ss:$9 sm:$0xff] %v2715
    %s3253 = scalar_lea.vmem [#allocation1], 3
    %3254 = vst [vmem:[%s3253] ss:$9 sm:$0xff] %v2716
    %s3255 = scalar_lea.vmem [#allocation1], 4
    %3256 = vst [vmem:[%s3255] ss:$9 sm:$0xff] %v2717
    %s3257 = scalar_lea.vmem [#allocation1], 5
    %3258 = vst [vmem:[%s3257] ss:$9 sm:$0xff] %v2718
    %s3259 = scalar_lea.vmem [#allocation1], 6
    %3260 = vst [vmem:[%s3259] ss:$9 sm:$0xff] %v2719
    %s3261 = scalar_lea.vmem [#allocation1], 7
    %3262 = vst [vmem:[%s3261] ss:$9 sm:$0xff] %v2720
    %v3263 = vld [vmem:[#allocation1] sm:$0xff]
    %3264 = vst [vmem:[#allocation1] ss:$9 sm:$0xff] %v2721
    %3265 = vst [vmem:[%s3249] ss:$9 sm:$0xff] %v2722
    %3266 = vst [vmem:[%s3251] ss:$9 sm:$0xff] %v2723
    %3267 = vst [vmem:[%s3253] ss:$9 sm:$0xff] %v2724
    %3268 = vst [vmem:[%s3255] ss:$9 sm:$0xff] %v2725
    %3269 = vst [vmem:[%s3257] ss:$9 sm:$0xff] %v2726
    %3270 = vst [vmem:[%s3259] ss:$9 sm:$0xff] %v2727
    %v3271 = vld [vmem:[#allocation1] sm:$0xff]
    %3272 = vst [vmem:[#allocation1] ss:$9 sm:$0xff] %v2728
    %3273 = vst [vmem:[%s3249] ss:$9 sm:$0xff] %v2729
    %3274 = vst [vmem:[%s3251] ss:$9 sm:$0xff] %v2730
    %3275 = vst [vmem:[%s3253] ss:$9 sm:$0xff] %v2731
    %3276 = vst [vmem:[%s3255] ss:$9 sm:$0xff] %v2732
    %3277 = vst [vmem:[%s3257] ss:$9 sm:$0xff] %v2733
    %3278 = vst [vmem:[%s3259] ss:$9 sm:$0xff] %v2734
    %3279 = vst [vmem:[%s3261] ss:$9 sm:$0xff] %v2735
    %v3280 = vld [vmem:[#allocation1] sm:$0xff]
    %3281 = vst [vmem:[#allocation1] ss:$9 sm:$0xff] %v2736
    %3282 = vst [vmem:[%s3249] ss:$9 sm:$0xff] %v2737
    %3283 = vst [vmem:[%s3251] ss:$9 sm:$0xff] %v2738
    %3284 = vst [vmem:[%s3253] ss:$9 sm:$0xff] %v2739
    %3285 = vst [vmem:[%s3255] ss:$9 sm:$0xff] %v2740
    %3286 = vst [vmem:[%s3257] ss:$9 sm:$0xff] %v2741
    %3287 = vst [vmem:[%s3259] ss:$9 sm:$0xff] %v2742
    %v3288 = vld [vmem:[#allocation1] sm:$0xff]
    %3289 = vst [vmem:[#allocation1] ss:$9 sm:$0xff] %v2743
    %3290 = vst [vmem:[%s3249] ss:$9 sm:$0xff] %v2744
    %3291 = vst [vmem:[%s3251] ss:$9 sm:$0xff] %v2745
    %3292 = vst [vmem:[%s3253] ss:$9 sm:$0xff] %v2746
    %3293 = vst [vmem:[%s3255] ss:$9 sm:$0xff] %v2747
    %3294 = vst [vmem:[%s3257] ss:$9 sm:$0xff] %v2748
    %3295 = vst [vmem:[%s3259] ss:$9 sm:$0xff] %v2749
    %3296 = vst [vmem:[%s3261] ss:$9 sm:$0xff] %v2750
    %v3297 = vld [vmem:[#allocation1] sm:$0xff]
    %3298 = vst [vmem:[#allocation1] ss:$9 sm:$0xff] %v2751
    %3299 = vst [vmem:[%s3249] ss:$9 sm:$0xff] %v2752
    %3300 = vst [vmem:[%s3251] ss:$9 sm:$0xff] %v2753
    %3301 = vst [vmem:[%s3253] ss:$9 sm:$0xff] %v2754
    %3302 = vst [vmem:[%s3255] ss:$9 sm:$0xff] %v2755
    %3303 = vst [vmem:[%s3257] ss:$9 sm:$0xff] %v2756
    %3304 = vst [vmem:[%s3259] ss:$9 sm:$0xff] %v2757
    %v3305 = vld [vmem:[#allocation1] sm:$0xff]
    %3306 = vst [vmem:[#allocation1] ss:$9 sm:$0xff] %v2758
    %3307 = vst [vmem:[%s3249] ss:$9 sm:$0xff] %v2759
    %3308 = vst [vmem:[%s3251] ss:$9 sm:$0xff] %v2760
    %3309 = vst [vmem:[%s3253] ss:$9 sm:$0xff] %v2761
    %3310 = vst [vmem:[%s3255] ss:$9 sm:$0xff] %v2762
    %3311 = vst [vmem:[%s3257] ss:$9 sm:$0xff] %v2763
    %3312 = vst [vmem:[%s3259] ss:$9 sm:$0xff] %v2764
    %3313 = vst [vmem:[%s3261] ss:$9 sm:$0xff] %v2765
    %v3314 = vld [vmem:[#allocation1] sm:$0xff]
    %3315 = vst [vmem:[#allocation1] ss:$9 sm:$0xff] %v2766
    %3316 = vst [vmem:[%s3249] ss:$9 sm:$0xff] %v2767
    %3317 = vst [vmem:[%s3251] ss:$9 sm:$0xff] %v2768
    %3318 = vst [vmem:[%s3253] ss:$9 sm:$0xff] %v2769
    %3319 = vst [vmem:[%s3255] ss:$9 sm:$0xff] %v2770
    %3320 = vst [vmem:[%s3257] ss:$9 sm:$0xff] %v2771
    %3321 = vst [vmem:[%s3259] ss:$9 sm:$0xff] %v2772
    %v3322 = vld [vmem:[#allocation1] sm:$0xff]
    %3323 = vst [vmem:[#allocation1] ss:$9 sm:$0xff] %v2773
    %3324 = vst [vmem:[%s3249] ss:$9 sm:$0xff] %v2774
    %3325 = vst [vmem:[%s3251] ss:$9 sm:$0xff] %v2775
    %3326 = vst [vmem:[%s3253] ss:$9 sm:$0xff] %v2776
    %3327 = vst [vmem:[%s3255] ss:$9 sm:$0xff] %v2777
    %3328 = vst [vmem:[%s3257] ss:$9 sm:$0xff] %v2778
    %3329 = vst [vmem:[%s3259] ss:$9 sm:$0xff] %v2779
    %3330 = vst [vmem:[%s3261] ss:$9 sm:$0xff] %v2780
    %v3331 = vld [vmem:[#allocation1] sm:$0xff]
    %3332 = vst [vmem:[#allocation1] ss:$9 sm:$0xff] %v2781
    %3333 = vst [vmem:[%s3249] ss:$9 sm:$0xff] %v2782
    %3334 = vst [vmem:[%s3251] ss:$9 sm:$0xff] %v2783
    %3335 = vst [vmem:[%s3253] ss:$9 sm:$0xff] %v2784
    %3336 = vst [vmem:[%s3255] ss:$9 sm:$0xff] %v2785
    %3337 = vst [vmem:[%s3257] ss:$9 sm:$0xff] %v2786
    %3338 = vst [vmem:[%s3259] ss:$9 sm:$0xff] %v2787
    %v3339 = vld [vmem:[#allocation1] sm:$0xff]
    %3340 = vst [vmem:[#allocation1] ss:$9 sm:$0xff] %v2788
    %3341 = vst [vmem:[%s3249] ss:$9 sm:$0xff] %v2789
    %3342 = vst [vmem:[%s3251] ss:$9 sm:$0xff] %v2790
    %3343 = vst [vmem:[%s3253] ss:$9 sm:$0xff] %v2791
    %3344 = vst [vmem:[%s3255] ss:$9 sm:$0xff] %v2792
    %3345 = vst [vmem:[%s3257] ss:$9 sm:$0xff] %v2793
    %3346 = vst [vmem:[%s3259] ss:$9 sm:$0xff] %v2794
    %3347 = vst [vmem:[%s3261] ss:$9 sm:$0xff] %v2795
    %v3348 = vld [vmem:[#allocation1] sm:$0xff]
    %3349 = vst [vmem:[#allocation1] ss:$9 sm:$0xff] %v2796
    %3350 = vst [vmem:[%s3249] ss:$9 sm:$0xff] %v2797
    %3351 = vst [vmem:[%s3251] ss:$9 sm:$0xff] %v2798
    %3352 = vst [vmem:[%s3253] ss:$9 sm:$0xff] %v2799
    %3353 = vst [vmem:[%s3255] ss:$9 sm:$0xff] %v2800
    %3354 = vst [vmem:[%s3257] ss:$9 sm:$0xff] %v2801
    %3355 = vst [vmem:[%s3259] ss:$9 sm:$0xff] %v2802
    %v3356 = vld [vmem:[#allocation1] sm:$0xff]
    %3357 = vst [vmem:[#allocation1] ss:$9 sm:$0xff] %v2803
    %3358 = vst [vmem:[%s3249] ss:$9 sm:$0xff] %v2804
    %3359 = vst [vmem:[%s3251] ss:$9 sm:$0xff] %v2805
    %3360 = vst [vmem:[%s3253] ss:$9 sm:$0xff] %v2806
    %3361 = vst [vmem:[%s3255] ss:$9 sm:$0xff] %v2807
    %3362 = vst [vmem:[%s3257] ss:$9 sm:$0xff] %v2808
    %3363 = vst [vmem:[%s3259] ss:$9 sm:$0xff] %v2809
    %3364 = vst [vmem:[%s3261] ss:$9 sm:$0xff] %v2810
    %v3365 = vld [vmem:[#allocation1] sm:$0xff]
    %3366 = vst [vmem:[#allocation1] ss:$9 sm:$0xff] %v2811
    %3367 = vst [vmem:[%s3249] ss:$9 sm:$0xff] %v2812
    %3368 = vst [vmem:[%s3251] ss:$9 sm:$0xff] %v2813
    %3369 = vst [vmem:[%s3253] ss:$9 sm:$0xff] %v2814
    %3370 = vst [vmem:[%s3255] ss:$9 sm:$0xff] %v2815
    %3371 = vst [vmem:[%s3257] ss:$9 sm:$0xff] %v2816
    %3372 = vst [vmem:[%s3259] ss:$9 sm:$0xff] %v2817
    %v3373 = vld [vmem:[#allocation1] sm:$0xff]
    %3374 = vst [vmem:[#allocation1] ss:$9 sm:$0xff] %v2818
    %3375 = vst [vmem:[%s3249] ss:$9 sm:$0xff] %v2819
    %3376 = vst [vmem:[%s3251] ss:$9 sm:$0xff] %v2820
    %3377 = vst [vmem:[%s3253] ss:$9 sm:$0xff] %v2821
    %3378 = vst [vmem:[%s3255] ss:$9 sm:$0xff] %v2822
    %3379 = vst [vmem:[%s3257] ss:$9 sm:$0xff] %v2823
    %3380 = vst [vmem:[%s3259] ss:$9 sm:$0xff] %v2824
    %3381 = vst [vmem:[%s3261] ss:$9 sm:$0xff] %v2825
    %v3382 = vld [vmem:[#allocation1] sm:$0xff]
    %3383 = vst [vmem:[#allocation1] ss:$9 sm:$0xff] %v2826
    %3384 = vst [vmem:[%s3249] ss:$9 sm:$0xff] %v2827
    %3385 = vst [vmem:[%s3251] ss:$9 sm:$0xff] %v2828
    %3386 = vst [vmem:[%s3253] ss:$9 sm:$0xff] %v2829
    %3387 = vst [vmem:[%s3255] ss:$9 sm:$0xff] %v2830
    %3388 = vst [vmem:[%s3257] ss:$9 sm:$0xff] %v2831
    %3389 = vst [vmem:[%s3259] ss:$9 sm:$0xff] %v2832
    %v3390 = vld [vmem:[#allocation1] sm:$0xff]
    %v3407 = vpack.c.bf16 %v3263, %v3263
    %v3408 = vpack.c.bf16 %v3271, %v3271
    %v3409 = vpack.c.bf16 %v3280, %v3280
    %v3410 = vpack.c.bf16 %v3288, %v3288
    %v3411 = vpack.c.bf16 %v3297, %v3297
    %v3412 = vpack.c.bf16 %v3305, %v3305
    %v3413 = vpack.c.bf16 %v3314, %v3314
    %v3414 = vpack.c.bf16 %v3322, %v3322
    %v3415 = vpack.c.bf16 %v3331, %v3331
    %v3416 = vpack.c.bf16 %v3339, %v3339
    %v3417 = vpack.c.bf16 %v3348, %v3348
    %v3418 = vpack.c.bf16 %v3356, %v3356
    %v3419 = vpack.c.bf16 %v3365, %v3365
    %v3420 = vpack.c.bf16 %v3373, %v3373
    %v3421 = vpack.c.bf16 %v3382, %v3382
    %v3422 = vpack.c.bf16 %v3390, %v3390
    %v3439 = vunpack.c.l.b16 %v3112
    %v3440 = vunpack.c.l.b16 %v3113
    %v3441 = vunpack.c.l.b16 %v3114
    %v3442 = vunpack.c.l.b16 %v3115
    %v3443 = vunpack.c.l.b16 %v3116
    %v3444 = vunpack.c.l.b16 %v3117
    %v3445 = vunpack.c.l.b16 %v3118
    %v3446 = vunpack.c.l.b16 %v3119
    %v3447 = vunpack.c.l.b16 %v3120
    %v3448 = vunpack.c.l.b16 %v3121
    %v3449 = vunpack.c.l.b16 %v3122
    %v3450 = vunpack.c.l.b16 %v3123
    %v3451 = vunpack.c.l.b16 %v3124
    %v3452 = vunpack.c.l.b16 %v3125
    %v3453 = vunpack.c.l.b16 %v3126
    %v3454 = vunpack.c.l.b16 %v3127
    %v3455 = vpack.c.b16 %v3440, %v3439
    %v3456 = vpack.c.b16 %v3442, %v3441
    %v3457 = vpack.c.b16 %v3444, %v3443
    %v3458 = vpack.c.b16 %v3446, %v3445
    %v3459 = vpack.c.b16 %v3448, %v3447
    %v3460 = vpack.c.b16 %v3450, %v3449
    %v3461 = vpack.c.b16 %v3452, %v3451
    %v3462 = vpack.c.b16 %v3454, %v3453
    %v3479 = vunpack.c.l.b16 %v3407
    %v3480 = vunpack.c.l.b16 %v3408
    %v3481 = vunpack.c.l.b16 %v3409
    %v3482 = vunpack.c.l.b16 %v3410
    %v3483 = vunpack.c.l.b16 %v3411
    %v3484 = vunpack.c.l.b16 %v3412
    %v3485 = vunpack.c.l.b16 %v3413
    %v3486 = vunpack.c.l.b16 %v3414
    %v3487 = vunpack.c.l.b16 %v3415
    %v3488 = vunpack.c.l.b16 %v3416
    %v3489 = vunpack.c.l.b16 %v3417
    %v3490 = vunpack.c.l.b16 %v3418
    %v3491 = vunpack.c.l.b16 %v3419
    %v3492 = vunpack.c.l.b16 %v3420
    %v3493 = vunpack.c.l.b16 %v3421
    %v3494 = vunpack.c.l.b16 %v3422
    %v3495 = vpack.c.b16 %v3480, %v3479
    %v3496 = vpack.c.b16 %v3482, %v3481
    %v3497 = vpack.c.b16 %v3484, %v3483
    %v3498 = vpack.c.b16 %v3486, %v3485
    %v3499 = vpack.c.b16 %v3488, %v3487
    %v3500 = vpack.c.b16 %v3490, %v3489
    %v3501 = vpack.c.b16 %v3492, %v3491
    %v3502 = vpack.c.b16 %v3494, %v3493
    %3503 = vrot.lane.b32.xlu0 %v3495, 32
    %v3504 = vpop.permute.xlu0 %3503
    %3505 = vrot.lane.b32.xlu0 %v3496, 32
    %v3506 = vpop.permute.xlu0 %3505
    %3507 = vrot.lane.b32.xlu0 %v3497, 32
    %v3508 = vpop.permute.xlu0 %3507
    %3509 = vrot.lane.b32.xlu0 %v3498, 32
    %v3510 = vpop.permute.xlu0 %3509
    %3511 = vrot.lane.b32.xlu0 %v3499, 32
    %v3512 = vpop.permute.xlu0 %3511
    %3513 = vrot.lane.b32.xlu0 %v3500, 32
    %v3514 = vpop.permute.xlu0 %3513
    %3515 = vrot.lane.b32.xlu0 %v3501, 32
    %v3516 = vpop.permute.xlu0 %3515
    %3517 = vrot.lane.b32.xlu0 %v3502, 32
    %v3518 = vpop.permute.xlu0 %3517
    %v3520 = vshrl.u32 %v3455, 16
    %v3522 = vshll.u32 %v3455, 16
    %v3524 = vrot.slane %v3522, 1
    %v3525 = vor.u32 %v3520, %v3524
    %v3527 = vshrl.u32 %v3456, 16
    %v3529 = vshll.u32 %v3456, 16
    %v3531 = vrot.slane %v3529, 1
    %v3532 = vor.u32 %v3527, %v3531
    %v3534 = vshrl.u32 %v3457, 16
    %v3536 = vshll.u32 %v3457, 16
    %v3538 = vrot.slane %v3536, 1
    %v3539 = vor.u32 %v3534, %v3538
    %v3541 = vshrl.u32 %v3458, 16
    %v3543 = vshll.u32 %v3458, 16
    %v3545 = vrot.slane %v3543, 1
    %v3546 = vor.u32 %v3541, %v3545
    %v3548 = vshrl.u32 %v3459, 16
    %v3550 = vshll.u32 %v3459, 16
    %v3552 = vrot.slane %v3550, 1
    %v3553 = vor.u32 %v3548, %v3552
    %v3555 = vshrl.u32 %v3460, 16
    %v3557 = vshll.u32 %v3460, 16
    %v3559 = vrot.slane %v3557, 1
    %v3560 = vor.u32 %v3555, %v3559
    %v3562 = vshrl.u32 %v3461, 16
    %v3564 = vshll.u32 %v3461, 16
    %v3566 = vrot.slane %v3564, 1
    %v3567 = vor.u32 %v3562, %v3566
    %v3569 = vshrl.u32 %v3462, 16
    %v3571 = vshll.u32 %v3462, 16
    %v3573 = vrot.slane %v3571, 1
    %v3574 = vor.u32 %v3569, %v3573
    %3575 = vrot.lane.b32.xlu0 %v3525, 64
    %v3576 = vpop.permute.xlu0 %3575
    %3577 = vrot.lane.b32.xlu0 %v3532, 64
    %v3578 = vpop.permute.xlu0 %3577
    %3579 = vrot.lane.b32.xlu0 %v3539, 64
    %v3580 = vpop.permute.xlu0 %3579
    %3581 = vrot.lane.b32.xlu0 %v3546, 64
    %v3582 = vpop.permute.xlu0 %3581
    %3583 = vrot.lane.b32.xlu0 %v3553, 64
    %v3584 = vpop.permute.xlu0 %3583
    %3585 = vrot.lane.b32.xlu0 %v3560, 64
    %v3586 = vpop.permute.xlu0 %3585
    %3587 = vrot.lane.b32.xlu0 %v3567, 64
    %v3588 = vpop.permute.xlu0 %3587
    %3589 = vrot.lane.b32.xlu0 %v3574, 64
    %v3590 = vpop.permute.xlu0 %3589
    %v3592 = vshrl.u32 %v3495, 16
    %v3594 = vshll.u32 %v3495, 16
    %v3596 = vrot.slane %v3594, 1
    %v3597 = vor.u32 %v3592, %v3596
    %v3599 = vshrl.u32 %v3496, 16
    %v3601 = vshll.u32 %v3496, 16
    %v3603 = vrot.slane %v3601, 1
    %v3604 = vor.u32 %v3599, %v3603
    %v3606 = vshrl.u32 %v3497, 16
    %v3608 = vshll.u32 %v3497, 16
    %v3610 = vrot.slane %v3608, 1
    %v3611 = vor.u32 %v3606, %v3610
    %v3613 = vshrl.u32 %v3498, 16
    %v3615 = vshll.u32 %v3498, 16
    %v3617 = vrot.slane %v3615, 1
    %v3618 = vor.u32 %v3613, %v3617
    %v3620 = vshrl.u32 %v3499, 16
    %v3622 = vshll.u32 %v3499, 16
    %v3624 = vrot.slane %v3622, 1
    %v3625 = vor.u32 %v3620, %v3624
    %v3627 = vshrl.u32 %v3500, 16
    %v3629 = vshll.u32 %v3500, 16
    %v3631 = vrot.slane %v3629, 1
    %v3632 = vor.u32 %v3627, %v3631
    %v3634 = vshrl.u32 %v3501, 16
    %v3636 = vshll.u32 %v3501, 16
    %v3638 = vrot.slane %v3636, 1
    %v3639 = vor.u32 %v3634, %v3638
    %v3641 = vshrl.u32 %v3502, 16
    %v3643 = vshll.u32 %v3502, 16
    %v3645 = vrot.slane %v3643, 1
    %v3646 = vor.u32 %v3641, %v3645
    %3647 = vrot.lane.b32.xlu0 %v3597, 96
    %v3648 = vpop.permute.xlu0 %3647
    %3649 = vrot.lane.b32.xlu0 %v3604, 96
    %v3650 = vpop.permute.xlu0 %3649
    %3651 = vrot.lane.b32.xlu0 %v3611, 96
    %v3652 = vpop.permute.xlu0 %3651
    %3653 = vrot.lane.b32.xlu0 %v3618, 96
    %v3654 = vpop.permute.xlu0 %3653
    %3655 = vrot.lane.b32.xlu0 %v3625, 96
    %v3656 = vpop.permute.xlu0 %3655
    %3657 = vrot.lane.b32.xlu0 %v3632, 96
    %v3658 = vpop.permute.xlu0 %3657
    %3659 = vrot.lane.b32.xlu0 %v3639, 96
    %v3660 = vpop.permute.xlu0 %3659
    %3661 = vrot.lane.b32.xlu0 %v3646, 96
    %v3662 = vpop.permute.xlu0 %3661
    %vm3663 = vcmask 261120
    %v3665 = vsel %vm3663, %v3455, %v3504
    %v3667 = vsel %vm3663, %v3456, %v3506
    %v3669 = vsel %vm3663, %v3457, %v3508
    %v3671 = vsel %vm3663, %v3458, %v3510
    %v3673 = vsel %vm3663, %v3459, %v3512
    %v3675 = vsel %vm3663, %v3460, %v3514
    %v3677 = vsel %vm3663, %v3461, %v3516
    %v3679 = vsel %vm3663, %v3462, %v3518
    %vm3680 = vcmask 523264
    %v3682 = vsel %vm3680, %v3665, %v3576
    %v3684 = vsel %vm3680, %v3667, %v3578
    %v3686 = vsel %vm3680, %v3669, %v3580
    %v3688 = vsel %vm3680, %v3671, %v3582
    %v3690 = vsel %vm3680, %v3673, %v3584
    %v3692 = vsel %vm3680, %v3675, %v3586
    %v3694 = vsel %vm3680, %v3677, %v3588
    %v3696 = vsel %vm3680, %v3679, %v3590
    %vm3697 = vcmask 785408
    %v3699 = vsel %vm3697, %v3682, %v3648
    %v3701 = vsel %vm3697, %v3684, %v3650
    %v3703 = vsel %vm3697, %v3686, %v3652
    %v3705 = vsel %vm3697, %v3688, %v3654
    %v3707 = vsel %vm3697, %v3690, %v3656
    %v3709 = vsel %vm3697, %v3692, %v3658
    %v3711 = vsel %vm3697, %v3694, %v3660
    %v3713 = vsel %vm3697, %v3696, %v3662
    %3714 = vrot.lane.b32.xlu0 %v3525, 32
    %v3715 = vpop.permute.xlu0 %3714
    %3716 = vrot.lane.b32.xlu0 %v3532, 32
    %v3717 = vpop.permute.xlu0 %3716
    %3718 = vrot.lane.b32.xlu0 %v3539, 32
    %v3719 = vpop.permute.xlu0 %3718
    %3720 = vrot.lane.b32.xlu0 %v3546, 32
    %v3721 = vpop.permute.xlu0 %3720
    %3722 = vrot.lane.b32.xlu0 %v3553, 32
    %v3723 = vpop.permute.xlu0 %3722
    %3724 = vrot.lane.b32.xlu0 %v3560, 32
    %v3725 = vpop.permute.xlu0 %3724
    %3726 = vrot.lane.b32.xlu0 %v3567, 32
    %v3727 = vpop.permute.xlu0 %3726
    %3728 = vrot.lane.b32.xlu0 %v3574, 32
    %v3729 = vpop.permute.xlu0 %3728
    %3730 = vrot.lane.b32.xlu0 %v3597, 64
    %v3731 = vpop.permute.xlu0 %3730
    %3732 = vrot.lane.b32.xlu0 %v3604, 64
    %v3733 = vpop.permute.xlu0 %3732
    %3734 = vrot.lane.b32.xlu0 %v3611, 64
    %v3735 = vpop.permute.xlu0 %3734
    %3736 = vrot.lane.b32.xlu0 %v3618, 64
    %v3737 = vpop.permute.xlu0 %3736
    %3738 = vrot.lane.b32.xlu0 %v3625, 64
    %v3739 = vpop.permute.xlu0 %3738
    %3740 = vrot.lane.b32.xlu0 %v3632, 64
    %v3741 = vpop.permute.xlu0 %3740
    %3742 = vrot.lane.b32.xlu0 %v3639, 64
    %v3743 = vpop.permute.xlu0 %3742
    %3744 = vrot.lane.b32.xlu0 %v3646, 64
    %v3745 = vpop.permute.xlu0 %3744
    %v3746 = vrot.slane %v3455, 1
    %v3747 = vrot.slane %v3456, 1
    %v3748 = vrot.slane %v3457, 1
    %v3749 = vrot.slane %v3458, 1
    %v3750 = vrot.slane %v3459, 1
    %v3751 = vrot.slane %v3460, 1
    %v3752 = vrot.slane %v3461, 1
    %v3753 = vrot.slane %v3462, 1
    %3754 = vrot.lane.b32.xlu0 %v3746, 96
    %v3755 = vpop.permute.xlu0 %3754
    %3756 = vrot.lane.b32.xlu0 %v3747, 96
    %v3757 = vpop.permute.xlu0 %3756
    %3758 = vrot.lane.b32.xlu0 %v3748, 96
    %v3759 = vpop.permute.xlu0 %3758
    %3760 = vrot.lane.b32.xlu0 %v3749, 96
    %v3761 = vpop.permute.xlu0 %3760
    %3762 = vrot.lane.b32.xlu0 %v3750, 96
    %v3763 = vpop.permute.xlu0 %3762
    %3764 = vrot.lane.b32.xlu0 %v3751, 96
    %v3765 = vpop.permute.xlu0 %3764
    %3766 = vrot.lane.b32.xlu0 %v3752, 96
    %v3767 = vpop.permute.xlu0 %3766
    %3768 = vrot.lane.b32.xlu0 %v3753, 96
    %v3769 = vpop.permute.xlu0 %3768
    %v3771 = vsel %vm3663, %v3495, %v3715
    %v3773 = vsel %vm3663, %v3496, %v3717
    %v3775 = vsel %vm3663, %v3497, %v3719
    %v3777 = vsel %vm3663, %v3498, %v3721
    %v3779 = vsel %vm3663, %v3499, %v3723
    %v3781 = vsel %vm3663, %v3500, %v3725
    %v3783 = vsel %vm3663, %v3501, %v3727
    %v3785 = vsel %vm3663, %v3502, %v3729
    %v3787 = vsel %vm3680, %v3771, %v3731
    %v3789 = vsel %vm3680, %v3773, %v3733
    %v3791 = vsel %vm3680, %v3775, %v3735
    %v3793 = vsel %vm3680, %v3777, %v3737
    %v3795 = vsel %vm3680, %v3779, %v3739
    %v3797 = vsel %vm3680, %v3781, %v3741
    %v3799 = vsel %vm3680, %v3783, %v3743
    %v3801 = vsel %vm3680, %v3785, %v3745
    %v3803 = vsel %vm3697, %v3787, %v3755
    %v3805 = vsel %vm3697, %v3789, %v3757
    %v3807 = vsel %vm3697, %v3791, %v3759
    %v3809 = vsel %vm3697, %v3793, %v3761
    %v3811 = vsel %vm3697, %v3795, %v3763
    %v3813 = vsel %vm3697, %v3797, %v3765
    %v3815 = vsel %vm3697, %v3799, %v3767
    %v3817 = vsel %vm3697, %v3801, %v3769
    %v3818 = vld [vmem:[%s3] sm:$0xf]
    %v3819 = vld [vmem:[%s3 + $0x4] sm:$0xf]
    %v3820 = vld [vmem:[%s3 + $0x8] sm:$0xf]
    %v3821 = vld [vmem:[%s3 + $0xc] sm:$0xf]
    %v3822 = vld [vmem:[%s3 + $0x10] sm:$0xf]
    %v3823 = vld [vmem:[%s3 + $0x14] sm:$0xf]
    %v3824 = vld [vmem:[%s3 + $0x18] sm:$0xf]
    %v3825 = vld [vmem:[%s3 + $0x1c] sm:$0xf]
    %v3826 = vld [vmem:[%s3 + $0x20] sm:$0xf]
    %v3827 = vld [vmem:[%s3 + $0x24] sm:$0xf]
    %v3828 = vld [vmem:[%s3 + $0x28] sm:$0xf]
    %v3829 = vld [vmem:[%s3 + $0x2c] sm:$0xf]
    %v3830 = vld [vmem:[%s3 + $0x30] sm:$0xf]
    %v3831 = vld [vmem:[%s3 + $0x34] sm:$0xf]
    %v3832 = vld [vmem:[%s3 + $0x38] sm:$0xf]
    %v3833 = vld [vmem:[%s3 + $0x3c] sm:$0xf]
    %v3842 = vrot.slane %v3699, 1
    %v3843 = vrot.slane %v3699, 2
    %v3844 = vrot.slane %v3699, 3
    %v3845 = vrot.slane %v3699, 4
    %v3846 = vrot.slane %v3699, 5
    %v3847 = vrot.slane %v3699, 6
    %v3848 = vrot.slane %v3701, 1
    %v3849 = vrot.slane %v3701, 2
    %v3850 = vrot.slane %v3701, 3
    %v3851 = vrot.slane %v3701, 4
    %v3852 = vrot.slane %v3701, 5
    %v3853 = vrot.slane %v3701, 6
    %v3854 = vrot.slane %v3703, 1
    %v3855 = vrot.slane %v3703, 2
    %v3856 = vrot.slane %v3703, 3
    %v3857 = vrot.slane %v3703, 4
    %v3858 = vrot.slane %v3703, 5
    %v3859 = vrot.slane %v3703, 6
    %v3860 = vrot.slane %v3705, 1
    %v3861 = vrot.slane %v3705, 2
    %v3862 = vrot.slane %v3705, 3
    %v3863 = vrot.slane %v3705, 4
    %v3864 = vrot.slane %v3705, 5
    %v3865 = vrot.slane %v3705, 6
    %v3866 = vrot.slane %v3707, 1
    %v3867 = vrot.slane %v3707, 2
    %v3868 = vrot.slane %v3707, 3
    %v3869 = vrot.slane %v3707, 4
    %v3870 = vrot.slane %v3707, 5
    %v3871 = vrot.slane %v3707, 6
    %v3872 = vrot.slane %v3709, 1
    %v3873 = vrot.slane %v3709, 2
    %v3874 = vrot.slane %v3709, 3
    %v3875 = vrot.slane %v3709, 4
    %v3876 = vrot.slane %v3709, 5
    %v3877 = vrot.slane %v3709, 6
    %v3878 = vrot.slane %v3711, 1
    %v3879 = vrot.slane %v3711, 2
    %v3880 = vrot.slane %v3711, 3
    %v3881 = vrot.slane %v3711, 4
    %v3882 = vrot.slane %v3711, 5
    %v3883 = vrot.slane %v3711, 6
    %v3884 = vrot.slane %v3713, 1
    %v3885 = vrot.slane %v3713, 2
    %v3886 = vrot.slane %v3713, 3
    %v3887 = vrot.slane %v3713, 4
    %v3888 = vrot.slane %v3713, 5
    %v3889 = vrot.slane %v3713, 6
    %v3890 = vunpack.i.l.s16 %v3699
    %v3891 = vunpack.i.h.s16 %v3699
    %v3892 = vunpack.i.l.s16 %v3842
    %v3893 = vunpack.i.h.s16 %v3842
    %v3894 = vunpack.i.l.s16 %v3843
    %v3895 = vunpack.i.h.s16 %v3843
    %v3896 = vunpack.i.l.s16 %v3844
    %v3897 = vunpack.i.h.s16 %v3844
    %v3898 = vunpack.i.l.s16 %v3845
    %v3899 = vunpack.i.h.s16 %v3845
    %v3900 = vunpack.i.l.s16 %v3846
    %v3901 = vunpack.i.h.s16 %v3846
    %v3902 = vunpack.i.l.s16 %v3847
    %v3903 = vunpack.i.l.s16 %v3701
    %v3904 = vunpack.i.h.s16 %v3701
    %v3905 = vunpack.i.l.s16 %v3848
    %v3906 = vunpack.i.h.s16 %v3848
    %v3907 = vunpack.i.l.s16 %v3849
    %v3908 = vunpack.i.h.s16 %v3849
    %v3909 = vunpack.i.l.s16 %v3850
    %v3910 = vunpack.i.h.s16 %v3850
    %v3911 = vunpack.i.l.s16 %v3851
    %v3912 = vunpack.i.h.s16 %v3851
    %v3913 = vunpack.i.l.s16 %v3852
    %v3914 = vunpack.i.h.s16 %v3852
    %v3915 = vunpack.i.l.s16 %v3853
    %v3916 = vunpack.i.l.s16 %v3703
    %v3917 = vunpack.i.h.s16 %v3703
    %v3918 = vunpack.i.l.s16 %v3854
    %v3919 = vunpack.i.h.s16 %v3854
    %v3920 = vunpack.i.l.s16 %v3855
    %v3921 = vunpack.i.h.s16 %v3855
    %v3922 = vunpack.i.l.s16 %v3856
    %v3923 = vunpack.i.h.s16 %v3856
    %v3924 = vunpack.i.l.s16 %v3857
    %v3925 = vunpack.i.h.s16 %v3857
    %v3926 = vunpack.i.l.s16 %v3858
    %v3927 = vunpack.i.h.s16 %v3858
    %v3928 = vunpack.i.l.s16 %v3859
    %v3929 = vunpack.i.l.s16 %v3705
    %v3930 = vunpack.i.h.s16 %v3705
    %v3931 = vunpack.i.l.s16 %v3860
    %v3932 = vunpack.i.h.s16 %v3860
    %v3933 = vunpack.i.l.s16 %v3861
    %v3934 = vunpack.i.h.s16 %v3861
    %v3935 = vunpack.i.l.s16 %v3862
    %v3936 = vunpack.i.h.s16 %v3862
    %v3937 = vunpack.i.l.s16 %v3863
    %v3938 = vunpack.i.h.s16 %v3863
    %v3939 = vunpack.i.l.s16 %v3864
    %v3940 = vunpack.i.h.s16 %v3864
    %v3941 = vunpack.i.l.s16 %v3865
    %v3942 = vunpack.i.l.s16 %v3707
    %v3943 = vunpack.i.h.s16 %v3707
    %v3944 = vunpack.i.l.s16 %v3866
    %v3945 = vunpack.i.h.s16 %v3866
    %v3946 = vunpack.i.l.s16 %v3867
    %v3947 = vunpack.i.h.s16 %v3867
    %v3948 = vunpack.i.l.s16 %v3868
    %v3949 = vunpack.i.h.s16 %v3868
    %v3950 = vunpack.i.l.s16 %v3869
    %v3951 = vunpack.i.h.s16 %v3869
    %v3952 = vunpack.i.l.s16 %v3870
    %v3953 = vunpack.i.h.s16 %v3870
    %v3954 = vunpack.i.l.s16 %v3871
    %v3955 = vunpack.i.l.s16 %v3709
    %v3956 = vunpack.i.h.s16 %v3709
    %v3957 = vunpack.i.l.s16 %v3872
    %v3958 = vunpack.i.h.s16 %v3872
    %v3959 = vunpack.i.l.s16 %v3873
    %v3960 = vunpack.i.h.s16 %v3873
    %v3961 = vunpack.i.l.s16 %v3874
    %v3962 = vunpack.i.h.s16 %v3874
    %v3963 = vunpack.i.l.s16 %v3875
    %v3964 = vunpack.i.h.s16 %v3875
    %v3965 = vunpack.i.l.s16 %v3876
    %v3966 = vunpack.i.h.s16 %v3876
    %v3967 = vunpack.i.l.s16 %v3877
    %v3968 = vunpack.i.l.s16 %v3711
    %v3969 = vunpack.i.h.s16 %v3711
    %v3970 = vunpack.i.l.s16 %v3878
    %v3971 = vunpack.i.h.s16 %v3878
    %v3972 = vunpack.i.l.s16 %v3879
    %v3973 = vunpack.i.h.s16 %v3879
    %v3974 = vunpack.i.l.s16 %v3880
    %v3975 = vunpack.i.h.s16 %v3880
    %v3976 = vunpack.i.l.s16 %v3881
    %v3977 = vunpack.i.h.s16 %v3881
    %v3978 = vunpack.i.l.s16 %v3882
    %v3979 = vunpack.i.h.s16 %v3882
    %v3980 = vunpack.i.l.s16 %v3883
    %v3981 = vunpack.i.l.s16 %v3713
    %v3982 = vunpack.i.h.s16 %v3713
    %v3983 = vunpack.i.l.s16 %v3884
    %v3984 = vunpack.i.h.s16 %v3884
    %v3985 = vunpack.i.l.s16 %v3885
    %v3986 = vunpack.i.h.s16 %v3885
    %v3987 = vunpack.i.l.s16 %v3886
    %v3988 = vunpack.i.h.s16 %v3886
    %v3989 = vunpack.i.l.s16 %v3887
    %v3990 = vunpack.i.h.s16 %v3887
    %v3991 = vunpack.i.l.s16 %v3888
    %v3992 = vunpack.i.h.s16 %v3888
    %v3993 = vunpack.i.l.s16 %v3889
    %v3994 = vpack.i.b16 %v3891, %v3890
    %v3995 = vpack.i.b16 %v3893, %v3892
    %v3996 = vpack.i.b16 %v3895, %v3894
    %v3997 = vpack.i.b16 %v3897, %v3896
    %v3998 = vpack.i.b16 %v3899, %v3898
    %v3999 = vpack.i.b16 %v3901, %v3900
    %v4000 = vpack.i.b16 %v3903, %v3902
    %v4001 = vpack.i.b16 %v3905, %v3904
    %v4002 = vpack.i.b16 %v3907, %v3906
    %v4003 = vpack.i.b16 %v3909, %v3908
    %v4004 = vpack.i.b16 %v3911, %v3910
    %v4005 = vpack.i.b16 %v3913, %v3912
    %v4006 = vpack.i.b16 %v3915, %v3914
    %v4007 = vpack.i.b16 %v3917, %v3916
    %v4008 = vpack.i.b16 %v3919, %v3918
    %v4009 = vpack.i.b16 %v3921, %v3920
    %v4010 = vpack.i.b16 %v3923, %v3922
    %v4011 = vpack.i.b16 %v3925, %v3924
    %v4012 = vpack.i.b16 %v3927, %v3926
    %v4013 = vpack.i.b16 %v3929, %v3928
    %v4014 = vpack.i.b16 %v3931, %v3930
    %v4015 = vpack.i.b16 %v3933, %v3932
    %v4016 = vpack.i.b16 %v3935, %v3934
    %v4017 = vpack.i.b16 %v3937, %v3936
    %v4018 = vpack.i.b16 %v3939, %v3938
    %v4019 = vpack.i.b16 %v3941, %v3940
    %v4020 = vpack.i.b16 %v3943, %v3942
    %v4021 = vpack.i.b16 %v3945, %v3944
    %v4022 = vpack.i.b16 %v3947, %v3946
    %v4023 = vpack.i.b16 %v3949, %v3948
    %v4024 = vpack.i.b16 %v3951, %v3950
    %v4025 = vpack.i.b16 %v3953, %v3952
    %v4026 = vpack.i.b16 %v3955, %v3954
    %v4027 = vpack.i.b16 %v3957, %v3956
    %v4028 = vpack.i.b16 %v3959, %v3958
    %v4029 = vpack.i.b16 %v3961, %v3960
    %v4030 = vpack.i.b16 %v3963, %v3962
    %v4031 = vpack.i.b16 %v3965, %v3964
    %v4032 = vpack.i.b16 %v3967, %v3966
    %v4033 = vpack.i.b16 %v3969, %v3968
    %v4034 = vpack.i.b16 %v3971, %v3970
    %v4035 = vpack.i.b16 %v3973, %v3972
    %v4036 = vpack.i.b16 %v3975, %v3974
    %v4037 = vpack.i.b16 %v3977, %v3976
    %v4038 = vpack.i.b16 %v3979, %v3978
    %v4039 = vpack.i.b16 %v3981, %v3980
    %v4040 = vpack.i.b16 %v3983, %v3982
    %v4041 = vpack.i.b16 %v3985, %v3984
    %v4042 = vpack.i.b16 %v3987, %v3986
    %v4043 = vpack.i.b16 %v3989, %v3988
    %v4044 = vpack.i.b16 %v3991, %v3990
    %v4045 = vpack.i.b16 %v3993, %v3992
    %4047 = vst [vmem:[#allocation1] ss:$9 sm:$0xff] %v3994
    %s4049 = scalar_lea.vmem [#allocation1], 1
    %4050 = vst [vmem:[%s4049] ss:$9 sm:$0xff] %v3995
    %s4052 = scalar_lea.vmem [#allocation1], 2
    %4053 = vst [vmem:[%s4052] ss:$9 sm:$0xff] %v3996
    %s4055 = scalar_lea.vmem [#allocation1], 3
    %4056 = vst [vmem:[%s4055] ss:$9 sm:$0xff] %v3997
    %s4058 = scalar_lea.vmem [#allocation1], 4
    %4059 = vst [vmem:[%s4058] ss:$9 sm:$0xff] %v3998
    %s4061 = scalar_lea.vmem [#allocation1], 5
    %4062 = vst [vmem:[%s4061] ss:$9 sm:$0xff] %v3999
    %s4064 = scalar_lea.vmem [#allocation1], 6
    %4065 = vst [vmem:[%s4064] ss:$9 sm:$0xff] %v4000
    %s4067 = scalar_lea.vmem [#allocation1], 7
    %4068 = vst [vmem:[%s4067] ss:$9 sm:$0xff] %v4001
    %v4069 = vld [vmem:[#allocation1] sm:$0xff]
    %4071 = vst [vmem:[#allocation1] ss:$9 sm:$0xff] %v4002
    %4073 = vst [vmem:[%s4049] ss:$9 sm:$0xff] %v4003
    %4075 = vst [vmem:[%s4052] ss:$9 sm:$0xff] %v4004
    %4077 = vst [vmem:[%s4055] ss:$9 sm:$0xff] %v4005
    %4079 = vst [vmem:[%s4058] ss:$9 sm:$0xff] %v4006
    %4081 = vst [vmem:[%s4061] ss:$9 sm:$0xff] %v4007
    %4083 = vst [vmem:[%s4064] ss:$9 sm:$0xff] %v4008
    %4085 = vst [vmem:[%s4067] ss:$9 sm:$0xff] %v4009
    %v4086 = vld [vmem:[#allocation1] sm:$0xff]
    %4088 = vst [vmem:[#allocation1] ss:$9 sm:$0xff] %v4010
    %4090 = vst [vmem:[%s4049] ss:$9 sm:$0xff] %v4011
    %4092 = vst [vmem:[%s4052] ss:$9 sm:$0xff] %v4012
    %4094 = vst [vmem:[%s4055] ss:$9 sm:$0xff] %v4013
    %4096 = vst [vmem:[%s4058] ss:$9 sm:$0xff] %v4014
    %4098 = vst [vmem:[%s4061] ss:$9 sm:$0xff] %v4015
    %4100 = vst [vmem:[%s4064] ss:$9 sm:$0xff] %v4016
    %4102 = vst [vmem:[%s4067] ss:$9 sm:$0xff] %v4017
    %v4103 = vld [vmem:[#allocation1] sm:$0xff]
    %4105 = vst [vmem:[#allocation1] ss:$9 sm:$0xff] %v4018
    %4107 = vst [vmem:[%s4049] ss:$9 sm:$0xff] %v4019
    %4109 = vst [vmem:[%s4052] ss:$9 sm:$0xff] %v4020
    %4111 = vst [vmem:[%s4055] ss:$9 sm:$0xff] %v4021
    %4113 = vst [vmem:[%s4058] ss:$9 sm:$0xff] %v4022
    %4115 = vst [vmem:[%s4061] ss:$9 sm:$0xff] %v4023
    %4117 = vst [vmem:[%s4064] ss:$9 sm:$0xff] %v4024
    %4119 = vst [vmem:[%s4067] ss:$9 sm:$0xff] %v4025
    %v4120 = vld [vmem:[#allocation1] sm:$0xff]
    %4122 = vst [vmem:[#allocation1] ss:$9 sm:$0xff] %v4026
    %4124 = vst [vmem:[%s4049] ss:$9 sm:$0xff] %v4027
    %4126 = vst [vmem:[%s4052] ss:$9 sm:$0xff] %v4028
    %4128 = vst [vmem:[%s4055] ss:$9 sm:$0xff] %v4029
    %4130 = vst [vmem:[%s4058] ss:$9 sm:$0xff] %v4030
    %4132 = vst [vmem:[%s4061] ss:$9 sm:$0xff] %v4031
    %4134 = vst [vmem:[%s4064] ss:$9 sm:$0xff] %v4032
    %4136 = vst [vmem:[%s4067] ss:$9 sm:$0xff] %v4033
    %v4137 = vld [vmem:[#allocation1] sm:$0xff]
    %4139 = vst [vmem:[#allocation1] ss:$9 sm:$0xff] %v4034
    %4141 = vst [vmem:[%s4049] ss:$9 sm:$0xff] %v4035
    %4143 = vst [vmem:[%s4052] ss:$9 sm:$0xff] %v4036
    %4145 = vst [vmem:[%s4055] ss:$9 sm:$0xff] %v4037
    %4147 = vst [vmem:[%s4058] ss:$9 sm:$0xff] %v4038
    %4149 = vst [vmem:[%s4061] ss:$9 sm:$0xff] %v4039
    %4151 = vst [vmem:[%s4064] ss:$9 sm:$0xff] %v4040
    %4153 = vst [vmem:[%s4067] ss:$9 sm:$0xff] %v4041
    %v4154 = vld [vmem:[#allocation1] sm:$0xff]
    %4156 = vst [vmem:[#allocation1] ss:$9 sm:$0xff] %v4042
    %4158 = vst [vmem:[%s4049] ss:$9 sm:$0xff] %v4043
    %4160 = vst [vmem:[%s4052] ss:$9 sm:$0xff] %v4044
    %4162 = vst [vmem:[%s4055] ss:$9 sm:$0xff] %v4045
    %v4163 = vld [vmem:[#allocation1] sm:$0xff]
    %v4187 = vunpack.c.l.b16 %v3818
    %v4188 = vunpack.c.l.b16 %v3819
    %v4189 = vunpack.c.l.b16 %v3820
    %v4190 = vunpack.c.l.b16 %v3821
    %v4191 = vunpack.c.l.b16 %v3822
    %v4192 = vunpack.c.l.b16 %v3823
    %v4193 = vunpack.c.l.b16 %v3824
    %v4194 = vunpack.c.l.b16 %v3825
    %v4195 = vunpack.c.l.b16 %v3826
    %v4196 = vunpack.c.l.b16 %v3827
    %v4197 = vunpack.c.l.b16 %v3828
    %v4198 = vunpack.c.l.b16 %v3829
    %v4199 = vunpack.c.l.b16 %v3830
    %v4200 = vunpack.c.l.b16 %v3831
    %v4201 = vunpack.c.l.b16 %v3832
    %v4202 = vunpack.c.l.b16 %v3833
    %v4203 = vpack.c.b16 %v4188, %v4187
    %v4204 = vpack.c.b16 %v4190, %v4189
    %v4205 = vpack.c.b16 %v4192, %v4191
    %v4206 = vpack.c.b16 %v4194, %v4193
    %v4207 = vpack.c.b16 %v4196, %v4195
    %v4208 = vpack.c.b16 %v4198, %v4197
    %v4209 = vpack.c.b16 %v4200, %v4199
    %v4210 = vpack.c.b16 %v4202, %v4201
    %4219 = vmatpush.bf16.msra.mxu0 %v4210
    %4220 = vmatpush.bf16.msra.mxu0 %v4209
    %4221 = vmatpush.bf16.msra.mxu0 %v4208
    %4222 = vmatpush.bf16.msra.mxu0 %v4207
    %4223 = vmatpush.bf16.msra.mxu0 %v4206
    %4224 = vmatpush.bf16.msra.mxu0 %v4205
    %4225 = vmatpush.bf16.msra.mxu0 %v4204
    %4226 = vmatpush.bf16.msra.mxu0 %v4203
    %4227 = vmatmul.bf16.gmra.mxu0 %v4069
    %v4228 = vpop.f32.mrf.mxu0
    %v4229 = vadd.f32 0.0, %v4228
    %v4230 = vpop.f32.mrf.mxu0
    %v4231 = vadd.f32 0.0, %v4230
    %4232 = vmatmul.bf16.gmra.mxu0 %v4086
    %v4233 = vpop.f32.mrf.mxu0
    %v4234 = vadd.f32 0.0, %v4233
    %v4235 = vpop.f32.mrf.mxu0
    %v4236 = vadd.f32 0.0, %v4235
    %4237 = vmatmul.bf16.gmra.mxu0 %v4103
    %v4238 = vpop.f32.mrf.mxu0
    %v4239 = vadd.f32 0.0, %v4238
    %v4240 = vpop.f32.mrf.mxu0
    %v4241 = vadd.f32 0.0, %v4240
    %4242 = vmatmul.bf16.gmra.mxu0 %v4120
    %v4243 = vpop.f32.mrf.mxu0
    %v4244 = vadd.f32 0.0, %v4243
    %v4245 = vpop.f32.mrf.mxu0
    %v4246 = vadd.f32 0.0, %v4245
    %4247 = vmatmul.bf16.gmra.mxu0 %v4137
    %v4248 = vpop.f32.mrf.mxu0
    %v4249 = vadd.f32 0.0, %v4248
    %v4250 = vpop.f32.mrf.mxu0
    %v4251 = vadd.f32 0.0, %v4250
    %4252 = vmatmul.bf16.gmra.mxu0 %v4154
    %v4253 = vpop.f32.mrf.mxu0
    %v4254 = vadd.f32 0.0, %v4253
    %v4255 = vpop.f32.mrf.mxu0
    %v4256 = vadd.f32 0.0, %v4255
    %4257 = vmatmul.bf16.gmra.mxu0 %v4163
    %v4258 = vpop.f32.mrf.mxu0
    %v4259 = vadd.f32 0.0, %v4258
    %v4260 = vpop.f32.mrf.mxu0
    %4261 = vdwg.mxu0
    %v4275 = vrot.slane %v4229, 1
    %v4276 = vrot.slane %v4229, 2
    %v4277 = vrot.slane %v4229, 3
    %v4278 = vrot.slane %v4229, 4
    %v4279 = vrot.slane %v4229, 5
    %v4280 = vrot.slane %v4229, 6
    %v4281 = vrot.slane %v4229, 7
    %v4282 = vrot.slane %v4231, 1
    %v4283 = vrot.slane %v4231, 2
    %v4284 = vrot.slane %v4231, 3
    %v4285 = vrot.slane %v4231, 4
    %v4286 = vrot.slane %v4231, 5
    %v4287 = vrot.slane %v4231, 6
    %v4288 = vrot.slane %v4231, 7
    %v4289 = vrot.slane %v4234, 1
    %v4290 = vrot.slane %v4234, 2
    %v4291 = vrot.slane %v4234, 3
    %v4292 = vrot.slane %v4234, 4
    %v4293 = vrot.slane %v4234, 5
    %v4294 = vrot.slane %v4234, 6
    %v4295 = vrot.slane %v4234, 7
    %v4296 = vrot.slane %v4236, 1
    %v4297 = vrot.slane %v4236, 2
    %v4298 = vrot.slane %v4236, 3
    %v4299 = vrot.slane %v4236, 4
    %v4300 = vrot.slane %v4236, 5
    %v4301 = vrot.slane %v4236, 6
    %v4302 = vrot.slane %v4236, 7
    %v4303 = vrot.slane %v4239, 1
    %v4304 = vrot.slane %v4239, 2
    %v4305 = vrot.slane %v4239, 3
    %v4306 = vrot.slane %v4239, 4
    %v4307 = vrot.slane %v4239, 5
    %v4308 = vrot.slane %v4239, 6
    %v4309 = vrot.slane %v4239, 7
    %v4310 = vrot.slane %v4241, 1
    %v4311 = vrot.slane %v4241, 2
    %v4312 = vrot.slane %v4241, 3
    %v4313 = vrot.slane %v4241, 4
    %v4314 = vrot.slane %v4241, 5
    %v4315 = vrot.slane %v4241, 6
    %v4316 = vrot.slane %v4241, 7
    %v4317 = vrot.slane %v4244, 1
    %v4318 = vrot.slane %v4244, 2
    %v4319 = vrot.slane %v4244, 3
    %v4320 = vrot.slane %v4244, 4
    %v4321 = vrot.slane %v4244, 5
    %v4322 = vrot.slane %v4244, 6
    %v4323 = vrot.slane %v4244, 7
    %v4324 = vrot.slane %v4246, 1
    %v4325 = vrot.slane %v4246, 2
    %v4326 = vrot.slane %v4246, 3
    %v4327 = vrot.slane %v4246, 4
    %v4328 = vrot.slane %v4246, 5
    %v4329 = vrot.slane %v4246, 6
    %v4330 = vrot.slane %v4246, 7
    %v4331 = vrot.slane %v4249, 1
    %v4332 = vrot.slane %v4249, 2
    %v4333 = vrot.slane %v4249, 3
    %v4334 = vrot.slane %v4249, 4
    %v4335 = vrot.slane %v4249, 5
    %v4336 = vrot.slane %v4249, 6
    %v4337 = vrot.slane %v4249, 7
    %v4338 = vrot.slane %v4251, 1
    %v4339 = vrot.slane %v4251, 2
    %v4340 = vrot.slane %v4251, 3
    %v4341 = vrot.slane %v4251, 4
    %v4342 = vrot.slane %v4251, 5
    %v4343 = vrot.slane %v4251, 6
    %v4344 = vrot.slane %v4251, 7
    %v4345 = vrot.slane %v4254, 1
    %v4346 = vrot.slane %v4254, 2
    %v4347 = vrot.slane %v4254, 3
    %v4348 = vrot.slane %v4254, 4
    %v4349 = vrot.slane %v4254, 5
    %v4350 = vrot.slane %v4254, 6
    %v4351 = vrot.slane %v4254, 7
    %v4352 = vrot.slane %v4256, 1
    %v4353 = vrot.slane %v4256, 2
    %v4354 = vrot.slane %v4256, 3
    %v4355 = vrot.slane %v4256, 4
    %v4356 = vrot.slane %v4256, 5
    %v4357 = vrot.slane %v4256, 6
    %v4358 = vrot.slane %v4256, 7
    %v4359 = vrot.slane %v4259, 1
    %v4360 = vrot.slane %v4259, 2
    %v4361 = vrot.slane %v4259, 3
    %v4362 = vrot.slane %v4259, 4
    %v4363 = vrot.slane %v4259, 5
    %v4364 = vrot.slane %v4259, 6
    %v4365 = vrot.slane %v4259, 7
    %v4465 = vrot.slane %v3803, 1
    %v4466 = vrot.slane %v3803, 2
    %v4467 = vrot.slane %v3803, 3
    %v4468 = vrot.slane %v3803, 4
    %v4469 = vrot.slane %v3803, 5
    %v4470 = vrot.slane %v3803, 6
    %v4471 = vrot.slane %v3805, 1
    %v4472 = vrot.slane %v3805, 2
    %v4473 = vrot.slane %v3805, 3
    %v4474 = vrot.slane %v3805, 4
    %v4475 = vrot.slane %v3805, 5
    %v4476 = vrot.slane %v3805, 6
    %v4477 = vrot.slane %v3807, 1
    %v4478 = vrot.slane %v3807, 2
    %v4479 = vrot.slane %v3807, 3
    %v4480 = vrot.slane %v3807, 4
    %v4481 = vrot.slane %v3807, 5
    %v4482 = vrot.slane %v3807, 6
    %v4483 = vrot.slane %v3809, 1
    %v4484 = vrot.slane %v3809, 2
    %v4485 = vrot.slane %v3809, 3
    %v4486 = vrot.slane %v3809, 4
    %v4487 = vrot.slane %v3809, 5
    %v4488 = vrot.slane %v3809, 6
    %v4489 = vrot.slane %v3811, 1
    %v4490 = vrot.slane %v3811, 2
    %v4491 = vrot.slane %v3811, 3
    %v4492 = vrot.slane %v3811, 4
    %v4493 = vrot.slane %v3811, 5
    %v4494 = vrot.slane %v3811, 6
    %v4495 = vrot.slane %v3813, 1
    %v4496 = vrot.slane %v3813, 2
    %v4497 = vrot.slane %v3813, 3
    %v4498 = vrot.slane %v3813, 4
    %v4499 = vrot.slane %v3813, 5
    %v4500 = vrot.slane %v3813, 6
    %v4501 = vrot.slane %v3815, 1
    %v4502 = vrot.slane %v3815, 2
    %v4503 = vrot.slane %v3815, 3
    %v4504 = vrot.slane %v3815, 4
    %v4505 = vrot.slane %v3815, 5
    %v4506 = vrot.slane %v3815, 6
    %v4507 = vrot.slane %v3817, 1
    %v4508 = vrot.slane %v3817, 2
    %v4509 = vrot.slane %v3817, 3
    %v4510 = vrot.slane %v3817, 4
    %v4511 = vrot.slane %v3817, 5
    %v4512 = vrot.slane %v3817, 6
    %v4513 = vunpack.i.l.s16 %v3803
    %v4514 = vunpack.i.h.s16 %v3803
    %v4515 = vunpack.i.l.s16 %v4465
    %v4516 = vunpack.i.h.s16 %v4465
    %v4517 = vunpack.i.l.s16 %v4466
    %v4518 = vunpack.i.h.s16 %v4466
    %v4519 = vunpack.i.l.s16 %v4467
    %v4520 = vunpack.i.h.s16 %v4467
    %v4521 = vunpack.i.l.s16 %v4468
    %v4522 = vunpack.i.h.s16 %v4468
    %v4523 = vunpack.i.l.s16 %v4469
    %v4524 = vunpack.i.h.s16 %v4469
    %v4525 = vunpack.i.l.s16 %v4470
    %v4526 = vunpack.i.l.s16 %v3805
    %v4527 = vunpack.i.h.s16 %v3805
    %v4528 = vunpack.i.l.s16 %v4471
    %v4529 = vunpack.i.h.s16 %v4471
    %v4530 = vunpack.i.l.s16 %v4472
    %v4531 = vunpack.i.h.s16 %v4472
    %v4532 = vunpack.i.l.s16 %v4473
    %v4533 = vunpack.i.h.s16 %v4473
    %v4534 = vunpack.i.l.s16 %v4474
    %v4535 = vunpack.i.h.s16 %v4474
    %v4536 = vunpack.i.l.s16 %v4475
    %v4537 = vunpack.i.h.s16 %v4475
    %v4538 = vunpack.i.l.s16 %v4476
    %v4539 = vunpack.i.l.s16 %v3807
    %v4540 = vunpack.i.h.s16 %v3807
    %v4541 = vunpack.i.l.s16 %v4477
    %v4542 = vunpack.i.h.s16 %v4477
    %v4543 = vunpack.i.l.s16 %v4478
    %v4544 = vunpack.i.h.s16 %v4478
    %v4545 = vunpack.i.l.s16 %v4479
    %v4546 = vunpack.i.h.s16 %v4479
    %v4547 = vunpack.i.l.s16 %v4480
    %v4548 = vunpack.i.h.s16 %v4480
    %v4549 = vunpack.i.l.s16 %v4481
    %v4550 = vunpack.i.h.s16 %v4481
    %v4551 = vunpack.i.l.s16 %v4482
    %v4552 = vunpack.i.l.s16 %v3809
    %v4553 = vunpack.i.h.s16 %v3809
    %v4554 = vunpack.i.l.s16 %v4483
    %v4555 = vunpack.i.h.s16 %v4483
    %v4556 = vunpack.i.l.s16 %v4484
    %v4557 = vunpack.i.h.s16 %v4484
    %v4558 = vunpack.i.l.s16 %v4485
    %v4559 = vunpack.i.h.s16 %v4485
    %v4560 = vunpack.i.l.s16 %v4486
    %v4561 = vunpack.i.h.s16 %v4486
    %v4562 = vunpack.i.l.s16 %v4487
    %v4563 = vunpack.i.h.s16 %v4487
    %v4564 = vunpack.i.l.s16 %v4488
    %v4565 = vunpack.i.l.s16 %v3811
    %v4566 = vunpack.i.h.s16 %v3811
    %v4567 = vunpack.i.l.s16 %v4489
    %v4568 = vunpack.i.h.s16 %v4489
    %v4569 = vunpack.i.l.s16 %v4490
    %v4570 = vunpack.i.h.s16 %v4490
    %v4571 = vunpack.i.l.s16 %v4491
    %v4572 = vunpack.i.h.s16 %v4491
    %v4573 = vunpack.i.l.s16 %v4492
    %v4574 = vunpack.i.h.s16 %v4492
    %v4575 = vunpack.i.l.s16 %v4493
    %v4576 = vunpack.i.h.s16 %v4493
    %v4577 = vunpack.i.l.s16 %v4494
    %v4578 = vunpack.i.l.s16 %v3813
    %v4579 = vunpack.i.h.s16 %v3813
    %v4580 = vunpack.i.l.s16 %v4495
    %v4581 = vunpack.i.h.s16 %v4495
    %v4582 = vunpack.i.l.s16 %v4496
    %v4583 = vunpack.i.h.s16 %v4496
    %v4584 = vunpack.i.l.s16 %v4497
    %v4585 = vunpack.i.h.s16 %v4497
    %v4586 = vunpack.i.l.s16 %v4498
    %v4587 = vunpack.i.h.s16 %v4498
    %v4588 = vunpack.i.l.s16 %v4499
    %v4589 = vunpack.i.h.s16 %v4499
    %v4590 = vunpack.i.l.s16 %v4500
    %v4591 = vunpack.i.l.s16 %v3815
    %v4592 = vunpack.i.h.s16 %v3815
    %v4593 = vunpack.i.l.s16 %v4501
    %v4594 = vunpack.i.h.s16 %v4501
    %v4595 = vunpack.i.l.s16 %v4502
    %v4596 = vunpack.i.h.s16 %v4502
    %v4597 = vunpack.i.l.s16 %v4503
    %v4598 = vunpack.i.h.s16 %v4503
    %v4599 = vunpack.i.l.s16 %v4504
    %v4600 = vunpack.i.h.s16 %v4504
    %v4601 = vunpack.i.l.s16 %v4505
    %v4602 = vunpack.i.h.s16 %v4505
    %v4603 = vunpack.i.l.s16 %v4506
    %v4604 = vunpack.i.l.s16 %v3817
    %v4605 = vunpack.i.h.s16 %v3817
    %v4606 = vunpack.i.l.s16 %v4507
    %v4607 = vunpack.i.h.s16 %v4507
    %v4608 = vunpack.i.l.s16 %v4508
    %v4609 = vunpack.i.h.s16 %v4508
    %v4610 = vunpack.i.l.s16 %v4509
    %v4611 = vunpack.i.h.s16 %v4509
    %v4612 = vunpack.i.l.s16 %v4510
    %v4613 = vunpack.i.h.s16 %v4510
    %v4614 = vunpack.i.l.s16 %v4511
    %v4615 = vunpack.i.h.s16 %v4511
    %v4616 = vunpack.i.l.s16 %v4512
    %v4617 = vpack.i.b16 %v4514, %v4513
    %v4618 = vpack.i.b16 %v4516, %v4515
    %v4619 = vpack.i.b16 %v4518, %v4517
    %v4620 = vpack.i.b16 %v4520, %v4519
    %v4621 = vpack.i.b16 %v4522, %v4521
    %v4622 = vpack.i.b16 %v4524, %v4523
    %v4623 = vpack.i.b16 %v4526, %v4525
    %v4624 = vpack.i.b16 %v4528, %v4527
    %v4625 = vpack.i.b16 %v4530, %v4529
    %v4626 = vpack.i.b16 %v4532, %v4531
    %v4627 = vpack.i.b16 %v4534, %v4533
    %v4628 = vpack.i.b16 %v4536, %v4535
    %v4629 = vpack.i.b16 %v4538, %v4537
    %v4630 = vpack.i.b16 %v4540, %v4539
    %v4631 = vpack.i.b16 %v4542, %v4541
    %v4632 = vpack.i.b16 %v4544, %v4543
    %v4633 = vpack.i.b16 %v4546, %v4545
    %v4634 = vpack.i.b16 %v4548, %v4547
    %v4635 = vpack.i.b16 %v4550, %v4549
    %v4636 = vpack.i.b16 %v4552, %v4551
    %v4637 = vpack.i.b16 %v4554, %v4553
    %v4638 = vpack.i.b16 %v4556, %v4555
    %v4639 = vpack.i.b16 %v4558, %v4557
    %v4640 = vpack.i.b16 %v4560, %v4559
    %v4641 = vpack.i.b16 %v4562, %v4561
    %v4642 = vpack.i.b16 %v4564, %v4563
    %v4643 = vpack.i.b16 %v4566, %v4565
    %v4644 = vpack.i.b16 %v4568, %v4567
    %v4645 = vpack.i.b16 %v4570, %v4569
    %v4646 = vpack.i.b16 %v4572, %v4571
    %v4647 = vpack.i.b16 %v4574, %v4573
    %v4648 = vpack.i.b16 %v4576, %v4575
    %v4649 = vpack.i.b16 %v4578, %v4577
    %v4650 = vpack.i.b16 %v4580, %v4579
    %v4651 = vpack.i.b16 %v4582, %v4581
    %v4652 = vpack.i.b16 %v4584, %v4583
    %v4653 = vpack.i.b16 %v4586, %v4585
    %v4654 = vpack.i.b16 %v4588, %v4587
    %v4655 = vpack.i.b16 %v4590, %v4589
    %v4656 = vpack.i.b16 %v4592, %v4591
    %v4657 = vpack.i.b16 %v4594, %v4593
    %v4658 = vpack.i.b16 %v4596, %v4595
    %v4659 = vpack.i.b16 %v4598, %v4597
    %v4660 = vpack.i.b16 %v4600, %v4599
    %v4661 = vpack.i.b16 %v4602, %v4601
    %v4662 = vpack.i.b16 %v4604, %v4603
    %v4663 = vpack.i.b16 %v4606, %v4605
    %v4664 = vpack.i.b16 %v4608, %v4607
    %v4665 = vpack.i.b16 %v4610, %v4609
    %v4666 = vpack.i.b16 %v4612, %v4611
    %v4667 = vpack.i.b16 %v4614, %v4613
    %v4668 = vpack.i.b16 %v4616, %v4615
    %4670 = vst [vmem:[#allocation1] ss:$9 sm:$0xff] %v4617
    %s4672 = scalar_lea.vmem [#allocation1], 1
    %4673 = vst [vmem:[%s4672] ss:$9 sm:$0xff] %v4618
    %s4675 = scalar_lea.vmem [#allocation1], 2
    %4676 = vst [vmem:[%s4675] ss:$9 sm:$0xff] %v4619
    %s4678 = scalar_lea.vmem [#allocation1], 3
    %4679 = vst [vmem:[%s4678] ss:$9 sm:$0xff] %v4620
    %s4681 = scalar_lea.vmem [#allocation1], 4
    %4682 = vst [vmem:[%s4681] ss:$9 sm:$0xff] %v4621
    %s4684 = scalar_lea.vmem [#allocation1], 5
    %4685 = vst [vmem:[%s4684] ss:$9 sm:$0xff] %v4622
    %s4687 = scalar_lea.vmem [#allocation1], 6
    %4688 = vst [vmem:[%s4687] ss:$9 sm:$0xff] %v4623
    %s4690 = scalar_lea.vmem [#allocation1], 7
    %4691 = vst [vmem:[%s4690] ss:$9 sm:$0xff] %v4624
    %v4692 = vld [vmem:[#allocation1] sm:$0xff]
    %4694 = vst [vmem:[#allocation1] ss:$9 sm:$0xff] %v4625
    %4696 = vst [vmem:[%s4672] ss:$9 sm:$0xff] %v4626
    %4698 = vst [vmem:[%s4675] ss:$9 sm:$0xff] %v4627
    %4700 = vst [vmem:[%s4678] ss:$9 sm:$0xff] %v4628
    %4702 = vst [vmem:[%s4681] ss:$9 sm:$0xff] %v4629
    %4704 = vst [vmem:[%s4684] ss:$9 sm:$0xff] %v4630
    %4706 = vst [vmem:[%s4687] ss:$9 sm:$0xff] %v4631
    %4708 = vst [vmem:[%s4690] ss:$9 sm:$0xff] %v4632
    %v4709 = vld [vmem:[#allocation1] sm:$0xff]
    %4711 = vst [vmem:[#allocation1] ss:$9 sm:$0xff] %v4633
    %4713 = vst [vmem:[%s4672] ss:$9 sm:$0xff] %v4634
    %4715 = vst [vmem:[%s4675] ss:$9 sm:$0xff] %v4635
    %4717 = vst [vmem:[%s4678] ss:$9 sm:$0xff] %v4636
    %4719 = vst [vmem:[%s4681] ss:$9 sm:$0xff] %v4637
    %4721 = vst [vmem:[%s4684] ss:$9 sm:$0xff] %v4638
    %4723 = vst [vmem:[%s4687] ss:$9 sm:$0xff] %v4639
    %4725 = vst [vmem:[%s4690] ss:$9 sm:$0xff] %v4640
    %v4726 = vld [vmem:[#allocation1] sm:$0xff]
    %4728 = vst [vmem:[#allocation1] ss:$9 sm:$0xff] %v4641
    %4730 = vst [vmem:[%s4672] ss:$9 sm:$0xff] %v4642
    %4732 = vst [vmem:[%s4675] ss:$9 sm:$0xff] %v4643
    %4734 = vst [vmem:[%s4678] ss:$9 sm:$0xff] %v4644
    %4736 = vst [vmem:[%s4681] ss:$9 sm:$0xff] %v4645
    %4738 = vst [vmem:[%s4684] ss:$9 sm:$0xff] %v4646
    %4740 = vst [vmem:[%s4687] ss:$9 sm:$0xff] %v4647
    %4742 = vst [vmem:[%s4690] ss:$9 sm:$0xff] %v4648
    %v4743 = vld [vmem:[#allocation1] sm:$0xff]
    %4745 = vst [vmem:[#allocation1] ss:$9 sm:$0xff] %v4649
    %4747 = vst [vmem:[%s4672] ss:$9 sm:$0xff] %v4650
    %4749 = vst [vmem:[%s4675] ss:$9 sm:$0xff] %v4651
    %4751 = vst [vmem:[%s4678] ss:$9 sm:$0xff] %v4652
    %4753 = vst [vmem:[%s4681] ss:$9 sm:$0xff] %v4653
    %4755 = vst [vmem:[%s4684] ss:$9 sm:$0xff] %v4654
    %4757 = vst [vmem:[%s4687] ss:$9 sm:$0xff] %v4655
    %4759 = vst [vmem:[%s4690] ss:$9 sm:$0xff] %v4656
    %v4760 = vld [vmem:[#allocation1] sm:$0xff]
    %4762 = vst [vmem:[#allocation1] ss:$9 sm:$0xff] %v4657
    %4764 = vst [vmem:[%s4672] ss:$9 sm:$0xff] %v4658
    %4766 = vst [vmem:[%s4675] ss:$9 sm:$0xff] %v4659
    %4768 = vst [vmem:[%s4678] ss:$9 sm:$0xff] %v4660
    %4770 = vst [vmem:[%s4681] ss:$9 sm:$0xff] %v4661
    %4772 = vst [vmem:[%s4684] ss:$9 sm:$0xff] %v4662
    %4774 = vst [vmem:[%s4687] ss:$9 sm:$0xff] %v4663
    %4776 = vst [vmem:[%s4690] ss:$9 sm:$0xff] %v4664
    %v4777 = vld [vmem:[#allocation1] sm:$0xff]
    %4779 = vst [vmem:[#allocation1] ss:$9 sm:$0xff] %v4665
    %4781 = vst [vmem:[%s4672] ss:$9 sm:$0xff] %v4666
    %4783 = vst [vmem:[%s4675] ss:$9 sm:$0xff] %v4667
    %4785 = vst [vmem:[%s4678] ss:$9 sm:$0xff] %v4668
    %v4786 = vld [vmem:[#allocation1] sm:$0xff]
    %4794 = vmatpush.bf16.msra.mxu0 %v4210
    %4795 = vmatpush.bf16.msra.mxu0 %v4209
    %4796 = vmatpush.bf16.msra.mxu0 %v4208
    %4797 = vmatpush.bf16.msra.mxu0 %v4207
    %4798 = vmatpush.bf16.msra.mxu0 %v4206
    %4799 = vmatpush.bf16.msra.mxu0 %v4205
    %4800 = vmatpush.bf16.msra.mxu0 %v4204
    %4801 = vmatpush.bf16.msra.mxu0 %v4203
    %4802 = vmatmul.bf16.gmra.mxu0 %v4692
    %v4803 = vpop.f32.mrf.mxu0
    %v4804 = vadd.f32 0.0, %v4803
    %v4805 = vpop.f32.mrf.mxu0
    %v4806 = vadd.f32 0.0, %v4805
    %4807 = vmatmul.bf16.gmra.mxu0 %v4709
    %v4808 = vpop.f32.mrf.mxu0
    %v4809 = vadd.f32 0.0, %v4808
    %v4810 = vpop.f32.mrf.mxu0
    %v4811 = vadd.f32 0.0, %v4810
    %4812 = vmatmul.bf16.gmra.mxu0 %v4726
    %v4813 = vpop.f32.mrf.mxu0
    %v4814 = vadd.f32 0.0, %v4813
    %v4815 = vpop.f32.mrf.mxu0
    %v4816 = vadd.f32 0.0, %v4815
    %4817 = vmatmul.bf16.gmra.mxu0 %v4743
    %v4818 = vpop.f32.mrf.mxu0
    %v4819 = vadd.f32 0.0, %v4818
    %v4820 = vpop.f32.mrf.mxu0
    %v4821 = vadd.f32 0.0, %v4820
    %4822 = vmatmul.bf16.gmra.mxu0 %v4760
    %v4823 = vpop.f32.mrf.mxu0
    %v4824 = vadd.f32 0.0, %v4823
    %v4825 = vpop.f32.mrf.mxu0
    %v4826 = vadd.f32 0.0, %v4825
    %4827 = vmatmul.bf16.gmra.mxu0 %v4777
    %v4828 = vpop.f32.mrf.mxu0
    %v4829 = vadd.f32 0.0, %v4828
    %v4830 = vpop.f32.mrf.mxu0
    %v4831 = vadd.f32 0.0, %v4830
    %4832 = vmatmul.bf16.gmra.mxu0 %v4786
    %v4833 = vpop.f32.mrf.mxu0
    %v4834 = vadd.f32 0.0, %v4833
    %v4835 = vpop.f32.mrf.mxu0
    %4836 = vdwg.mxu0
    %v4850 = vrot.slane %v4804, 1
    %v4851 = vrot.slane %v4804, 2
    %v4852 = vrot.slane %v4804, 3
    %v4853 = vrot.slane %v4804, 4
    %v4854 = vrot.slane %v4804, 5
    %v4855 = vrot.slane %v4804, 6
    %v4856 = vrot.slane %v4804, 7
    %v4857 = vrot.slane %v4806, 1
    %v4858 = vrot.slane %v4806, 2
    %v4859 = vrot.slane %v4806, 3
    %v4860 = vrot.slane %v4806, 4
    %v4861 = vrot.slane %v4806, 5
    %v4862 = vrot.slane %v4806, 6
    %v4863 = vrot.slane %v4806, 7
    %v4864 = vrot.slane %v4809, 1
    %v4865 = vrot.slane %v4809, 2
    %v4866 = vrot.slane %v4809, 3
    %v4867 = vrot.slane %v4809, 4
    %v4868 = vrot.slane %v4809, 5
    %v4869 = vrot.slane %v4809, 6
    %v4870 = vrot.slane %v4809, 7
    %v4871 = vrot.slane %v4811, 1
    %v4872 = vrot.slane %v4811, 2
    %v4873 = vrot.slane %v4811, 3
    %v4874 = vrot.slane %v4811, 4
    %v4875 = vrot.slane %v4811, 5
    %v4876 = vrot.slane %v4811, 6
    %v4877 = vrot.slane %v4811, 7
    %v4878 = vrot.slane %v4814, 1
    %v4879 = vrot.slane %v4814, 2
    %v4880 = vrot.slane %v4814, 3
    %v4881 = vrot.slane %v4814, 4
    %v4882 = vrot.slane %v4814, 5
    %v4883 = vrot.slane %v4814, 6
    %v4884 = vrot.slane %v4814, 7
    %v4885 = vrot.slane %v4816, 1
    %v4886 = vrot.slane %v4816, 2
    %v4887 = vrot.slane %v4816, 3
    %v4888 = vrot.slane %v4816, 4
    %v4889 = vrot.slane %v4816, 5
    %v4890 = vrot.slane %v4816, 6
    %v4891 = vrot.slane %v4816, 7
    %v4892 = vrot.slane %v4819, 1
    %v4893 = vrot.slane %v4819, 2
    %v4894 = vrot.slane %v4819, 3
    %v4895 = vrot.slane %v4819, 4
    %v4896 = vrot.slane %v4819, 5
    %v4897 = vrot.slane %v4819, 6
    %v4898 = vrot.slane %v4819, 7
    %v4899 = vrot.slane %v4821, 1
    %v4900 = vrot.slane %v4821, 2
    %v4901 = vrot.slane %v4821, 3
    %v4902 = vrot.slane %v4821, 4
    %v4903 = vrot.slane %v4821, 5
    %v4904 = vrot.slane %v4821, 6
    %v4905 = vrot.slane %v4821, 7
    %v4906 = vrot.slane %v4824, 1
    %v4907 = vrot.slane %v4824, 2
    %v4908 = vrot.slane %v4824, 3
    %v4909 = vrot.slane %v4824, 4
    %v4910 = vrot.slane %v4824, 5
    %v4911 = vrot.slane %v4824, 6
    %v4912 = vrot.slane %v4824, 7
    %v4913 = vrot.slane %v4826, 1
    %v4914 = vrot.slane %v4826, 2
    %v4915 = vrot.slane %v4826, 3
    %v4916 = vrot.slane %v4826, 4
    %v4917 = vrot.slane %v4826, 5
    %v4918 = vrot.slane %v4826, 6
    %v4919 = vrot.slane %v4826, 7
    %v4920 = vrot.slane %v4829, 1
    %v4921 = vrot.slane %v4829, 2
    %v4922 = vrot.slane %v4829, 3
    %v4923 = vrot.slane %v4829, 4
    %v4924 = vrot.slane %v4829, 5
    %v4925 = vrot.slane %v4829, 6
    %v4926 = vrot.slane %v4829, 7
    %v4927 = vrot.slane %v4831, 1
    %v4928 = vrot.slane %v4831, 2
    %v4929 = vrot.slane %v4831, 3
    %v4930 = vrot.slane %v4831, 4
    %v4931 = vrot.slane %v4831, 5
    %v4932 = vrot.slane %v4831, 6
    %v4933 = vrot.slane %v4831, 7
    %v4934 = vrot.slane %v4834, 1
    %v4935 = vrot.slane %v4834, 2
    %v4936 = vrot.slane %v4834, 3
    %v4937 = vrot.slane %v4834, 4
    %v4938 = vrot.slane %v4834, 5
    %v4939 = vrot.slane %v4834, 6
    %v4940 = vrot.slane %v4834, 7
    %v5032 = vmax.f32 %v4229, %v4804
    %v5033 = vmax.f32 %v4275, %v4850
    %v5034 = vmax.f32 %v4276, %v4851
    %v5035 = vmax.f32 %v4277, %v4852
    %v5036 = vmax.f32 %v4278, %v4853
    %v5037 = vmax.f32 %v4279, %v4854
    %v5038 = vmax.f32 %v4280, %v4855
    %v5039 = vmax.f32 %v4281, %v4856
    %v5040 = vmax.f32 %v4231, %v4806
    %v5041 = vmax.f32 %v4282, %v4857
    %v5042 = vmax.f32 %v4283, %v4858
    %v5043 = vmax.f32 %v4284, %v4859
    %v5044 = vmax.f32 %v4285, %v4860
    %v5045 = vmax.f32 %v4286, %v4861
    %v5046 = vmax.f32 %v4287, %v4862
    %v5047 = vmax.f32 %v4288, %v4863
    %v5048 = vmax.f32 %v4234, %v4809
    %v5049 = vmax.f32 %v4289, %v4864
    %v5050 = vmax.f32 %v4290, %v4865
    %v5051 = vmax.f32 %v4291, %v4866
    %v5052 = vmax.f32 %v4292, %v4867
    %v5053 = vmax.f32 %v4293, %v4868
    %v5054 = vmax.f32 %v4294, %v4869
    %v5055 = vmax.f32 %v4295, %v4870
    %v5056 = vmax.f32 %v4236, %v4811
    %v5057 = vmax.f32 %v4296, %v4871
    %v5058 = vmax.f32 %v4297, %v4872
    %v5059 = vmax.f32 %v4298, %v4873
    %v5060 = vmax.f32 %v4299, %v4874
    %v5061 = vmax.f32 %v4300, %v4875
    %v5062 = vmax.f32 %v4301, %v4876
    %v5063 = vmax.f32 %v4302, %v4877
    %v5064 = vmax.f32 %v4239, %v4814
    %v5065 = vmax.f32 %v4303, %v4878
    %v5066 = vmax.f32 %v4304, %v4879
    %v5067 = vmax.f32 %v4305, %v4880
    %v5068 = vmax.f32 %v4306, %v4881
    %v5069 = vmax.f32 %v4307, %v4882
    %v5070 = vmax.f32 %v4308, %v4883
    %v5071 = vmax.f32 %v4309, %v4884
    %v5072 = vmax.f32 %v4241, %v4816
    %v5073 = vmax.f32 %v4310, %v4885
    %v5074 = vmax.f32 %v4311, %v4886
    %v5075 = vmax.f32 %v4312, %v4887
    %v5076 = vmax.f32 %v4313, %v4888
    %v5077 = vmax.f32 %v4314, %v4889
    %v5078 = vmax.f32 %v4315, %v4890
    %v5079 = vmax.f32 %v4316, %v4891
    %v5080 = vmax.f32 %v4244, %v4819
    %v5081 = vmax.f32 %v4317, %v4892
    %v5082 = vmax.f32 %v4318, %v4893
    %v5083 = vmax.f32 %v4319, %v4894
    %v5084 = vmax.f32 %v4320, %v4895
    %v5085 = vmax.f32 %v4321, %v4896
    %v5086 = vmax.f32 %v4322, %v4897
    %v5087 = vmax.f32 %v4323, %v4898
    %v5088 = vmax.f32 %v4246, %v4821
    %v5089 = vmax.f32 %v4324, %v4899
    %v5090 = vmax.f32 %v4325, %v4900
    %v5091 = vmax.f32 %v4326, %v4901
    %v5092 = vmax.f32 %v4327, %v4902
    %v5093 = vmax.f32 %v4328, %v4903
    %v5094 = vmax.f32 %v4329, %v4904
    %v5095 = vmax.f32 %v4330, %v4905
    %v5096 = vmax.f32 %v4249, %v4824
    %v5097 = vmax.f32 %v4331, %v4906
    %v5098 = vmax.f32 %v4332, %v4907
    %v5099 = vmax.f32 %v4333, %v4908
    %v5100 = vmax.f32 %v4334, %v4909
    %v5101 = vmax.f32 %v4335, %v4910
    %v5102 = vmax.f32 %v4336, %v4911
    %v5103 = vmax.f32 %v4337, %v4912
    %v5104 = vmax.f32 %v4251, %v4826
    %v5105 = vmax.f32 %v4338, %v4913
    %v5106 = vmax.f32 %v4339, %v4914
    %v5107 = vmax.f32 %v4340, %v4915
    %v5108 = vmax.f32 %v4341, %v4916
    %v5109 = vmax.f32 %v4342, %v4917
    %v5110 = vmax.f32 %v4343, %v4918
    %v5111 = vmax.f32 %v4344, %v4919
    %v5112 = vmax.f32 %v4254, %v4829
    %v5113 = vmax.f32 %v4345, %v4920
    %v5114 = vmax.f32 %v4346, %v4921
    %v5115 = vmax.f32 %v4347, %v4922
    %v5116 = vmax.f32 %v4348, %v4923
    %v5117 = vmax.f32 %v4349, %v4924
    %v5118 = vmax.f32 %v4350, %v4925
    %v5119 = vmax.f32 %v4351, %v4926
    %v5120 = vmax.f32 %v4256, %v4831
    %v5121 = vmax.f32 %v4352, %v4927
    %v5122 = vmax.f32 %v4353, %v4928
    %v5123 = vmax.f32 %v4354, %v4929
    %v5124 = vmax.f32 %v4355, %v4930
    %v5125 = vmax.f32 %v4356, %v4931
    %v5126 = vmax.f32 %v4357, %v4932
    %v5127 = vmax.f32 %v4358, %v4933
    %v5128 = vmax.f32 %v4259, %v4834
    %v5129 = vmax.f32 %v4359, %v4934
    %v5130 = vmax.f32 %v4360, %v4935
    %v5131 = vmax.f32 %v4361, %v4936
    %v5132 = vmax.f32 %v4362, %v4937
    %v5133 = vmax.f32 %v4363, %v4938
    %v5134 = vmax.f32 %v4364, %v4939
    %v5135 = vmax.f32 %v4365, %v4940
    %v5136 = vld [vmem:[%s4] sm:$0x1]
    %v5138 = vperm.slane %v5136, 0
    %v5140 = vrot.slane %v5138, 1
    %v5141 = vrot.slane %v5138, 2
    %v5142 = vrot.slane %v5138, 3
    %v5143 = vrot.slane %v5138, 4
    %v5144 = vrot.slane %v5138, 5
    %v5145 = vrot.slane %v5138, 6
    %v5146 = vrot.slane %v5138, 7
    %v5154 = vadd.f32 %v5032, %v5138
    %v5155 = vadd.f32 %v5033, %v5140
    %v5156 = vadd.f32 %v5034, %v5141
    %v5157 = vadd.f32 %v5035, %v5142
    %v5158 = vadd.f32 %v5036, %v5143
    %v5159 = vadd.f32 %v5037, %v5144
    %v5160 = vadd.f32 %v5038, %v5145
    %v5161 = vadd.f32 %v5039, %v5146
    %v5162 = vadd.f32 %v5040, %v5138
    %v5163 = vadd.f32 %v5041, %v5140
    %v5164 = vadd.f32 %v5042, %v5141
    %v5165 = vadd.f32 %v5043, %v5142
    %v5166 = vadd.f32 %v5044, %v5143
    %v5167 = vadd.f32 %v5045, %v5138
    %v5168 = vadd.f32 %v5046, %v5140
    %v5169 = vadd.f32 %v5047, %v5141
    %v5170 = vadd.f32 %v5048, %v5142
    %v5171 = vadd.f32 %v5049, %v5143
    %v5172 = vadd.f32 %v5050, %v5144
    %v5173 = vadd.f32 %v5051, %v5145
    %v5174 = vadd.f32 %v5052, %v5146
    %v5175 = vadd.f32 %v5053, %v5138
    %v5176 = vadd.f32 %v5054, %v5140
    %v5177 = vadd.f32 %v5055, %v5141
    %v5178 = vadd.f32 %v5056, %v5142
    %v5179 = vadd.f32 %v5057, %v5143
    %v5180 = vadd.f32 %v5058, %v5138
    %v5181 = vadd.f32 %v5059, %v5140
    %v5182 = vadd.f32 %v5060, %v5141
    %v5183 = vadd.f32 %v5061, %v5142
    %v5184 = vadd.f32 %v5062, %v5143
    %v5185 = vadd.f32 %v5063, %v5144
    %v5186 = vadd.f32 %v5064, %v5145
    %v5187 = vadd.f32 %v5065, %v5146
    %v5188 = vadd.f32 %v5066, %v5138
    %v5189 = vadd.f32 %v5067, %v5140
    %v5190 = vadd.f32 %v5068, %v5141
    %v5191 = vadd.f32 %v5069, %v5142
    %v5192 = vadd.f32 %v5070, %v5143
    %v5193 = vadd.f32 %v5071, %v5138
    %v5194 = vadd.f32 %v5072, %v5140
    %v5195 = vadd.f32 %v5073, %v5141
    %v5196 = vadd.f32 %v5074, %v5142
    %v5197 = vadd.f32 %v5075, %v5143
    %v5198 = vadd.f32 %v5076, %v5144
    %v5199 = vadd.f32 %v5077, %v5145
    %v5200 = vadd.f32 %v5078, %v5146
    %v5201 = vadd.f32 %v5079, %v5138
    %v5202 = vadd.f32 %v5080, %v5140
    %v5203 = vadd.f32 %v5081, %v5141
    %v5204 = vadd.f32 %v5082, %v5142
    %v5205 = vadd.f32 %v5083, %v5143
    %v5206 = vadd.f32 %v5084, %v5138
    %v5207 = vadd.f32 %v5085, %v5140
    %v5208 = vadd.f32 %v5086, %v5141
    %v5209 = vadd.f32 %v5087, %v5142
    %v5210 = vadd.f32 %v5088, %v5143
    %v5211 = vadd.f32 %v5089, %v5144
    %v5212 = vadd.f32 %v5090, %v5145
    %v5213 = vadd.f32 %v5091, %v5146
    %v5214 = vadd.f32 %v5092, %v5138
    %v5215 = vadd.f32 %v5093, %v5140
    %v5216 = vadd.f32 %v5094, %v5141
    %v5217 = vadd.f32 %v5095, %v5142
    %v5218 = vadd.f32 %v5096, %v5143
    %v5219 = vadd.f32 %v5097, %v5138
    %v5220 = vadd.f32 %v5098, %v5140
    %v5221 = vadd.f32 %v5099, %v5141
    %v5222 = vadd.f32 %v5100, %v5142
    %v5223 = vadd.f32 %v5101, %v5143
    %v5224 = vadd.f32 %v5102, %v5144
    %v5225 = vadd.f32 %v5103, %v5145
    %v5226 = vadd.f32 %v5104, %v5146
    %v5227 = vadd.f32 %v5105, %v5138
    %v5228 = vadd.f32 %v5106, %v5140
    %v5229 = vadd.f32 %v5107, %v5141
    %v5230 = vadd.f32 %v5108, %v5142
    %v5231 = vadd.f32 %v5109, %v5143
    %v5232 = vadd.f32 %v5110, %v5138
    %v5233 = vadd.f32 %v5111, %v5140
    %v5234 = vadd.f32 %v5112, %v5141
    %v5235 = vadd.f32 %v5113, %v5142
    %v5236 = vadd.f32 %v5114, %v5143
    %v5237 = vadd.f32 %v5115, %v5144
    %v5238 = vadd.f32 %v5116, %v5145
    %v5239 = vadd.f32 %v5117, %v5146
    %v5240 = vadd.f32 %v5118, %v5138
    %v5241 = vadd.f32 %v5119, %v5140
    %v5242 = vadd.f32 %v5120, %v5141
    %v5243 = vadd.f32 %v5121, %v5142
    %v5244 = vadd.f32 %v5122, %v5143
    %v5245 = vadd.f32 %v5123, %v5138
    %v5246 = vadd.f32 %v5124, %v5140
    %v5247 = vadd.f32 %v5125, %v5141
    %v5248 = vadd.f32 %v5126, %v5142
    %v5249 = vadd.f32 %v5127, %v5143
    %v5250 = vadd.f32 %v5128, %v5144
    %v5251 = vadd.f32 %v5129, %v5145
    %v5252 = vadd.f32 %v5130, %v5146
    %v5253 = vadd.f32 %v5131, %v5138
    %v5254 = vadd.f32 %v5132, %v5140
    %v5255 = vadd.f32 %v5133, %v5141
    %v5256 = vadd.f32 %v5134, %v5142
    %v5257 = vadd.f32 %v5135, %v5143
    %v5258 = vmax.f32 %v5154, 0.0
    %v5259 = vmax.f32 %v5155, 0.0
    %v5260 = vmax.f32 %v5156, 0.0
    %v5261 = vmax.f32 %v5157, 0.0
    %v5262 = vmax.f32 %v5158, 0.0
    %v5263 = vmax.f32 %v5159, 0.0
    %v5264 = vmax.f32 %v5160, 0.0
    %v5265 = vmax.f32 %v5161, 0.0
    %v5266 = vmax.f32 %v5162, 0.0
    %v5267 = vmax.f32 %v5163, 0.0
    %v5268 = vmax.f32 %v5164, 0.0
    %v5269 = vmax.f32 %v5165, 0.0
    %v5270 = vmax.f32 %v5166, 0.0
    %v5271 = vmax.f32 %v5167, 0.0
    %v5272 = vmax.f32 %v5168, 0.0
    %v5273 = vmax.f32 %v5169, 0.0
    %v5274 = vmax.f32 %v5170, 0.0
    %v5275 = vmax.f32 %v5171, 0.0
    %v5276 = vmax.f32 %v5172, 0.0
    %v5277 = vmax.f32 %v5173, 0.0
    %v5278 = vmax.f32 %v5174, 0.0
    %v5279 = vmax.f32 %v5175, 0.0
    %v5280 = vmax.f32 %v5176, 0.0
    %v5281 = vmax.f32 %v5177, 0.0
    %v5282 = vmax.f32 %v5178, 0.0
    %v5283 = vmax.f32 %v5179, 0.0
    %v5284 = vmax.f32 %v5180, 0.0
    %v5285 = vmax.f32 %v5181, 0.0
    %v5286 = vmax.f32 %v5182, 0.0
    %v5287 = vmax.f32 %v5183, 0.0
    %v5288 = vmax.f32 %v5184, 0.0
    %v5289 = vmax.f32 %v5185, 0.0
    %v5290 = vmax.f32 %v5186, 0.0
    %v5291 = vmax.f32 %v5187, 0.0
    %v5292 = vmax.f32 %v5188, 0.0
    %v5293 = vmax.f32 %v5189, 0.0
    %v5294 = vmax.f32 %v5190, 0.0
    %v5295 = vmax.f32 %v5191, 0.0
    %v5296 = vmax.f32 %v5192, 0.0
    %v5297 = vmax.f32 %v5193, 0.0
    %v5298 = vmax.f32 %v5194, 0.0
    %v5299 = vmax.f32 %v5195, 0.0
    %v5300 = vmax.f32 %v5196, 0.0
    %v5301 = vmax.f32 %v5197, 0.0
    %v5302 = vmax.f32 %v5198, 0.0
    %v5303 = vmax.f32 %v5199, 0.0
    %v5304 = vmax.f32 %v5200, 0.0
    %v5305 = vmax.f32 %v5201, 0.0
    %v5306 = vmax.f32 %v5202, 0.0
    %v5307 = vmax.f32 %v5203, 0.0
    %v5308 = vmax.f32 %v5204, 0.0
    %v5309 = vmax.f32 %v5205, 0.0
    %v5310 = vmax.f32 %v5206, 0.0
    %v5311 = vmax.f32 %v5207, 0.0
    %v5312 = vmax.f32 %v5208, 0.0
    %v5313 = vmax.f32 %v5209, 0.0
    %v5314 = vmax.f32 %v5210, 0.0
    %v5315 = vmax.f32 %v5211, 0.0
    %v5316 = vmax.f32 %v5212, 0.0
    %v5317 = vmax.f32 %v5213, 0.0
    %v5318 = vmax.f32 %v5214, 0.0
    %v5319 = vmax.f32 %v5215, 0.0
    %v5320 = vmax.f32 %v5216, 0.0
    %v5321 = vmax.f32 %v5217, 0.0
    %v5322 = vmax.f32 %v5218, 0.0
    %v5323 = vmax.f32 %v5219, 0.0
    %v5324 = vmax.f32 %v5220, 0.0
    %v5325 = vmax.f32 %v5221, 0.0
    %v5326 = vmax.f32 %v5222, 0.0
    %v5327 = vmax.f32 %v5223, 0.0
    %v5328 = vmax.f32 %v5224, 0.0
    %v5329 = vmax.f32 %v5225, 0.0
    %v5330 = vmax.f32 %v5226, 0.0
    %v5331 = vmax.f32 %v5227, 0.0
    %v5332 = vmax.f32 %v5228, 0.0
    %v5333 = vmax.f32 %v5229, 0.0
    %v5334 = vmax.f32 %v5230, 0.0
    %v5335 = vmax.f32 %v5231, 0.0
    %v5336 = vmax.f32 %v5232, 0.0
    %v5337 = vmax.f32 %v5233, 0.0
    %v5338 = vmax.f32 %v5234, 0.0
    %v5339 = vmax.f32 %v5235, 0.0
    %v5340 = vmax.f32 %v5236, 0.0
    %v5341 = vmax.f32 %v5237, 0.0
    %v5342 = vmax.f32 %v5238, 0.0
    %v5343 = vmax.f32 %v5239, 0.0
    %v5344 = vmax.f32 %v5240, 0.0
    %v5345 = vmax.f32 %v5241, 0.0
    %v5346 = vmax.f32 %v5242, 0.0
    %v5347 = vmax.f32 %v5243, 0.0
    %v5348 = vmax.f32 %v5244, 0.0
    %v5349 = vmax.f32 %v5245, 0.0
    %v5350 = vmax.f32 %v5246, 0.0
    %v5351 = vmax.f32 %v5247, 0.0
    %v5352 = vmax.f32 %v5248, 0.0
    %v5353 = vmax.f32 %v5249, 0.0
    %v5354 = vmax.f32 %v5250, 0.0
    %v5355 = vmax.f32 %v5251, 0.0
    %v5356 = vmax.f32 %v5252, 0.0
    %v5357 = vmax.f32 %v5253, 0.0
    %v5358 = vmax.f32 %v5254, 0.0
    %v5359 = vmax.f32 %v5255, 0.0
    %v5360 = vmax.f32 %v5256, 0.0
    %v5361 = vmax.f32 %v5257, 0.0
    %5466 = vst [vmem:[#allocation1] ss:$9 sm:$0xff] %v5258
    %s5467 = scalar_lea.vmem [#allocation1], 1
    %5468 = vst [vmem:[%s5467] ss:$9 sm:$0xff] %v5259
    %s5469 = scalar_lea.vmem [#allocation1], 2
    %5470 = vst [vmem:[%s5469] ss:$9 sm:$0xff] %v5260
    %s5471 = scalar_lea.vmem [#allocation1], 3
    %5472 = vst [vmem:[%s5471] ss:$9 sm:$0xff] %v5261
    %s5473 = scalar_lea.vmem [#allocation1], 4
    %5474 = vst [vmem:[%s5473] ss:$9 sm:$0xff] %v5262
    %s5475 = scalar_lea.vmem [#allocation1], 5
    %5476 = vst [vmem:[%s5475] ss:$9 sm:$0xff] %v5263
    %s5477 = scalar_lea.vmem [#allocation1], 6
    %5478 = vst [vmem:[%s5477] ss:$9 sm:$0xff] %v5264
    %s5479 = scalar_lea.vmem [#allocation1], 7
    %5480 = vst [vmem:[%s5479] ss:$9 sm:$0xff] %v5265
    %v5481 = vld [vmem:[#allocation1] sm:$0xff]
    %5482 = vst [vmem:[#allocation1] ss:$9 sm:$0xff] %v5266
    %5483 = vst [vmem:[%s5467] ss:$9 sm:$0xff] %v5267
    %5484 = vst [vmem:[%s5469] ss:$9 sm:$0xff] %v5268
    %5485 = vst [vmem:[%s5471] ss:$9 sm:$0xff] %v5269
    %5486 = vst [vmem:[%s5473] ss:$9 sm:$0xff] %v5270
    %v5487 = vld [vmem:[#allocation1] sm:$0xff]
    %5488 = vst [vmem:[#allocation1] ss:$9 sm:$0xff] %v5271
    %5489 = vst [vmem:[%s5467] ss:$9 sm:$0xff] %v5272
    %5490 = vst [vmem:[%s5469] ss:$9 sm:$0xff] %v5273
    %5491 = vst [vmem:[%s5471] ss:$9 sm:$0xff] %v5274
    %5492 = vst [vmem:[%s5473] ss:$9 sm:$0xff] %v5275
    %5493 = vst [vmem:[%s5475] ss:$9 sm:$0xff] %v5276
    %5494 = vst [vmem:[%s5477] ss:$9 sm:$0xff] %v5277
    %5495 = vst [vmem:[%s5479] ss:$9 sm:$0xff] %v5278
    %v5496 = vld [vmem:[#allocation1] sm:$0xff]
    %5497 = vst [vmem:[#allocation1] ss:$9 sm:$0xff] %v5279
    %5498 = vst [vmem:[%s5467] ss:$9 sm:$0xff] %v5280
    %5499 = vst [vmem:[%s5469] ss:$9 sm:$0xff] %v5281
    %5500 = vst [vmem:[%s5471] ss:$9 sm:$0xff] %v5282
    %5501 = vst [vmem:[%s5473] ss:$9 sm:$0xff] %v5283
    %v5502 = vld [vmem:[#allocation1] sm:$0xff]
    %5503 = vst [vmem:[#allocation1] ss:$9 sm:$0xff] %v5284
    %5504 = vst [vmem:[%s5467] ss:$9 sm:$0xff] %v5285
    %5505 = vst [vmem:[%s5469] ss:$9 sm:$0xff] %v5286
    %5506 = vst [vmem:[%s5471] ss:$9 sm:$0xff] %v5287
    %5507 = vst [vmem:[%s5473] ss:$9 sm:$0xff] %v5288
    %5508 = vst [vmem:[%s5475] ss:$9 sm:$0xff] %v5289
    %5509 = vst [vmem:[%s5477] ss:$9 sm:$0xff] %v5290
    %5510 = vst [vmem:[%s5479] ss:$9 sm:$0xff] %v5291
    %v5511 = vld [vmem:[#allocation1] sm:$0xff]
    %5512 = vst [vmem:[#allocation1] ss:$9 sm:$0xff] %v5292
    %5513 = vst [vmem:[%s5467] ss:$9 sm:$0xff] %v5293
    %5514 = vst [vmem:[%s5469] ss:$9 sm:$0xff] %v5294
    %5515 = vst [vmem:[%s5471] ss:$9 sm:$0xff] %v5295
    %5516 = vst [vmem:[%s5473] ss:$9 sm:$0xff] %v5296
    %v5517 = vld [vmem:[#allocation1] sm:$0xff]
    %5518 = vst [vmem:[#allocation1] ss:$9 sm:$0xff] %v5297
    %5519 = vst [vmem:[%s5467] ss:$9 sm:$0xff] %v5298
    %5520 = vst [vmem:[%s5469] ss:$9 sm:$0xff] %v5299
    %5521 = vst [vmem:[%s5471] ss:$9 sm:$0xff] %v5300
    %5522 = vst [vmem:[%s5473] ss:$9 sm:$0xff] %v5301
    %5523 = vst [vmem:[%s5475] ss:$9 sm:$0xff] %v5302
    %5524 = vst [vmem:[%s5477] ss:$9 sm:$0xff] %v5303
    %5525 = vst [vmem:[%s5479] ss:$9 sm:$0xff] %v5304
    %v5526 = vld [vmem:[#allocation1] sm:$0xff]
    %5527 = vst [vmem:[#allocation1] ss:$9 sm:$0xff] %v5305
    %5528 = vst [vmem:[%s5467] ss:$9 sm:$0xff] %v5306
    %5529 = vst [vmem:[%s5469] ss:$9 sm:$0xff] %v5307
    %5530 = vst [vmem:[%s5471] ss:$9 sm:$0xff] %v5308
    %5531 = vst [vmem:[%s5473] ss:$9 sm:$0xff] %v5309
    %v5532 = vld [vmem:[#allocation1] sm:$0xff]
    %5533 = vst [vmem:[#allocation1] ss:$9 sm:$0xff] %v5310
    %5534 = vst [vmem:[%s5467] ss:$9 sm:$0xff] %v5311
    %5535 = vst [vmem:[%s5469] ss:$9 sm:$0xff] %v5312
    %5536 = vst [vmem:[%s5471] ss:$9 sm:$0xff] %v5313
    %5537 = vst [vmem:[%s5473] ss:$9 sm:$0xff] %v5314
    %5538 = vst [vmem:[%s5475] ss:$9 sm:$0xff] %v5315
    %5539 = vst [vmem:[%s5477] ss:$9 sm:$0xff] %v5316
    %5540 = vst [vmem:[%s5479] ss:$9 sm:$0xff] %v5317
    %v5541 = vld [vmem:[#allocation1] sm:$0xff]
    %5542 = vst [vmem:[#allocation1] ss:$9 sm:$0xff] %v5318
    %5543 = vst [vmem:[%s5467] ss:$9 sm:$0xff] %v5319
    %5544 = vst [vmem:[%s5469] ss:$9 sm:$0xff] %v5320
    %5545 = vst [vmem:[%s5471] ss:$9 sm:$0xff] %v5321
    %5546 = vst [vmem:[%s5473] ss:$9 sm:$0xff] %v5322
    %v5547 = vld [vmem:[#allocation1] sm:$0xff]
    %5548 = vst [vmem:[#allocation1] ss:$9 sm:$0xff] %v5323
    %5549 = vst [vmem:[%s5467] ss:$9 sm:$0xff] %v5324
    %5550 = vst [vmem:[%s5469] ss:$9 sm:$0xff] %v5325
    %5551 = vst [vmem:[%s5471] ss:$9 sm:$0xff] %v5326
    %5552 = vst [vmem:[%s5473] ss:$9 sm:$0xff] %v5327
    %5553 = vst [vmem:[%s5475] ss:$9 sm:$0xff] %v5328
    %5554 = vst [vmem:[%s5477] ss:$9 sm:$0xff] %v5329
    %5555 = vst [vmem:[%s5479] ss:$9 sm:$0xff] %v5330
    %v5556 = vld [vmem:[#allocation1] sm:$0xff]
    %5557 = vst [vmem:[#allocation1] ss:$9 sm:$0xff] %v5331
    %5558 = vst [vmem:[%s5467] ss:$9 sm:$0xff] %v5332
    %5559 = vst [vmem:[%s5469] ss:$9 sm:$0xff] %v5333
    %5560 = vst [vmem:[%s5471] ss:$9 sm:$0xff] %v5334
    %5561 = vst [vmem:[%s5473] ss:$9 sm:$0xff] %v5335
    %v5562 = vld [vmem:[#allocation1] sm:$0xff]
    %5563 = vst [vmem:[#allocation1] ss:$9 sm:$0xff] %v5336
    %5564 = vst [vmem:[%s5467] ss:$9 sm:$0xff] %v5337
    %5565 = vst [vmem:[%s5469] ss:$9 sm:$0xff] %v5338
    %5566 = vst [vmem:[%s5471] ss:$9 sm:$0xff] %v5339
    %5567 = vst [vmem:[%s5473] ss:$9 sm:$0xff] %v5340
    %5568 = vst [vmem:[%s5475] ss:$9 sm:$0xff] %v5341
    %5569 = vst [vmem:[%s5477] ss:$9 sm:$0xff] %v5342
    %5570 = vst [vmem:[%s5479] ss:$9 sm:$0xff] %v5343
    %v5571 = vld [vmem:[#allocation1] sm:$0xff]
    %5572 = vst [vmem:[#allocation1] ss:$9 sm:$0xff] %v5344
    %5573 = vst [vmem:[%s5467] ss:$9 sm:$0xff] %v5345
    %5574 = vst [vmem:[%s5469] ss:$9 sm:$0xff] %v5346
    %5575 = vst [vmem:[%s5471] ss:$9 sm:$0xff] %v5347
    %5576 = vst [vmem:[%s5473] ss:$9 sm:$0xff] %v5348
    %v5577 = vld [vmem:[#allocation1] sm:$0xff]
    %5578 = vst [vmem:[#allocation1] ss:$9 sm:$0xff] %v5349
    %5579 = vst [vmem:[%s5467] ss:$9 sm:$0xff] %v5350
    %5580 = vst [vmem:[%s5469] ss:$9 sm:$0xff] %v5351
    %5581 = vst [vmem:[%s5471] ss:$9 sm:$0xff] %v5352
    %5582 = vst [vmem:[%s5473] ss:$9 sm:$0xff] %v5353
    %5583 = vst [vmem:[%s5475] ss:$9 sm:$0xff] %v5354
    %5584 = vst [vmem:[%s5477] ss:$9 sm:$0xff] %v5355
    %5585 = vst [vmem:[%s5479] ss:$9 sm:$0xff] %v5356
    %v5586 = vld [vmem:[#allocation1] sm:$0xff]
    %5587 = vst [vmem:[#allocation1] ss:$9 sm:$0xff] %v5357
    %5588 = vst [vmem:[%s5467] ss:$9 sm:$0xff] %v5358
    %5589 = vst [vmem:[%s5469] ss:$9 sm:$0xff] %v5359
    %5590 = vst [vmem:[%s5471] ss:$9 sm:$0xff] %v5360
    %5591 = vst [vmem:[%s5473] ss:$9 sm:$0xff] %v5361
    %v5592 = vld [vmem:[#allocation1] sm:$0xff]
    %vm5609 = vcmask 326656
    %v5610 = vsel %vm5609, %v5481, 0.0
    %vm5611 = vcmask 323584
    %v5612 = vsel %vm5611, %v5487, 0.0
    %v5613 = vadd.f32 %v5610, %v5612
    %v5614 = vrot.slane %v5613, 4
    %v5615 = vadd.f32 %v5613, %v5614
    %v5616 = vrot.slane %v5615, 2
    %v5617 = vadd.f32 %v5615, %v5616
    %v5618 = vrot.slane %v5617, 1
    %v5619 = vadd.f32 %v5617, %v5618
    %v5620 = vsel %vm5609, %v5496, 0.0
    %v5621 = vsel %vm5611, %v5502, 0.0
    %v5622 = vadd.f32 %v5620, %v5621
    %v5623 = vrot.slane %v5622, 4
    %v5624 = vadd.f32 %v5622, %v5623
    %v5625 = vrot.slane %v5624, 2
    %v5626 = vadd.f32 %v5624, %v5625
    %v5627 = vrot.slane %v5626, 1
    %v5628 = vadd.f32 %v5626, %v5627
    %v5629 = vsel %vm5609, %v5511, 0.0
    %v5630 = vsel %vm5611, %v5517, 0.0
    %v5631 = vadd.f32 %v5629, %v5630
    %v5632 = vrot.slane %v5631, 4
    %v5633 = vadd.f32 %v5631, %v5632
    %v5634 = vrot.slane %v5633, 2
    %v5635 = vadd.f32 %v5633, %v5634
    %v5636 = vrot.slane %v5635, 1
    %v5637 = vadd.f32 %v5635, %v5636
    %v5638 = vsel %vm5609, %v5526, 0.0
    %v5639 = vsel %vm5611, %v5532, 0.0
    %v5640 = vadd.f32 %v5638, %v5639
    %v5641 = vrot.slane %v5640, 4
    %v5642 = vadd.f32 %v5640, %v5641
    %v5643 = vrot.slane %v5642, 2
    %v5644 = vadd.f32 %v5642, %v5643
    %v5645 = vrot.slane %v5644, 1
    %v5646 = vadd.f32 %v5644, %v5645
    %v5647 = vsel %vm5609, %v5541, 0.0
    %v5648 = vsel %vm5611, %v5547, 0.0
    %v5649 = vadd.f32 %v5647, %v5648
    %v5650 = vrot.slane %v5649, 4
    %v5651 = vadd.f32 %v5649, %v5650
    %v5652 = vrot.slane %v5651, 2
    %v5653 = vadd.f32 %v5651, %v5652
    %v5654 = vrot.slane %v5653, 1
    %v5655 = vadd.f32 %v5653, %v5654
    %v5656 = vsel %vm5609, %v5556, 0.0
    %v5657 = vsel %vm5611, %v5562, 0.0
    %v5658 = vadd.f32 %v5656, %v5657
    %v5659 = vrot.slane %v5658, 4
    %v5660 = vadd.f32 %v5658, %v5659
    %v5661 = vrot.slane %v5660, 2
    %v5662 = vadd.f32 %v5660, %v5661
    %v5663 = vrot.slane %v5662, 1
    %v5664 = vadd.f32 %v5662, %v5663
    %v5665 = vsel %vm5609, %v5571, 0.0
    %v5666 = vsel %vm5611, %v5577, 0.0
    %v5667 = vadd.f32 %v5665, %v5666
    %v5668 = vrot.slane %v5667, 4
    %v5669 = vadd.f32 %v5667, %v5668
    %v5670 = vrot.slane %v5669, 2
    %v5671 = vadd.f32 %v5669, %v5670
    %v5672 = vrot.slane %v5671, 1
    %v5673 = vadd.f32 %v5671, %v5672
    %v5674 = vsel %vm5609, %v5586, 0.0
    %v5675 = vsel %vm5611, %v5592, 0.0
    %v5676 = vadd.f32 %v5674, %v5675
    %v5677 = vrot.slane %v5676, 4
    %v5678 = vadd.f32 %v5676, %v5677
    %v5679 = vrot.slane %v5678, 2
    %v5680 = vadd.f32 %v5678, %v5679
    %v5681 = vrot.slane %v5680, 1
    %v5682 = vadd.f32 %v5680, %v5681
    %v5683 = vpack.c.bf16 %v5619, %v5619
    %v5684 = vpack.c.bf16 %v5628, %v5628
    %v5685 = vpack.c.bf16 %v5637, %v5637
    %v5686 = vpack.c.bf16 %v5646, %v5646
    %v5687 = vpack.c.bf16 %v5655, %v5655
    %v5688 = vpack.c.bf16 %v5664, %v5664
    %v5689 = vpack.c.bf16 %v5673, %v5673
    %v5690 = vpack.c.bf16 %v5682, %v5682
    %v5691 = vld [vmem:[%s5] sm:$0xf]
    %v5692 = vld [vmem:[%s5 + $0x4] sm:$0xf]
    %v5693 = vld [vmem:[%s5 + $0x8] sm:$0xf]
    %v5694 = vld [vmem:[%s5 + $0xc] sm:$0xf]
    %v5695 = vld [vmem:[%s5 + $0x10] sm:$0xf]
    %v5696 = vld [vmem:[%s6] sm:$0x1]
    %v5698 = vperm.slane %v5696, 0
    %v5708 = vunpack.c.l.b16 %v5683
    %v5709 = vunpack.c.l.b16 %v5684
    %v5710 = vunpack.c.l.b16 %v5685
    %v5711 = vunpack.c.l.b16 %v5686
    %v5712 = vunpack.c.l.b16 %v5687
    %v5713 = vunpack.c.l.b16 %v5688
    %v5714 = vunpack.c.l.b16 %v5689
    %v5715 = vunpack.c.l.b16 %v5690
    %v5716 = vsel %vm90, %v5709, %v5708
    %v5717 = vsel %vm94, %v5710, %v5716
    %v5718 = vsel %vm98, %v5711, %v5717
    %vm5719 = vcmask 1044484
    %v5720 = vsel %vm5719, %v5712, %v5718
    %vm5721 = vcmask 1045509
    %v5722 = vsel %vm5721, %v5713, %v5720
    %vm5723 = vcmask 1046534
    %v5724 = vsel %vm5723, %v5714, %v5722
    %vm5725 = vcmask 1047559
    %v5726 = vsel %vm5725, %v5715, %v5724
    %v5727 = vpack.c.b16 %v5726, %v5726
    %v5733 = vunpack.c.l.b16 %v5691
    %v5734 = vunpack.c.l.b16 %v5692
    %v5735 = vunpack.c.l.b16 %v5693
    %v5736 = vunpack.c.l.b16 %v5694
    %v5737 = vunpack.c.l.b16 %v5695
    %v5738 = vpack.c.b16 %v5734, %v5733
    %v5739 = vpack.c.b16 %v5736, %v5735
    %v5740 = vpack.c.b16 %v5737, %v5737
    %v5744 = vsel %vm5609, %v5727, 0
    %vm5746 = vcmask 1043456
    %v5748 = vsel %vm5746, %v5740, 0
    %5750 = vmatpush.bf16.msra.mxu0 0
    %5751 = vmatpush.bf16.msra.mxu0 0
    %5752 = vmatpush.bf16.msra.mxu0 0
    %5753 = vmatpush.bf16.msra.mxu0 0
    %5754 = vmatpush.bf16.msra.mxu0 0
    %5755 = vmatpush.bf16.msra.mxu0 %v5748
    %5756 = vmatpush.bf16.msra.mxu0 %v5739
    %5757 = vmatpush.bf16.msra.mxu0 %v5738
    %5758 = vmatmul.bf16.gmra.mxu0 %v5744
    %v5759 = vpop.f32.mrf.mxu0
    %v5760 = vadd.f32 %v5698, %v5759
    %v5761 = vpop.f32.mrf.mxu0
    %5762 = vdwg.mxu0
    %v5763 = vmax.f32 %v5760, 0.0
    %v5764 = vpack.c.bf16 %v5763, %v5763
    %v5765 = vld [vmem:[%s7] sm:$0xf]
    %v5766 = vld [vmem:[%s7 + $0x4] sm:$0xf]
    %v5767 = vld [vmem:[%s7 + $0x8] sm:$0xf]
    %v5768 = vld [vmem:[%s7 + $0xc] sm:$0xf]
    %v5769 = vld [vmem:[%s7 + $0x10] sm:$0xf]
    %v5770 = vld [vmem:[%s8] sm:$0x1]
    %v5772 = vperm.slane %v5770, 0
    %v5779 = vunpack.c.l.b16 %v5765
    %v5780 = vunpack.c.l.b16 %v5766
    %v5781 = vunpack.c.l.b16 %v5767
    %v5782 = vunpack.c.l.b16 %v5768
    %v5783 = vunpack.c.l.b16 %v5769
    %v5784 = vpack.c.b16 %v5780, %v5779
    %v5785 = vpack.c.b16 %v5782, %v5781
    %v5786 = vpack.c.b16 %v5783, %v5783
    %v5790 = vsel %vm5609, %v5764, 0
    %v5793 = vsel %vm5746, %v5786, 0
    %5795 = vmatpush.bf16.msra.mxu0 0
    %5796 = vmatpush.bf16.msra.mxu0 0
    %5797 = vmatpush.bf16.msra.mxu0 0
    %5798 = vmatpush.bf16.msra.mxu0 0
    %5799 = vmatpush.bf16.msra.mxu0 0
    %5800 = vmatpush.bf16.msra.mxu0 %v5793
    %5801 = vmatpush.bf16.msra.mxu0 %v5785
    %5802 = vmatpush.bf16.msra.mxu0 %v5784
    %5803 = vmatmul.bf16.gmra.mxu0 %v5790
    %v5804 = vpop.f32.mrf.mxu0
    %v5805 = vadd.f32 %v5772, %v5804
    %v5806 = vpop.f32.mrf.mxu0
    %5807 = vdwg.mxu0
    %5808 = vst [vmem:[#allocation2] sm:$0xff] %v5805
    // Predicated region
    $region38: #{tpu_custom_call.1} parent=1 // pred_check
      _
    $region39: #{tpu_custom_call.1} parent=1 // pred_check_branch
      %5810 = sbr.rel (0) target = $region41
    $region40: #{tpu_custom_call.1} parent=1 // pred_region
      %5812 = vsyncadd [#allocation3], 0
      %s5814 = sshll.u32 [#allocation2], 4
      %s5815 = int_to_ptr.vmem [resolvable:$true] %s5814
      %s5816 = sshll.u32 %s9, 4
      %s5817 = int_to_ptr.hbm [resolvable:$true] %s5816
      %5819 = dma.vmem_to_hbm [thread:$0]  %s5815, 128, %s5817, [#allocation3]
    $region41: #{tpu_custom_call.1} parent=1 // pred_fallthru
      _
    // Predicated region
    $region42: #{tpu_custom_call.1} parent=1 // pred_check
      _
    $region43: #{tpu_custom_call.1} parent=1 // pred_check_branch
      %5821 = sbr.rel (0) target = $region45
    $region44: #{tpu_custom_call.1} parent=1 // pred_region
      %5823 = dma.done [#allocation3], 128
    $region45: #{tpu_custom_call.1} parent=1 // pred_fallthru
      _
    %5824 = vsyncpa [#allocation3], 1

</llo_original>
